<compile_context>
chip_gen: v7x
topology: tpu7x:2x2x1
jax: 0.10.0
libtpu: 0.0.40
codegen_flags: <defaults>
</compile_context>

<pallas_src>
import functools
import math

import jax
import jax.numpy as jnp
from jax import lax
from jax.experimental import pallas as pl
from jax.experimental.pallas import tpu as pltpu


def _round_up(x, m):
    return (x + m - 1) // m * m


def _lstm_layer_kernel(x_ref, wihT_ref, whhT_ref, bias_ref, h0_ref, c0_ref,
                       y_ref, hn_ref, cn_ref,
                       gx_ref, h_sc, c_sc, *,
                       seq_len, chunk_t, batch_pad, hidden_pad, needs_mask):
    """One time-chunk of a single-layer LSTM (gate order i, f, g, o).

    Grid axis 0 walks time chunks ("arbitrary"); h/c are carried across chunks
    in persistent VMEM scratch.

    x_ref    : (chunk_t*Bp, IN)   bf16  batch-padded, time-major-flattened
    wihT_ref : (IN, 4*Hp)         bf16  input weights^T, gate-padded
    whhT_ref : (Hp, 4*Hp)         bf16  recurrent weights^T, gate-padded
    bias_ref : (1, 4*Hp)          f32   b_ih + b_hh, gate-padded
    h0 / c0  : (Bp, Hp)           f32
    y_ref    : (chunk_t*Bp, Hp)   bf16  next layer consumes this directly
    hn / cn  : (Bp, Hp)           f32   written once, at the last chunk
    gx_ref   : (chunk_t*Bp, 4*Hp) bf16  VMEM scratch, hoisted input projection
    h_sc/c_sc: (Bp, Hp)           f32   VMEM scratch, cross-chunk carry
    """
    Bp, Hp = batch_pad, hidden_pad
    chunk = pl.program_id(0)

    @pl.when(chunk == 0)
    def _init():
        h_sc[...] = h0_ref[...]
        c_sc[...] = c0_ref[...]

    # (1) Hoisted per-chunk input projection: one MXU matmul covering every
    #     timestep in the chunk, off the serial recurrent path.  f32
    #     accumulation, bias fused in the epilogue, stored as bf16.
    gx_ref[...] = (
        jnp.dot(x_ref[...], wihT_ref[...], preferred_element_type=jnp.float32)
        + bias_ref[...]
    ).astype(gx_ref.dtype)

    # (2) Serial recurrence over the chunk; h/c carried as f32 values.
    def step(s, carry):
        h, c = carry
        row = pl.multiple_of(s * Bp, Bp)
        gates = gx_ref[pl.ds(row, Bp), :].astype(jnp.float32) + jnp.dot(
            h.astype(whhT_ref.dtype), whhT_ref[...],
            preferred_element_type=jnp.float32)
        # Hp is a multiple of 128 -> lane-aligned, zero-cost gate slices.
        i_g = jax.nn.sigmoid(gates[:, 0 * Hp:1 * Hp])
        f_g = jax.nn.sigmoid(gates[:, 1 * Hp:2 * Hp])
        g_g = jnp.tanh(gates[:, 2 * Hp:3 * Hp])
        o_g = jax.nn.sigmoid(gates[:, 3 * Hp:4 * Hp])
        c_new = f_g * c + i_g * g_g
        h_new = o_g * jnp.tanh(c_new)
        y_ref[pl.ds(row, Bp), :] = h_new.astype(y_ref.dtype)  # lane-dense store
        if needs_mask:  # only compiled in when T was padded up to the chunk grid
            valid = chunk * chunk_t + s < seq_len
            h_new = jnp.where(valid, h_new, h)
            c_new = jnp.where(valid, c_new, c)
        return h_new, c_new

    unroll = chunk_t if chunk_t <= 16 else 8   # partial unroll for long chunks
    h_fin, c_fin = lax.fori_loop(0, chunk_t, step, (h_sc[...], c_sc[...]),
                                 unroll=unroll)

    # (3) Persist the carry for the next chunk; emit final state once.
    h_sc[...] = h_fin
    c_sc[...] = c_fin

    @pl.when(chunk == pl.num_programs(0) - 1)
    def _finalize():
        hn_ref[...] = h_fin
        cn_ref[...] = c_fin


def lstm_layer_forward(x2d, w_ihT, w_hhT, bias, h0, c0, *, seq_len, chunk_t):
    """Run one LSTM layer over the (padded) sequence with a chunked grid.

    x2d:   (T_pad*Bp, IN_pad) bf16   (time-major flattened, batch-padded)
    w_ihT: (IN_pad, 4*Hp)     bf16
    w_hhT: (Hp, 4*Hp)         bf16
    bias:  (1, 4*Hp)          f32
    h0,c0: (Bp, Hp)           f32
    Returns y2d (T_pad*Bp, Hp) bf16, h_n (Bp, Hp) f32, c_n (Bp, Hp) f32.
    """
    rows, in_pad = x2d.shape
    bp, hp = h0.shape
    t_pad = rows // bp
    n_chunks = t_pad // chunk_t
    needs_mask = (t_pad != seq_len)
    crows = chunk_t * bp

    kernel = functools.partial(
        _lstm_layer_kernel, seq_len=seq_len, chunk_t=chunk_t,
        batch_pad=bp, hidden_pad=hp, needs_mask=needs_mask)

    return pl.pallas_call(
        kernel,
        grid=(n_chunks,),
        in_specs=[
            pl.BlockSpec((crows, in_pad), lambda t: (t, 0)),      # x chunk
            pl.BlockSpec((in_pad, 4 * hp), lambda t: (0, 0)),     # W_ih^T
            pl.BlockSpec((hp, 4 * hp), lambda t: (0, 0)),         # W_hh^T
            pl.BlockSpec((1, 4 * hp), lambda t: (0, 0)),          # bias
            pl.BlockSpec((bp, hp), lambda t: (0, 0)),             # h0
            pl.BlockSpec((bp, hp), lambda t: (0, 0)),             # c0
        ],
        out_specs=(
            pl.BlockSpec((crows, hp), lambda t: (t, 0)),          # y chunk
            pl.BlockSpec((bp, hp), lambda t: (0, 0)),             # h_n (resident)
            pl.BlockSpec((bp, hp), lambda t: (0, 0)),             # c_n (resident)
        ),
        out_shape=(
            jax.ShapeDtypeStruct((t_pad * bp, hp), jnp.bfloat16),
            jax.ShapeDtypeStruct((bp, hp), jnp.float32),
            jax.ShapeDtypeStruct((bp, hp), jnp.float32),
        ),
        scratch_shapes=[
            pltpu.VMEM((crows, 4 * hp), jnp.bfloat16),  # gx (bf16: half the VMEM)
            pltpu.VMEM((bp, hp), jnp.float32),          # h carry across chunks
            pltpu.VMEM((bp, hp), jnp.float32),          # c carry across chunks
        ],
        compiler_params=pltpu.CompilerParams(
            dimension_semantics=("arbitrary",)),        # recurrence across chunks
    )(x2d, w_ihT, w_hhT, bias, h0, c0)


def _prepare_layer_params(w_ih, w_hh, b_ih, b_hh, *, hidden_pad, in_pad):
    """Transpose, gate-pad (each gate block starts at a 128-lane-aligned
    offset) and bf16-cast the torch-layout LSTM weights."""
    four_h, in_size = w_ih.shape
    h = four_h // 4
    hp = hidden_pad
    w_ihT = jnp.zeros((in_pad, 4 * hp), jnp.float32)
    w_hhT = jnp.zeros((hp, 4 * hp), jnp.float32)
    bias = jnp.zeros((1, 4 * hp), jnp.float32)
    for g in range(4):
        w_ihT = w_ihT.at[:in_size, g * hp:g * hp + h].set(
            w_ih[g * h:(g + 1) * h, :].T)
        w_hhT = w_hhT.at[:h, g * hp:g * hp + h].set(
            w_hh[g * h:(g + 1) * h, :].T)
        bias = bias.at[0, g * hp:g * hp + h].set(
            b_ih[g * h:(g + 1) * h] + b_hh[g * h:(g + 1) * h])
    return {
        "w_ihT": w_ihT.astype(jnp.bfloat16),
        "w_hhT": w_hhT.astype(jnp.bfloat16),
        "bias": bias,
    }


def init_stacked_lstm_raw(key, input_size, hidden_size, num_layers,
                          forget_gate_bias=1.0):
    """Torch.nn.LSTMCell-style init (plus the NeMo forget-gate bias tweak).
    Returns raw f32 (w_ih, w_hh, b_ih, b_hh) tuples per layer."""
    stdv = 1.0 / math.sqrt(hidden_size)
    raw = []
    for layer in range(num_layers):
        in_l = input_size if layer == 0 else hidden_size
        key, k1, k2, k3, k4 = jax.random.split(key, 5)
        w_ih = jax.random.uniform(k1, (4 * hidden_size, in_l),
                                  minval=-stdv, maxval=stdv, dtype=jnp.float32)
        w_hh = jax.random.uniform(k2, (4 * hidden_size, hidden_size),
                                  minval=-stdv, maxval=stdv, dtype=jnp.float32)
        b_ih = jax.random.uniform(k3, (4 * hidden_size,),
                                  minval=-stdv, maxval=stdv, dtype=jnp.float32)
        b_hh = jax.random.uniform(k4, (4 * hidden_size,),
                                  minval=-stdv, maxval=stdv, dtype=jnp.float32)
        if forget_gate_bias is not None:
            b_ih = b_ih.at[hidden_size:2 * hidden_size].set(forget_gate_bias)
            b_hh = b_hh.at[hidden_size:2 * hidden_size].set(0.0)
        raw.append((w_ih, w_hh, b_ih, b_hh))
    return raw


def prepare_stacked_params(raw_params, input_size, hidden_size):
    hp = _round_up(hidden_size, 128)
    params = []
    for layer, (w_ih, w_hh, b_ih, b_hh) in enumerate(raw_params):
        in_pad = input_size if layer == 0 else hp
        params.append(_prepare_layer_params(w_ih, w_hh, b_ih, b_hh,
                                            hidden_pad=hp, in_pad=in_pad))
    return params


def stacked_lstm_forward(x, params, states=None, *, hidden_size, time_chunk=32):
    """Equivalent of StackedLSTM.forward.

    x:      (T, B, input_size)
    states: optional list of (h, c) per layer, each (B, H); zeros if None.
    Returns (y (T, B, H), [(h_n, c_n), ...]).
    """
    seq_len, batch, in_size = x.shape
    h_dim = hidden_size
    hp = params[0]["w_hhT"].shape[0]
    num_layers = len(params)
    # 16-sublane batch padding keeps every bf16 (16,128) tile aligned for the
    # per-step gx loads and y stores.
    bp = _round_up(max(batch, 16), 16)
    chunk_t = max(1, min(time_chunk, seq_len))
    t_pad = _round_up(seq_len, chunk_t)

    # Pad batch/time once; flatten (T_pad, Bp) for the hoisted projection.
    x_pad = jnp.zeros((t_pad, bp, in_size), jnp.float32)
    x_pad = x_pad.at[:seq_len, :batch, :].set(x.astype(jnp.float32))
    layer_in = x_pad.reshape(t_pad * bp, in_size).astype(jnp.bfloat16)

    if states is None:
        zeros = jnp.zeros((batch, h_dim), x.dtype)
        states = [(zeros, zeros)] * num_layers

    out_states = []
    y2d = None
    for l, p in enumerate(params):
        h0, c0 = states[l]
        h0p = jnp.zeros((bp, hp), jnp.float32).at[:batch, :h_dim].set(
            h0.astype(jnp.float32))
        c0p = jnp.zeros((bp, hp), jnp.float32).at[:batch, :h_dim].set(
            c0.astype(jnp.float32))
        y2d, h_n, c_n = lstm_layer_forward(layer_in, p["w_ihT"], p["w_hhT"],
                                           p["bias"], h0p, c0p,
                                           seq_len=seq_len, chunk_t=chunk_t)
        out_states.append((h_n[:batch, :h_dim].astype(x.dtype),
                           c_n[:batch, :h_dim].astype(x.dtype)))
        # Next layer consumes the bf16, padded, already-flattened output
        # directly: no reshape / convert / extra HBM pass between layers.
        layer_in = y2d

    y = y2d.reshape(t_pad, bp, hp)[:seq_len, :batch, :h_dim].astype(x.dtype)
    return y, out_states


def reference_stacked_lstm(x, raw_params, hidden_size):
    """Pure-JAX f32 reference (gate order i, f, g, o), StackedLSTM semantics."""
    seq_len, batch, _ = x.shape
    out = x.astype(jnp.float32)
    states = []
    for (w_ih, w_hh, b_ih, b_hh) in raw_params:
        h = jnp.zeros((batch, hidden_size), jnp.float32)
        c = jnp.zeros((batch, hidden_size), jnp.float32)
        ys = []
        for t in range(seq_len):
            gates = out[t] @ w_ih.T + b_ih + h @ w_hh.T + b_hh
            i_g, f_g, g_g, o_g = jnp.split(gates, 4, axis=-1)
            i_g = jax.nn.sigmoid(i_g)
            f_g = jax.nn.sigmoid(f_g)
            g_g = jnp.tanh(g_g)
            o_g = jax.nn.sigmoid(o_g)
            c = f_g * c + i_g * g_g
            h = o_g * jnp.tanh(c)
            ys.append(h)
        out = jnp.stack(ys, axis=0)
        states.append((h, c))
    return out, states


if __name__ == "__main__":
    # Small shapes consistent with the module: seq=8, batch=2, in=16, hidden=32
    T, B, INPUT, HIDDEN, LAYERS = 8, 2, 16, 32, 2

    key = jax.random.PRNGKey(0)
    key, kx = jax.random.split(key)
    x = jax.random.normal(kx, (T, B, INPUT), dtype=jnp.float32)

    raw = init_stacked_lstm_raw(key, INPUT, HIDDEN, LAYERS, forget_gate_bias=1.0)
    params = prepare_stacked_params(raw, INPUT, HIDDEN)

    y, out_states = stacked_lstm_forward(x, params, states=None,
                                         hidden_size=HIDDEN)
    jax.block_until_ready((y, out_states))

    assert y.shape == (T, B, HIDDEN)
    assert len(out_states) == LAYERS
    for h_n, c_n in out_states:
        assert h_n.shape == (B, HIDDEN)
        assert c_n.shape == (B, HIDDEN)

    # Numerical check vs. an f32 reference (kernel uses bf16 matmul operands,
    # so a loose absolute tolerance is expected and intentional).
    y_ref, states_ref = reference_stacked_lstm(x, raw, HIDDEN)
    assert bool(jnp.all(jnp.isfinite(y)))
    assert float(jnp.max(jnp.abs(y - y_ref))) < 1e-1
    for (h_k, c_k), (h_r, c_r) in zip(out_states, states_ref):
        assert float(jnp.max(jnp.abs(h_k - h_r))) < 1e-1
        assert float(jnp.max(jnp.abs(c_k - c_r))) < 1e-1

    print("KERNEL_OK")
</pallas_src>

<mosaic_0001>
module attributes {stable_mosaic.version = 11 : i64} {
  func.func @_lstm_layer_kernel(%arg0: i32, %arg1: memref<128x16xbf16, #tpu.memory_space<vmem>>, %arg2: memref<16x512xbf16, #tpu.memory_space<vmem>>, %arg3: memref<128x512xbf16, #tpu.memory_space<vmem>>, %arg4: memref<1x512xf32, #tpu.memory_space<vmem>>, %arg5: memref<16x128xf32, #tpu.memory_space<vmem>>, %arg6: memref<16x128xf32, #tpu.memory_space<vmem>>, %arg7: memref<128x128xbf16, #tpu.memory_space<vmem>>, %arg8: memref<16x128xf32, #tpu.memory_space<vmem>>, %arg9: memref<16x128xf32, #tpu.memory_space<vmem>>, %arg10: memref<128x512xbf16, #tpu.memory_space<vmem>>, %arg11: memref<16x128xf32, #tpu.memory_space<vmem>>, %arg12: memref<16x128xf32, #tpu.memory_space<vmem>>) attributes {dimension_semantics = [#tpu.dimension_semantics<arbitrary>], iteration_bounds = array<i64: 1>, scalar_prefetch = 0 : i64, scratch_operands = 3 : i64, tpu.core_type = #tpu.core_type<tc>, window_params = [{transform_indices = @transform_0, window_bounds = array<i64: 128, 16>}, {pipeline_mode = #tpu.pipeline_mode<synchronous>, transform_indices = @transform_1, window_bounds = array<i64: 16, 512>}, {pipeline_mode = #tpu.pipeline_mode<synchronous>, transform_indices = @transform_2, window_bounds = array<i64: 128, 512>}, {pipeline_mode = #tpu.pipeline_mode<synchronous>, transform_indices = @transform_3, window_bounds = array<i64: 1, 512>}, {pipeline_mode = #tpu.pipeline_mode<synchronous>, transform_indices = @transform_4, window_bounds = array<i64: 16, 128>}, {pipeline_mode = #tpu.pipeline_mode<synchronous>, transform_indices = @transform_5, window_bounds = array<i64: 16, 128>}, {transform_indices = @transform_6, window_bounds = array<i64: 128, 128>}, {pipeline_mode = #tpu.pipeline_mode<synchronous>, transform_indices = @transform_7, window_bounds = array<i64: 16, 128>}, {pipeline_mode = #tpu.pipeline_mode<synchronous>, transform_indices = @transform_8, window_bounds = array<i64: 16, 128>}]} {
    %c0_i32 = arith.constant 0 : i32
    %0 = arith.cmpi eq, %arg0, %c0_i32 : i32
    %1 = arith.extui %0 : i1 to i32
    %c0_i32_0 = arith.constant 0 : i32
    %2 = arith.cmpi ne, %1, %c0_i32_0 : i32
    scf.if %2 {
      %c0_90 = arith.constant 0 : index
      %c0_91 = arith.constant 0 : index
      %314 = vector.load %arg5[%c0_90, %c0_91] : memref<16x128xf32, #tpu.memory_space<vmem>>, vector<16x128xf32>
      %c0_92 = arith.constant 0 : index
      %c0_93 = arith.constant 0 : index
      %315 = vector.load %arg11[%c0_92, %c0_93] : memref<16x128xf32, #tpu.memory_space<vmem>>, vector<16x128xf32>
      tpu.vector_store %arg11[%c0_92, %c0_93], %314 {strides = array<i32>} : memref<16x128xf32, #tpu.memory_space<vmem>>, vector<16x128xf32>,
      %c0_94 = arith.constant 0 : index
      %c0_95 = arith.constant 0 : index
      %316 = vector.load %arg6[%c0_94, %c0_95] : memref<16x128xf32, #tpu.memory_space<vmem>>, vector<16x128xf32>
      %c0_96 = arith.constant 0 : index
      %c0_97 = arith.constant 0 : index
      %317 = vector.load %arg12[%c0_96, %c0_97] : memref<16x128xf32, #tpu.memory_space<vmem>>, vector<16x128xf32>
      tpu.vector_store %arg12[%c0_96, %c0_97], %316 {strides = array<i32>} : memref<16x128xf32, #tpu.memory_space<vmem>>, vector<16x128xf32>,
    } else {
    }
    %c0 = arith.constant 0 : index
    %c0_1 = arith.constant 0 : index
    %3 = vector.load %arg1[%c0, %c0_1] : memref<128x16xbf16, #tpu.memory_space<vmem>>, vector<128x16xbf16>
    %c0_2 = arith.constant 0 : index
    %c0_3 = arith.constant 0 : index
    %4 = vector.load %arg2[%c0_2, %c0_3] : memref<16x512xbf16, #tpu.memory_space<vmem>>, vector<16x512xbf16>
    %cst = arith.constant dense<0.000000e+00> : vector<128x512xf32>
    %5 = tpu.matmul %3, %4, %cst {dimension_numbers = #tpu.dot_dimension_numbers<[1], [0], [0], [1], [0, 0, 1, 1], [], []>} : vector<128x16xbf16>, vector<16x512xbf16>, vector<128x512xf32> -> vector<128x512xf32>
    %c0_4 = arith.constant 0 : index
    %c0_5 = arith.constant 0 : index
    %6 = vector.load %arg4[%c0_4, %c0_5] : memref<1x512xf32, #tpu.memory_space<vmem>>, vector<1x512xf32>
    %7 = vector.broadcast %6 : vector<1x512xf32> to vector<128x512xf32>
    %8 = arith.addf %5, %7 : vector<128x512xf32>
    %9 = arith.truncf %8 : vector<128x512xf32> to vector<128x512xbf16>
    %c0_6 = arith.constant 0 : index
    %c0_7 = arith.constant 0 : index
    %10 = vector.load %arg10[%c0_6, %c0_7] : memref<128x512xbf16, #tpu.memory_space<vmem>>, vector<128x512xbf16>
    tpu.vector_store %arg10[%c0_6, %c0_7], %9 {strides = array<i32>} : memref<128x512xbf16, #tpu.memory_space<vmem>>, vector<128x512xbf16>,
    %c0_8 = arith.constant 0 : index
    %c0_9 = arith.constant 0 : index
    %11 = vector.load %arg11[%c0_8, %c0_9] : memref<16x128xf32, #tpu.memory_space<vmem>>, vector<16x128xf32>
    %c0_10 = arith.constant 0 : index
    %c0_11 = arith.constant 0 : index
    %12 = vector.load %arg12[%c0_10, %c0_11] : memref<16x128xf32, #tpu.memory_space<vmem>>, vector<16x128xf32>
    %c0_i32_12 = arith.constant 0 : i32
    %c16_i32 = arith.constant 16 : i32
    %13 = arith.muli %c0_i32_12, %c16_i32 : i32
    %14 = tpu.assume_multiple %13, 16 : i32
    %15 = arith.index_cast %14 : i32 to index
    %c0_13 = arith.constant 0 : index
    %16 = vector.load %arg10[%15, %c0_13] : memref<128x512xbf16, #tpu.memory_space<vmem>>, vector<16x512xbf16>
    %17 = arith.extf %16 : vector<16x512xbf16> to vector<16x512xf32>
    %18 = arith.truncf %11 : vector<16x128xf32> to vector<16x128xbf16>
    %c0_14 = arith.constant 0 : index
    %c0_15 = arith.constant 0 : index
    %19 = vector.load %arg3[%c0_14, %c0_15] : memref<128x512xbf16, #tpu.memory_space<vmem>>, vector<128x512xbf16>
    %cst_16 = arith.constant dense<0.000000e+00> : vector<16x512xf32>
    %20 = tpu.matmul %18, %19, %cst_16 {dimension_numbers = #tpu.dot_dimension_numbers<[1], [0], [0], [1], [0, 0, 1, 1], [], []>} : vector<16x128xbf16>, vector<128x512xbf16>, vector<16x512xf32> -> vector<16x512xf32>
    %21 = arith.addf %17, %20 : vector<16x512xf32>
    %22 = vector.extract_strided_slice %21 {offsets = [0, 0], sizes = [16, 128], strides = [1, 1]} : vector<16x512xf32> to vector<16x128xf32>
    %23 = arith.negf %22 : vector<16x128xf32>
    %24 = math.exp %23 : vector<16x128xf32>
    %cst_17 = arith.constant 1.000000e+00 : f32
    %25 = vector.broadcast %cst_17 : f32 to vector<16x128xf32>
    %26 = arith.addf %25, %24 : vector<16x128xf32>
    %27 = arith.divf %25, %26 : vector<16x128xf32>
    %28 = vector.extract_strided_slice %21 {offsets = [0, 128], sizes = [16, 128], strides = [1, 1]} : vector<16x512xf32> to vector<16x128xf32>
    %29 = arith.negf %28 : vector<16x128xf32>
    %30 = math.exp %29 : vector<16x128xf32>
    %cst_18 = arith.constant 1.000000e+00 : f32
    %31 = vector.broadcast %cst_18 : f32 to vector<16x128xf32>
    %32 = arith.addf %31, %30 : vector<16x128xf32>
    %33 = arith.divf %31, %32 : vector<16x128xf32>
    %34 = vector.extract_strided_slice %21 {offsets = [0, 256], sizes = [16, 128], strides = [1, 1]} : vector<16x512xf32> to vector<16x128xf32>
    %35 = math.tanh %34 : vector<16x128xf32>
    %36 = vector.extract_strided_slice %21 {offsets = [0, 384], sizes = [16, 128], strides = [1, 1]} : vector<16x512xf32> to vector<16x128xf32>
    %37 = arith.negf %36 : vector<16x128xf32>
    %38 = math.exp %37 : vector<16x128xf32>
    %cst_19 = arith.constant 1.000000e+00 : f32
    %39 = vector.broadcast %cst_19 : f32 to vector<16x128xf32>
    %40 = arith.addf %39, %38 : vector<16x128xf32>
    %41 = arith.divf %39, %40 : vector<16x128xf32>
    %42 = arith.mulf %33, %12 : vector<16x128xf32>
    %43 = arith.mulf %27, %35 : vector<16x128xf32>
    %44 = arith.addf %42, %43 : vector<16x128xf32>
    %45 = math.tanh %44 : vector<16x128xf32>
    %46 = arith.mulf %41, %45 : vector<16x128xf32>
    %47 = arith.truncf %46 : vector<16x128xf32> to vector<16x128xbf16>
    %48 = arith.index_cast %14 : i32 to index
    %c0_20 = arith.constant 0 : index
    %49 = vector.load %arg7[%48, %c0_20] : memref<128x128xbf16, #tpu.memory_space<vmem>>, vector<16x128xbf16>
    tpu.vector_store %arg7[%48, %c0_20], %47 {strides = array<i32>} : memref<128x128xbf16, #tpu.memory_space<vmem>>, vector<16x128xbf16>,
    %c1_i32 = arith.constant 1 : i32
    %c16_i32_21 = arith.constant 16 : i32
    %50 = arith.muli %c1_i32, %c16_i32_21 : i32
    %51 = tpu.assume_multiple %50, 16 : i32
    %52 = arith.index_cast %51 : i32 to index
    %c0_22 = arith.constant 0 : index
    %53 = vector.load %arg10[%52, %c0_22] : memref<128x512xbf16, #tpu.memory_space<vmem>>, vector<16x512xbf16>
    %54 = arith.extf %53 : vector<16x512xbf16> to vector<16x512xf32>
    %55 = arith.truncf %46 : vector<16x128xf32> to vector<16x128xbf16>
    %c0_23 = arith.constant 0 : index
    %c0_24 = arith.constant 0 : index
    %56 = vector.load %arg3[%c0_23, %c0_24] : memref<128x512xbf16, #tpu.memory_space<vmem>>, vector<128x512xbf16>
    %cst_25 = arith.constant dense<0.000000e+00> : vector<16x512xf32>
    %57 = tpu.matmul %55, %56, %cst_25 {dimension_numbers = #tpu.dot_dimension_numbers<[1], [0], [0], [1], [0, 0, 1, 1], [], []>} : vector<16x128xbf16>, vector<128x512xbf16>, vector<16x512xf32> -> vector<16x512xf32>
    %58 = arith.addf %54, %57 : vector<16x512xf32>
    %59 = vector.extract_strided_slice %58 {offsets = [0, 0], sizes = [16, 128], strides = [1, 1]} : vector<16x512xf32> to vector<16x128xf32>
    %60 = arith.negf %59 : vector<16x128xf32>
    %61 = math.exp %60 : vector<16x128xf32>
    %cst_26 = arith.constant 1.000000e+00 : f32
    %62 = vector.broadcast %cst_26 : f32 to vector<16x128xf32>
    %63 = arith.addf %62, %61 : vector<16x128xf32>
    %64 = arith.divf %62, %63 : vector<16x128xf32>
    %65 = vector.extract_strided_slice %58 {offsets = [0, 128], sizes = [16, 128], strides = [1, 1]} : vector<16x512xf32> to vector<16x128xf32>
    %66 = arith.negf %65 : vector<16x128xf32>
    %67 = math.exp %66 : vector<16x128xf32>
    %cst_27 = arith.constant 1.000000e+00 : f32
    %68 = vector.broadcast %cst_27 : f32 to vector<16x128xf32>
    %69 = arith.addf %68, %67 : vector<16x128xf32>
    %70 = arith.divf %68, %69 : vector<16x128xf32>
    %71 = vector.extract_strided_slice %58 {offsets = [0, 256], sizes = [16, 128], strides = [1, 1]} : vector<16x512xf32> to vector<16x128xf32>
    %72 = math.tanh %71 : vector<16x128xf32>
    %73 = vector.extract_strided_slice %58 {offsets = [0, 384], sizes = [16, 128], strides = [1, 1]} : vector<16x512xf32> to vector<16x128xf32>
    %74 = arith.negf %73 : vector<16x128xf32>
    %75 = math.exp %74 : vector<16x128xf32>
    %cst_28 = arith.constant 1.000000e+00 : f32
    %76 = vector.broadcast %cst_28 : f32 to vector<16x128xf32>
    %77 = arith.addf %76, %75 : vector<16x128xf32>
    %78 = arith.divf %76, %77 : vector<16x128xf32>
    %79 = arith.mulf %70, %44 : vector<16x128xf32>
    %80 = arith.mulf %64, %72 : vector<16x128xf32>
    %81 = arith.addf %79, %80 : vector<16x128xf32>
    %82 = math.tanh %81 : vector<16x128xf32>
    %83 = arith.mulf %78, %82 : vector<16x128xf32>
    %84 = arith.truncf %83 : vector<16x128xf32> to vector<16x128xbf16>
    %85 = arith.index_cast %51 : i32 to index
    %c0_29 = arith.constant 0 : index
    %86 = vector.load %arg7[%85, %c0_29] : memref<128x128xbf16, #tpu.memory_space<vmem>>, vector<16x128xbf16>
    tpu.vector_store %arg7[%85, %c0_29], %84 {strides = array<i32>} : memref<128x128xbf16, #tpu.memory_space<vmem>>, vector<16x128xbf16>,
    %c2_i32 = arith.constant 2 : i32
    %c16_i32_30 = arith.constant 16 : i32
    %87 = arith.muli %c2_i32, %c16_i32_30 : i32
    %88 = tpu.assume_multiple %87, 16 : i32
    %89 = arith.index_cast %88 : i32 to index
    %c0_31 = arith.constant 0 : index
    %90 = vector.load %arg10[%89, %c0_31] : memref<128x512xbf16, #tpu.memory_space<vmem>>, vector<16x512xbf16>
    %91 = arith.extf %90 : vector<16x512xbf16> to vector<16x512xf32>
    %92 = arith.truncf %83 : vector<16x128xf32> to vector<16x128xbf16>
    %c0_32 = arith.constant 0 : index
    %c0_33 = arith.constant 0 : index
    %93 = vector.load %arg3[%c0_32, %c0_33] : memref<128x512xbf16, #tpu.memory_space<vmem>>, vector<128x512xbf16>
    %cst_34 = arith.constant dense<0.000000e+00> : vector<16x512xf32>
    %94 = tpu.matmul %92, %93, %cst_34 {dimension_numbers = #tpu.dot_dimension_numbers<[1], [0], [0], [1], [0, 0, 1, 1], [], []>} : vector<16x128xbf16>, vector<128x512xbf16>, vector<16x512xf32> -> vector<16x512xf32>
    %95 = arith.addf %91, %94 : vector<16x512xf32>
    %96 = vector.extract_strided_slice %95 {offsets = [0, 0], sizes = [16, 128], strides = [1, 1]} : vector<16x512xf32> to vector<16x128xf32>
    %97 = arith.negf %96 : vector<16x128xf32>
    %98 = math.exp %97 : vector<16x128xf32>
    %cst_35 = arith.constant 1.000000e+00 : f32
    %99 = vector.broadcast %cst_35 : f32 to vector<16x128xf32>
    %100 = arith.addf %99, %98 : vector<16x128xf32>
    %101 = arith.divf %99, %100 : vector<16x128xf32>
    %102 = vector.extract_strided_slice %95 {offsets = [0, 128], sizes = [16, 128], strides = [1, 1]} : vector<16x512xf32> to vector<16x128xf32>
    %103 = arith.negf %102 : vector<16x128xf32>
    %104 = math.exp %103 : vector<16x128xf32>
    %cst_36 = arith.constant 1.000000e+00 : f32
    %105 = vector.broadcast %cst_36 : f32 to vector<16x128xf32>
    %106 = arith.addf %105, %104 : vector<16x128xf32>
    %107 = arith.divf %105, %106 : vector<16x128xf32>
    %108 = vector.extract_strided_slice %95 {offsets = [0, 256], sizes = [16, 128], strides = [1, 1]} : vector<16x512xf32> to vector<16x128xf32>
    %109 = math.tanh %108 : vector<16x128xf32>
    %110 = vector.extract_strided_slice %95 {offsets = [0, 384], sizes = [16, 128], strides = [1, 1]} : vector<16x512xf32> to vector<16x128xf32>
    %111 = arith.negf %110 : vector<16x128xf32>
    %112 = math.exp %111 : vector<16x128xf32>
    %cst_37 = arith.constant 1.000000e+00 : f32
    %113 = vector.broadcast %cst_37 : f32 to vector<16x128xf32>
    %114 = arith.addf %113, %112 : vector<16x128xf32>
    %115 = arith.divf %113, %114 : vector<16x128xf32>
    %116 = arith.mulf %107, %81 : vector<16x128xf32>
    %117 = arith.mulf %101, %109 : vector<16x128xf32>
    %118 = arith.addf %116, %117 : vector<16x128xf32>
    %119 = math.tanh %118 : vector<16x128xf32>
    %120 = arith.mulf %115, %119 : vector<16x128xf32>
    %121 = arith.truncf %120 : vector<16x128xf32> to vector<16x128xbf16>
    %122 = arith.index_cast %88 : i32 to index
    %c0_38 = arith.constant 0 : index
    %123 = vector.load %arg7[%122, %c0_38] : memref<128x128xbf16, #tpu.memory_space<vmem>>, vector<16x128xbf16>
    tpu.vector_store %arg7[%122, %c0_38], %121 {strides = array<i32>} : memref<128x128xbf16, #tpu.memory_space<vmem>>, vector<16x128xbf16>,
    %c3_i32 = arith.constant 3 : i32
    %c16_i32_39 = arith.constant 16 : i32
    %124 = arith.muli %c3_i32, %c16_i32_39 : i32
    %125 = tpu.assume_multiple %124, 16 : i32
    %126 = arith.index_cast %125 : i32 to index
    %c0_40 = arith.constant 0 : index
    %127 = vector.load %arg10[%126, %c0_40] : memref<128x512xbf16, #tpu.memory_space<vmem>>, vector<16x512xbf16>
    %128 = arith.extf %127 : vector<16x512xbf16> to vector<16x512xf32>
    %129 = arith.truncf %120 : vector<16x128xf32> to vector<16x128xbf16>
    %c0_41 = arith.constant 0 : index
    %c0_42 = arith.constant 0 : index
    %130 = vector.load %arg3[%c0_41, %c0_42] : memref<128x512xbf16, #tpu.memory_space<vmem>>, vector<128x512xbf16>
    %cst_43 = arith.constant dense<0.000000e+00> : vector<16x512xf32>
    %131 = tpu.matmul %129, %130, %cst_43 {dimension_numbers = #tpu.dot_dimension_numbers<[1], [0], [0], [1], [0, 0, 1, 1], [], []>} : vector<16x128xbf16>, vector<128x512xbf16>, vector<16x512xf32> -> vector<16x512xf32>
    %132 = arith.addf %128, %131 : vector<16x512xf32>
    %133 = vector.extract_strided_slice %132 {offsets = [0, 0], sizes = [16, 128], strides = [1, 1]} : vector<16x512xf32> to vector<16x128xf32>
    %134 = arith.negf %133 : vector<16x128xf32>
    %135 = math.exp %134 : vector<16x128xf32>
    %cst_44 = arith.constant 1.000000e+00 : f32
    %136 = vector.broadcast %cst_44 : f32 to vector<16x128xf32>
    %137 = arith.addf %136, %135 : vector<16x128xf32>
    %138 = arith.divf %136, %137 : vector<16x128xf32>
    %139 = vector.extract_strided_slice %132 {offsets = [0, 128], sizes = [16, 128], strides = [1, 1]} : vector<16x512xf32> to vector<16x128xf32>
    %140 = arith.negf %139 : vector<16x128xf32>
    %141 = math.exp %140 : vector<16x128xf32>
    %cst_45 = arith.constant 1.000000e+00 : f32
    %142 = vector.broadcast %cst_45 : f32 to vector<16x128xf32>
    %143 = arith.addf %142, %141 : vector<16x128xf32>
    %144 = arith.divf %142, %143 : vector<16x128xf32>
    %145 = vector.extract_strided_slice %132 {offsets = [0, 256], sizes = [16, 128], strides = [1, 1]} : vector<16x512xf32> to vector<16x128xf32>
    %146 = math.tanh %145 : vector<16x128xf32>
    %147 = vector.extract_strided_slice %132 {offsets = [0, 384], sizes = [16, 128], strides = [1, 1]} : vector<16x512xf32> to vector<16x128xf32>
    %148 = arith.negf %147 : vector<16x128xf32>
    %149 = math.exp %148 : vector<16x128xf32>
    %cst_46 = arith.constant 1.000000e+00 : f32
    %150 = vector.broadcast %cst_46 : f32 to vector<16x128xf32>
    %151 = arith.addf %150, %149 : vector<16x128xf32>
    %152 = arith.divf %150, %151 : vector<16x128xf32>
    %153 = arith.mulf %144, %118 : vector<16x128xf32>
    %154 = arith.mulf %138, %146 : vector<16x128xf32>
    %155 = arith.addf %153, %154 : vector<16x128xf32>
    %156 = math.tanh %155 : vector<16x128xf32>
    %157 = arith.mulf %152, %156 : vector<16x128xf32>
    %158 = arith.truncf %157 : vector<16x128xf32> to vector<16x128xbf16>
    %159 = arith.index_cast %125 : i32 to index
    %c0_47 = arith.constant 0 : index
    %160 = vector.load %arg7[%159, %c0_47] : memref<128x128xbf16, #tpu.memory_space<vmem>>, vector<16x128xbf16>
    tpu.vector_store %arg7[%159, %c0_47], %158 {strides = array<i32>} : memref<128x128xbf16, #tpu.memory_space<vmem>>, vector<16x128xbf16>,
    %c4_i32 = arith.constant 4 : i32
    %c16_i32_48 = arith.constant 16 : i32
    %161 = arith.muli %c4_i32, %c16_i32_48 : i32
    %162 = tpu.assume_multiple %161, 16 : i32
    %163 = arith.index_cast %162 : i32 to index
    %c0_49 = arith.constant 0 : index
    %164 = vector.load %arg10[%163, %c0_49] : memref<128x512xbf16, #tpu.memory_space<vmem>>, vector<16x512xbf16>
    %165 = arith.extf %164 : vector<16x512xbf16> to vector<16x512xf32>
    %166 = arith.truncf %157 : vector<16x128xf32> to vector<16x128xbf16>
    %c0_50 = arith.constant 0 : index
    %c0_51 = arith.constant 0 : index
    %167 = vector.load %arg3[%c0_50, %c0_51] : memref<128x512xbf16, #tpu.memory_space<vmem>>, vector<128x512xbf16>
    %cst_52 = arith.constant dense<0.000000e+00> : vector<16x512xf32>
    %168 = tpu.matmul %166, %167, %cst_52 {dimension_numbers = #tpu.dot_dimension_numbers<[1], [0], [0], [1], [0, 0, 1, 1], [], []>} : vector<16x128xbf16>, vector<128x512xbf16>, vector<16x512xf32> -> vector<16x512xf32>
    %169 = arith.addf %165, %168 : vector<16x512xf32>
    %170 = vector.extract_strided_slice %169 {offsets = [0, 0], sizes = [16, 128], strides = [1, 1]} : vector<16x512xf32> to vector<16x128xf32>
    %171 = arith.negf %170 : vector<16x128xf32>
    %172 = math.exp %171 : vector<16x128xf32>
    %cst_53 = arith.constant 1.000000e+00 : f32
    %173 = vector.broadcast %cst_53 : f32 to vector<16x128xf32>
    %174 = arith.addf %173, %172 : vector<16x128xf32>
    %175 = arith.divf %173, %174 : vector<16x128xf32>
    %176 = vector.extract_strided_slice %169 {offsets = [0, 128], sizes = [16, 128], strides = [1, 1]} : vector<16x512xf32> to vector<16x128xf32>
    %177 = arith.negf %176 : vector<16x128xf32>
    %178 = math.exp %177 : vector<16x128xf32>
    %cst_54 = arith.constant 1.000000e+00 : f32
    %179 = vector.broadcast %cst_54 : f32 to vector<16x128xf32>
    %180 = arith.addf %179, %178 : vector<16x128xf32>
    %181 = arith.divf %179, %180 : vector<16x128xf32>
    %182 = vector.extract_strided_slice %169 {offsets = [0, 256], sizes = [16, 128], strides = [1, 1]} : vector<16x512xf32> to vector<16x128xf32>
    %183 = math.tanh %182 : vector<16x128xf32>
    %184 = vector.extract_strided_slice %169 {offsets = [0, 384], sizes = [16, 128], strides = [1, 1]} : vector<16x512xf32> to vector<16x128xf32>
    %185 = arith.negf %184 : vector<16x128xf32>
    %186 = math.exp %185 : vector<16x128xf32>
    %cst_55 = arith.constant 1.000000e+00 : f32
    %187 = vector.broadcast %cst_55 : f32 to vector<16x128xf32>
    %188 = arith.addf %187, %186 : vector<16x128xf32>
    %189 = arith.divf %187, %188 : vector<16x128xf32>
    %190 = arith.mulf %181, %155 : vector<16x128xf32>
    %191 = arith.mulf %175, %183 : vector<16x128xf32>
    %192 = arith.addf %190, %191 : vector<16x128xf32>
    %193 = math.tanh %192 : vector<16x128xf32>
    %194 = arith.mulf %189, %193 : vector<16x128xf32>
    %195 = arith.truncf %194 : vector<16x128xf32> to vector<16x128xbf16>
    %196 = arith.index_cast %162 : i32 to index
    %c0_56 = arith.constant 0 : index
    %197 = vector.load %arg7[%196, %c0_56] : memref<128x128xbf16, #tpu.memory_space<vmem>>, vector<16x128xbf16>
    tpu.vector_store %arg7[%196, %c0_56], %195 {strides = array<i32>} : memref<128x128xbf16, #tpu.memory_space<vmem>>, vector<16x128xbf16>,
    %c5_i32 = arith.constant 5 : i32
    %c16_i32_57 = arith.constant 16 : i32
    %198 = arith.muli %c5_i32, %c16_i32_57 : i32
    %199 = tpu.assume_multiple %198, 16 : i32
    %200 = arith.index_cast %199 : i32 to index
    %c0_58 = arith.constant 0 : index
    %201 = vector.load %arg10[%200, %c0_58] : memref<128x512xbf16, #tpu.memory_space<vmem>>, vector<16x512xbf16>
    %202 = arith.extf %201 : vector<16x512xbf16> to vector<16x512xf32>
    %203 = arith.truncf %194 : vector<16x128xf32> to vector<16x128xbf16>
    %c0_59 = arith.constant 0 : index
    %c0_60 = arith.constant 0 : index
    %204 = vector.load %arg3[%c0_59, %c0_60] : memref<128x512xbf16, #tpu.memory_space<vmem>>, vector<128x512xbf16>
    %cst_61 = arith.constant dense<0.000000e+00> : vector<16x512xf32>
    %205 = tpu.matmul %203, %204, %cst_61 {dimension_numbers = #tpu.dot_dimension_numbers<[1], [0], [0], [1], [0, 0, 1, 1], [], []>} : vector<16x128xbf16>, vector<128x512xbf16>, vector<16x512xf32> -> vector<16x512xf32>
    %206 = arith.addf %202, %205 : vector<16x512xf32>
    %207 = vector.extract_strided_slice %206 {offsets = [0, 0], sizes = [16, 128], strides = [1, 1]} : vector<16x512xf32> to vector<16x128xf32>
    %208 = arith.negf %207 : vector<16x128xf32>
    %209 = math.exp %208 : vector<16x128xf32>
    %cst_62 = arith.constant 1.000000e+00 : f32
    %210 = vector.broadcast %cst_62 : f32 to vector<16x128xf32>
    %211 = arith.addf %210, %209 : vector<16x128xf32>
    %212 = arith.divf %210, %211 : vector<16x128xf32>
    %213 = vector.extract_strided_slice %206 {offsets = [0, 128], sizes = [16, 128], strides = [1, 1]} : vector<16x512xf32> to vector<16x128xf32>
    %214 = arith.negf %213 : vector<16x128xf32>
    %215 = math.exp %214 : vector<16x128xf32>
    %cst_63 = arith.constant 1.000000e+00 : f32
    %216 = vector.broadcast %cst_63 : f32 to vector<16x128xf32>
    %217 = arith.addf %216, %215 : vector<16x128xf32>
    %218 = arith.divf %216, %217 : vector<16x128xf32>
    %219 = vector.extract_strided_slice %206 {offsets = [0, 256], sizes = [16, 128], strides = [1, 1]} : vector<16x512xf32> to vector<16x128xf32>
    %220 = math.tanh %219 : vector<16x128xf32>
    %221 = vector.extract_strided_slice %206 {offsets = [0, 384], sizes = [16, 128], strides = [1, 1]} : vector<16x512xf32> to vector<16x128xf32>
    %222 = arith.negf %221 : vector<16x128xf32>
    %223 = math.exp %222 : vector<16x128xf32>
    %cst_64 = arith.constant 1.000000e+00 : f32
    %224 = vector.broadcast %cst_64 : f32 to vector<16x128xf32>
    %225 = arith.addf %224, %223 : vector<16x128xf32>
    %226 = arith.divf %224, %225 : vector<16x128xf32>
    %227 = arith.mulf %218, %192 : vector<16x128xf32>
    %228 = arith.mulf %212, %220 : vector<16x128xf32>
    %229 = arith.addf %227, %228 : vector<16x128xf32>
    %230 = math.tanh %229 : vector<16x128xf32>
    %231 = arith.mulf %226, %230 : vector<16x128xf32>
    %232 = arith.truncf %231 : vector<16x128xf32> to vector<16x128xbf16>
    %233 = arith.index_cast %199 : i32 to index
    %c0_65 = arith.constant 0 : index
    %234 = vector.load %arg7[%233, %c0_65] : memref<128x128xbf16, #tpu.memory_space<vmem>>, vector<16x128xbf16>
    tpu.vector_store %arg7[%233, %c0_65], %232 {strides = array<i32>} : memref<128x128xbf16, #tpu.memory_space<vmem>>, vector<16x128xbf16>,
    %c6_i32 = arith.constant 6 : i32
    %c16_i32_66 = arith.constant 16 : i32
    %235 = arith.muli %c6_i32, %c16_i32_66 : i32
    %236 = tpu.assume_multiple %235, 16 : i32
    %237 = arith.index_cast %236 : i32 to index
    %c0_67 = arith.constant 0 : index
    %238 = vector.load %arg10[%237, %c0_67] : memref<128x512xbf16, #tpu.memory_space<vmem>>, vector<16x512xbf16>
    %239 = arith.extf %238 : vector<16x512xbf16> to vector<16x512xf32>
    %240 = arith.truncf %231 : vector<16x128xf32> to vector<16x128xbf16>
    %c0_68 = arith.constant 0 : index
    %c0_69 = arith.constant 0 : index
    %241 = vector.load %arg3[%c0_68, %c0_69] : memref<128x512xbf16, #tpu.memory_space<vmem>>, vector<128x512xbf16>
    %cst_70 = arith.constant dense<0.000000e+00> : vector<16x512xf32>
    %242 = tpu.matmul %240, %241, %cst_70 {dimension_numbers = #tpu.dot_dimension_numbers<[1], [0], [0], [1], [0, 0, 1, 1], [], []>} : vector<16x128xbf16>, vector<128x512xbf16>, vector<16x512xf32> -> vector<16x512xf32>
    %243 = arith.addf %239, %242 : vector<16x512xf32>
    %244 = vector.extract_strided_slice %243 {offsets = [0, 0], sizes = [16, 128], strides = [1, 1]} : vector<16x512xf32> to vector<16x128xf32>
    %245 = arith.negf %244 : vector<16x128xf32>
    %246 = math.exp %245 : vector<16x128xf32>
    %cst_71 = arith.constant 1.000000e+00 : f32
    %247 = vector.broadcast %cst_71 : f32 to vector<16x128xf32>
    %248 = arith.addf %247, %246 : vector<16x128xf32>
    %249 = arith.divf %247, %248 : vector<16x128xf32>
    %250 = vector.extract_strided_slice %243 {offsets = [0, 128], sizes = [16, 128], strides = [1, 1]} : vector<16x512xf32> to vector<16x128xf32>
    %251 = arith.negf %250 : vector<16x128xf32>
    %252 = math.exp %251 : vector<16x128xf32>
    %cst_72 = arith.constant 1.000000e+00 : f32
    %253 = vector.broadcast %cst_72 : f32 to vector<16x128xf32>
    %254 = arith.addf %253, %252 : vector<16x128xf32>
    %255 = arith.divf %253, %254 : vector<16x128xf32>
    %256 = vector.extract_strided_slice %243 {offsets = [0, 256], sizes = [16, 128], strides = [1, 1]} : vector<16x512xf32> to vector<16x128xf32>
    %257 = math.tanh %256 : vector<16x128xf32>
    %258 = vector.extract_strided_slice %243 {offsets = [0, 384], sizes = [16, 128], strides = [1, 1]} : vector<16x512xf32> to vector<16x128xf32>
    %259 = arith.negf %258 : vector<16x128xf32>
    %260 = math.exp %259 : vector<16x128xf32>
    %cst_73 = arith.constant 1.000000e+00 : f32
    %261 = vector.broadcast %cst_73 : f32 to vector<16x128xf32>
    %262 = arith.addf %261, %260 : vector<16x128xf32>
    %263 = arith.divf %261, %262 : vector<16x128xf32>
    %264 = arith.mulf %255, %229 : vector<16x128xf32>
    %265 = arith.mulf %249, %257 : vector<16x128xf32>
    %266 = arith.addf %264, %265 : vector<16x128xf32>
    %267 = math.tanh %266 : vector<16x128xf32>
    %268 = arith.mulf %263, %267 : vector<16x128xf32>
    %269 = arith.truncf %268 : vector<16x128xf32> to vector<16x128xbf16>
    %270 = arith.index_cast %236 : i32 to index
    %c0_74 = arith.constant 0 : index
    %271 = vector.load %arg7[%270, %c0_74] : memref<128x128xbf16, #tpu.memory_space<vmem>>, vector<16x128xbf16>
    tpu.vector_store %arg7[%270, %c0_74], %269 {strides = array<i32>} : memref<128x128xbf16, #tpu.memory_space<vmem>>, vector<16x128xbf16>,
    %c7_i32 = arith.constant 7 : i32
    %c16_i32_75 = arith.constant 16 : i32
    %272 = arith.muli %c7_i32, %c16_i32_75 : i32
    %273 = tpu.assume_multiple %272, 16 : i32
    %274 = arith.index_cast %273 : i32 to index
    %c0_76 = arith.constant 0 : index
    %275 = vector.load %arg10[%274, %c0_76] : memref<128x512xbf16, #tpu.memory_space<vmem>>, vector<16x512xbf16>
    %276 = arith.extf %275 : vector<16x512xbf16> to vector<16x512xf32>
    %277 = arith.truncf %268 : vector<16x128xf32> to vector<16x128xbf16>
    %c0_77 = arith.constant 0 : index
    %c0_78 = arith.constant 0 : index
    %278 = vector.load %arg3[%c0_77, %c0_78] : memref<128x512xbf16, #tpu.memory_space<vmem>>, vector<128x512xbf16>
    %cst_79 = arith.constant dense<0.000000e+00> : vector<16x512xf32>
    %279 = tpu.matmul %277, %278, %cst_79 {dimension_numbers = #tpu.dot_dimension_numbers<[1], [0], [0], [1], [0, 0, 1, 1], [], []>} : vector<16x128xbf16>, vector<128x512xbf16>, vector<16x512xf32> -> vector<16x512xf32>
    %280 = arith.addf %276, %279 : vector<16x512xf32>
    %281 = vector.extract_strided_slice %280 {offsets = [0, 0], sizes = [16, 128], strides = [1, 1]} : vector<16x512xf32> to vector<16x128xf32>
    %282 = arith.negf %281 : vector<16x128xf32>
    %283 = math.exp %282 : vector<16x128xf32>
    %cst_80 = arith.constant 1.000000e+00 : f32
    %284 = vector.broadcast %cst_80 : f32 to vector<16x128xf32>
    %285 = arith.addf %284, %283 : vector<16x128xf32>
    %286 = arith.divf %284, %285 : vector<16x128xf32>
    %287 = vector.extract_strided_slice %280 {offsets = [0, 128], sizes = [16, 128], strides = [1, 1]} : vector<16x512xf32> to vector<16x128xf32>
    %288 = arith.negf %287 : vector<16x128xf32>
    %289 = math.exp %288 : vector<16x128xf32>
    %cst_81 = arith.constant 1.000000e+00 : f32
    %290 = vector.broadcast %cst_81 : f32 to vector<16x128xf32>
    %291 = arith.addf %290, %289 : vector<16x128xf32>
    %292 = arith.divf %290, %291 : vector<16x128xf32>
    %293 = vector.extract_strided_slice %280 {offsets = [0, 256], sizes = [16, 128], strides = [1, 1]} : vector<16x512xf32> to vector<16x128xf32>
    %294 = math.tanh %293 : vector<16x128xf32>
    %295 = vector.extract_strided_slice %280 {offsets = [0, 384], sizes = [16, 128], strides = [1, 1]} : vector<16x512xf32> to vector<16x128xf32>
    %296 = arith.negf %295 : vector<16x128xf32>
    %297 = math.exp %296 : vector<16x128xf32>
    %cst_82 = arith.constant 1.000000e+00 : f32
    %298 = vector.broadcast %cst_82 : f32 to vector<16x128xf32>
    %299 = arith.addf %298, %297 : vector<16x128xf32>
    %300 = arith.divf %298, %299 : vector<16x128xf32>
    %301 = arith.mulf %292, %266 : vector<16x128xf32>
    %302 = arith.mulf %286, %294 : vector<16x128xf32>
    %303 = arith.addf %301, %302 : vector<16x128xf32>
    %304 = math.tanh %303 : vector<16x128xf32>
    %305 = arith.mulf %300, %304 : vector<16x128xf32>
    %306 = arith.truncf %305 : vector<16x128xf32> to vector<16x128xbf16>
    %307 = arith.index_cast %273 : i32 to index
    %c0_83 = arith.constant 0 : index
    %308 = vector.load %arg7[%307, %c0_83] : memref<128x128xbf16, #tpu.memory_space<vmem>>, vector<16x128xbf16>
    tpu.vector_store %arg7[%307, %c0_83], %306 {strides = array<i32>} : memref<128x128xbf16, #tpu.memory_space<vmem>>, vector<16x128xbf16>,
    %c8_i32 = arith.constant 8 : i32
    %c0_84 = arith.constant 0 : index
    %c0_85 = arith.constant 0 : index
    %309 = vector.load %arg11[%c0_84, %c0_85] : memref<16x128xf32, #tpu.memory_space<vmem>>, vector<16x128xf32>
    tpu.vector_store %arg11[%c0_84, %c0_85], %305 {strides = array<i32>} : memref<16x128xf32, #tpu.memory_space<vmem>>, vector<16x128xf32>,
    %c0_86 = arith.constant 0 : index
    %c0_87 = arith.constant 0 : index
    %310 = vector.load %arg12[%c0_86, %c0_87] : memref<16x128xf32, #tpu.memory_space<vmem>>, vector<16x128xf32>
    tpu.vector_store %arg12[%c0_86, %c0_87], %303 {strides = array<i32>} : memref<16x128xf32, #tpu.memory_space<vmem>>, vector<16x128xf32>,
    %c0_i32_88 = arith.constant 0 : i32
    %311 = arith.cmpi eq, %arg0, %c0_i32_88 : i32
    %312 = arith.extui %311 : i1 to i32
    %c0_i32_89 = arith.constant 0 : i32
    %313 = arith.cmpi ne, %312, %c0_i32_89 : i32
    scf.if %313 {
      %c0_90 = arith.constant 0 : index
      %c0_91 = arith.constant 0 : index
      %314 = vector.load %arg8[%c0_90, %c0_91] : memref<16x128xf32, #tpu.memory_space<vmem>>, vector<16x128xf32>
      tpu.vector_store %arg8[%c0_90, %c0_91], %305 {strides = array<i32>} : memref<16x128xf32, #tpu.memory_space<vmem>>, vector<16x128xf32>,
      %c0_92 = arith.constant 0 : index
      %c0_93 = arith.constant 0 : index
      %315 = vector.load %arg9[%c0_92, %c0_93] : memref<16x128xf32, #tpu.memory_space<vmem>>, vector<16x128xf32>
      tpu.vector_store %arg9[%c0_92, %c0_93], %303 {strides = array<i32>} : memref<16x128xf32, #tpu.memory_space<vmem>>, vector<16x128xf32>,
    } else {
    }
    return
  }
  func.func @transform_0(%arg0: i32) -> (i32, i32) {
    %c0_i32 = arith.constant 0 : i32
    %c0_i32_0 = arith.constant 0 : i32
    return %arg0, %c0_i32 : i32, i32
  }
  func.func @transform_1(%arg0: i32) -> (i32, i32) {
    %c0_i32 = arith.constant 0 : i32
    %c0_i32_0 = arith.constant 0 : i32
    %c0_i32_1 = arith.constant 0 : i32
    return %c0_i32, %c0_i32_0 : i32, i32
  }
  func.func @transform_2(%arg0: i32) -> (i32, i32) {
    %c0_i32 = arith.constant 0 : i32
    %c0_i32_0 = arith.constant 0 : i32
    %c0_i32_1 = arith.constant 0 : i32
    return %c0_i32, %c0_i32_0 : i32, i32
  }
  func.func @transform_3(%arg0: i32) -> (i32, i32) {
    %c0_i32 = arith.constant 0 : i32
    %c0_i32_0 = arith.constant 0 : i32
    %c0_i32_1 = arith.constant 0 : i32
    return %c0_i32, %c0_i32_0 : i32, i32
  }
  func.func @transform_4(%arg0: i32) -> (i32, i32) {
    %c0_i32 = arith.constant 0 : i32
    %c0_i32_0 = arith.constant 0 : i32
    %c0_i32_1 = arith.constant 0 : i32
    return %c0_i32, %c0_i32_0 : i32, i32
  }
  func.func @transform_5(%arg0: i32) -> (i32, i32) {
    %c0_i32 = arith.constant 0 : i32
    %c0_i32_0 = arith.constant 0 : i32
    %c0_i32_1 = arith.constant 0 : i32
    return %c0_i32, %c0_i32_0 : i32, i32
  }
  func.func @transform_6(%arg0: i32) -> (i32, i32) {
    %c0_i32 = arith.constant 0 : i32
    %c0_i32_0 = arith.constant 0 : i32
    return %arg0, %c0_i32 : i32, i32
  }
  func.func @transform_7(%arg0: i32) -> (i32, i32) {
    %c0_i32 = arith.constant 0 : i32
    %c0_i32_0 = arith.constant 0 : i32
    %c0_i32_1 = arith.constant 0 : i32
    return %c0_i32, %c0_i32_0 : i32, i32
  }
  func.func @transform_8(%arg0: i32) -> (i32, i32) {
    %c0_i32 = arith.constant 0 : i32
    %c0_i32_0 = arith.constant 0 : i32
    %c0_i32_1 = arith.constant 0 : i32
    return %c0_i32, %c0_i32_0 : i32, i32
  }
}

</mosaic_0001>

<llo_original>
// kernel: tpu_custom_call.1
$region0: #{tpu_custom_call.1}
  #allocation0 [shape = 'u32[]', space=smem, size = 0x4, offset = 0x4, fixed_abs, tag = 'smem constant byte address 0x4 - core index']
  #allocation1 [shape = 'u32[144,128]{1,0:T(1,128)}', space=vmem, size = 0x12000, scoped, tag = 'internal scratch']
  #allocation2 [shape = 'bf16[128,512]{1,0:T(16,128)(2,1)}', space=vmem, size = 0x20000, scoped, tag = 'scratch operand']
  #allocation3 [shape = 'f32[16,128]{1,0:T(8,128)}', space=vmem, size = 0x2000, scoped, tag = 'scratch operand']
  #allocation4 [shape = 'f32[16,128]{1,0:T(8,128)}', space=vmem, size = 0x2000, scoped, tag = 'scratch operand']
  %s0 = inlined_call_operand.vmem [shape: bf16[128,16], index: 0, kind: input, shape index: {}]
  %s1 = inlined_call_operand.vmem [shape: bf16[16,512], index: 1, kind: input, shape index: {}]
  %s2 = inlined_call_operand.hbm [shape: bf16[128,512], index: 2, kind: input, shape index: {}]
  %s3 = inlined_call_operand.vmem [shape: f32[1,512], index: 3, kind: input, shape index: {}]
  %s4 = inlined_call_operand.vmem [shape: f32[16,128], index: 4, kind: input, shape index: {}]
  %s5 = inlined_call_operand.vmem [shape: f32[16,128], index: 5, kind: input, shape index: {}]
  %s6 = inlined_call_operand.hbm [shape: bf16[128,128], index: 6, kind: output, shape index: {0}]
  %s7 = inlined_call_operand.hbm [shape: f32[16,128], index: 7, kind: output, shape index: {1}]
  %s8 = inlined_call_operand.hbm [shape: f32[16,128], index: 8, kind: output, shape index: {2}]
  %9 = xla_tuple %s6, %s7, %s8
  %s10 = sld [smem:[#allocation0]]
  $region62: #{tpu_custom_call.1} parent=0
    _
  %s12 = ssub.s32 1, %s10
  %s13 = scalar_select 0, %s12, %s10
  $region1: #{tpu_custom_call.1} parent=0
    #allocation5 [shape = 'u8[131072]{0}', space=vmem, size = 0x20000, scoped, tag = 'input window, operand 2, single buffered']
    #allocation6 [shape = 's32[1]{0}', space=sflag, size = 0x4, scoped, tag = 'scoped memory for tpu_custom_call.1']
    #allocation7 [shape = 's32[1]{0}', space=sflag, size = 0x4, scoped, tag = 'scoped memory for tpu_custom_call.1']
    #allocation8 [shape = 'u8[32768]{0}', space=vmem, size = 0x8000, scoped, tag = 'output window, operand 0, single buffered']
    #allocation9 [shape = 'u8[8192]{0}', space=vmem, size = 0x2000, scoped, tag = 'output window, operand 1, single buffered']
    #allocation10 [shape = 's32[1]{0}', space=sflag, size = 0x4, scoped, tag = 'scoped memory for tpu_custom_call.1']
    #allocation11 [shape = 'u8[8192]{0}', space=vmem, size = 0x2000, scoped, tag = 'output window, operand 2, single buffered']
    %14 = vsyncpa [#allocation6], 0
    %15 = vsyncpa [#allocation7], 0
    %16 = vsyncpa [#allocation10], 0
    // Predicated region
    $region2: #{tpu_custom_call.1} parent=1 // pred_check
      _
    $region3: #{tpu_custom_call.1} parent=1 // pred_check_branch
      %18 = sbr.rel (0) target = $region5
    $region4: #{tpu_custom_call.1} parent=1 // pred_region
      _
    $region5: #{tpu_custom_call.1} parent=1 // pred_fallthru
      _
    // Predicated region
    $region6: #{tpu_custom_call.1} parent=1 // pred_check
      _
    $region7: #{tpu_custom_call.1} parent=1 // pred_check_branch
      %20 = sbr.rel (0) target = $region9
    $region8: #{tpu_custom_call.1} parent=1 // pred_region
      _
    $region9: #{tpu_custom_call.1} parent=1 // pred_fallthru
      _
    // Predicated region
    $region10: #{tpu_custom_call.1} parent=1 // pred_check
      _
    $region11: #{tpu_custom_call.1} parent=1 // pred_check_branch
      %22 = sbr.rel (0) target = $region13
    $region12: #{tpu_custom_call.1} parent=1 // pred_region
      %s24 = ssub.s32 4096, 4096
      %25 = vsyncadd [#allocation6], %s24
      %s26 = sshll.u32 [#allocation5], 4
      %s27 = int_to_ptr.vmem [resolvable:$true] %s26
      %32 = dma.hbm_to_vmem [thread:$0]  %s2, 4096, %s27, [#allocation6], 256, 256, 16
    $region13: #{tpu_custom_call.1} parent=1 // pred_fallthru
      _
    // Predicated region
    $region14: #{tpu_custom_call.1} parent=1 // pred_check
      _
    $region15: #{tpu_custom_call.1} parent=1 // pred_check_branch
      %34 = sbr.rel (0) target = $region17
    $region16: #{tpu_custom_call.1} parent=1 // pred_region
      _
    $region17: #{tpu_custom_call.1} parent=1 // pred_fallthru
      _
    // Predicated region
    $region18: #{tpu_custom_call.1} parent=1 // pred_check
      _
    $region19: #{tpu_custom_call.1} parent=1 // pred_check_branch
      %36 = sbr.rel (0) target = $region21
    $region20: #{tpu_custom_call.1} parent=1 // pred_region
      _
    $region21: #{tpu_custom_call.1} parent=1 // pred_fallthru
      _
    // Predicated region
    $region22: #{tpu_custom_call.1} parent=1 // pred_check
      _
    $region23: #{tpu_custom_call.1} parent=1 // pred_check_branch
      %38 = sbr.rel (0) target = $region25
    $region24: #{tpu_custom_call.1} parent=1 // pred_region
      _
    $region25: #{tpu_custom_call.1} parent=1 // pred_fallthru
      _
    // Predicated region
    $region26: #{tpu_custom_call.1} parent=1 // pred_check
      _
    $region27: #{tpu_custom_call.1} parent=1 // pred_check_branch
      %40 = sbr.rel (0) target = $region29
    $region28: #{tpu_custom_call.1} parent=1 // pred_region
      %41 = dma.done [#allocation6], 4096
    $region29: #{tpu_custom_call.1} parent=1 // pred_fallthru
      _
    %p43 = scmp.eq.s32.totalorder 0, 0
    // Predicated region
    $region30: #{tpu_custom_call.1} parent=1 // pred_check
      %p44 = pneg %p43
    $region31: #{tpu_custom_call.1} parent=1 // pred_check_branch
      %46 = sbr.rel (%p44) target = $region33
    $region32: #{tpu_custom_call.1} parent=1 // pred_region
      %v47 = vld [vmem:[%s4] sm:$0xff]
      %v48 = vld [vmem:[%s4 + $0x8] sm:$0xff]
      %49 = vst [vmem:[#allocation3] sm:$0xff] %v47
      %50 = vst [vmem:[#allocation3 + $0x8] sm:$0xff] %v48
      %v51 = vld [vmem:[%s5] sm:$0xff]
      %v52 = vld [vmem:[%s5 + $0x8] sm:$0xff]
      %53 = vst [vmem:[#allocation4] sm:$0xff] %v51
      %54 = vst [vmem:[#allocation4 + $0x8] sm:$0xff] %v52
    $region33: #{tpu_custom_call.1} parent=1 // pred_fallthru
      _
    %v55 = vld [vmem:[%s0] sm:$0xf]
    %v56 = vld [vmem:[%s0 + $0x4] sm:$0xf]
    %v57 = vld [vmem:[%s0 + $0x8] sm:$0xf]
    %v58 = vld [vmem:[%s0 + $0xc] sm:$0xf]
    %v59 = vld [vmem:[%s0 + $0x10] sm:$0xf]
    %v60 = vld [vmem:[%s0 + $0x14] sm:$0xf]
    %v61 = vld [vmem:[%s0 + $0x18] sm:$0xf]
    %v62 = vld [vmem:[%s0 + $0x1c] sm:$0xf]
    %v63 = vld [vmem:[%s0 + $0x20] sm:$0xf]
    %v64 = vld [vmem:[%s0 + $0x24] sm:$0xf]
    %v65 = vld [vmem:[%s0 + $0x28] sm:$0xf]
    %v66 = vld [vmem:[%s0 + $0x2c] sm:$0xf]
    %v67 = vld [vmem:[%s0 + $0x30] sm:$0xf]
    %v68 = vld [vmem:[%s0 + $0x34] sm:$0xf]
    %v69 = vld [vmem:[%s0 + $0x38] sm:$0xf]
    %v70 = vld [vmem:[%s0 + $0x3c] sm:$0xf]
    %v71 = vld [vmem:[%s1] sm:$0xff]
    %v72 = vld [vmem:[%s1 + $0x8] sm:$0xff]
    %v73 = vld [vmem:[%s1 + $0x10] sm:$0xff]
    %v74 = vld [vmem:[%s1 + $0x18] sm:$0xff]
    %v75 = vld [vmem:[%s3] sm:$0xf]
    %v77 = vlaneseq
    %v78 = vshrl.u32 %v77, 7
    %v79 = vsub.s32 0, %v78
    %v80 = vrot.slane %v75, %v79
    %v81 = vlaneseq
    %v82 = vshrl.u32 %v81, 7
    %v83 = vsub.s32 1, %v82
    %v84 = vrot.slane %v75, %v83
    %v85 = vlaneseq
    %v86 = vshrl.u32 %v85, 7
    %v87 = vsub.s32 2, %v86
    %v88 = vrot.slane %v75, %v87
    %v89 = vlaneseq
    %v90 = vshrl.u32 %v89, 7
    %v91 = vsub.s32 3, %v90
    %v92 = vrot.slane %v75, %v91
    %v113 = vunpack.c.l.b16 %v55
    %v114 = vunpack.c.l.b16 %v56
    %v115 = vunpack.c.l.b16 %v57
    %v116 = vunpack.c.l.b16 %v58
    %v117 = vunpack.c.l.b16 %v59
    %v118 = vunpack.c.l.b16 %v60
    %v119 = vunpack.c.l.b16 %v61
    %v120 = vunpack.c.l.b16 %v62
    %v121 = vunpack.c.l.b16 %v63
    %v122 = vunpack.c.l.b16 %v64
    %v123 = vunpack.c.l.b16 %v65
    %v124 = vunpack.c.l.b16 %v66
    %v125 = vunpack.c.l.b16 %v67
    %v126 = vunpack.c.l.b16 %v68
    %v127 = vunpack.c.l.b16 %v69
    %v128 = vunpack.c.l.b16 %v70
    %v129 = vpack.c.b16 %v114, %v113
    %v130 = vpack.c.b16 %v116, %v115
    %v131 = vpack.c.b16 %v118, %v117
    %v132 = vpack.c.b16 %v120, %v119
    %v133 = vpack.c.b16 %v122, %v121
    %v134 = vpack.c.b16 %v124, %v123
    %v135 = vpack.c.b16 %v126, %v125
    %v136 = vpack.c.b16 %v128, %v127
    %v141 = vunpack.c.l.b16 %v71
    %v142 = vunpack.c.h.b16 %v71
    %v143 = vunpack.c.l.b16 %v72
    %v144 = vunpack.c.h.b16 %v72
    %v145 = vunpack.c.l.b16 %v73
    %v146 = vunpack.c.h.b16 %v73
    %v147 = vunpack.c.l.b16 %v74
    %v148 = vunpack.c.h.b16 %v74
    %v149 = vpack.c.b16 %v145, %v141
    %v150 = vpack.c.b16 %v146, %v142
    %v151 = vpack.c.b16 %v147, %v143
    %v152 = vpack.c.b16 %v148, %v144
    %vm157 = vcmask 130048
    %v159 = vsel %vm157, %v129, 0
    %v162 = vsel %vm157, %v130, 0
    %v165 = vsel %vm157, %v131, 0
    %v168 = vsel %vm157, %v132, 0
    %v171 = vsel %vm157, %v133, 0
    %v174 = vsel %vm157, %v134, 0
    %v177 = vsel %vm157, %v135, 0
    %v180 = vsel %vm157, %v136, 0
    %182 = vmatprep.subr.bf16.mxu0 %v150
    %183 = vmatpush1.bf16.msra.mxu0 %v149
    %184 = vmatprep.subr.bf16.mxu0 0
    %185 = vmatpush1.bf16.msra.mxu0 0
    %186 = vmatprep.subr.bf16.mxu0 0
    %187 = vmatpush1.bf16.msra.mxu0 0
    %188 = vmatprep.subr.bf16.mxu0 0
    %189 = vmatpush1.bf16.msra.mxu0 0
    %190 = vmatprep.subr.bf16.mxu0 0
    %191 = vmatpush1.bf16.msra.mxu0 0
    %192 = vmatprep.subr.bf16.mxu0 0
    %193 = vmatpush1.bf16.msra.mxu0 0
    %194 = vmatprep.subr.bf16.mxu0 0
    %195 = vmatpush1.bf16.msra.mxu0 0
    %196 = vmatprep.subr.bf16.mxu0 0
    %197 = vmatpush1.bf16.msra.mxu0 0
    %198 = vmatprep.subr.bf16.mxu0 0
    %199 = vmatpush1.bf16.msra.mxu0 0
    %200 = vmatprep.subr.bf16.mxu0 0
    %201 = vmatpush1.bf16.msra.mxu0 0
    %202 = vmatprep.subr.bf16.mxu0 0
    %203 = vmatpush1.bf16.msra.mxu0 0
    %204 = vmatprep.subr.bf16.mxu0 0
    %205 = vmatpush1.bf16.msra.mxu0 0
    %206 = vmatprep.subr.bf16.mxu0 0
    %207 = vmatpush1.bf16.msra.mxu0 0
    %208 = vmatprep.subr.bf16.mxu0 0
    %209 = vmatpush1.bf16.msra.mxu0 0
    %210 = vmatprep.subr.bf16.mxu0 0
    %211 = vmatpush1.bf16.msra.mxu0 0
    %212 = vmatprep.subr.bf16.mxu0 0
    %213 = vmatpush1.bf16.msra.mxu0 0
    %214 = vmatprep.mubr.bf16.mxu0 0
    %215 = vmatmul.mubr.bf16.gmra.mrb[0].mxu0 %v159
    %v216 = vpop.f32.mrb[0].mxu0
    %v217 = vadd.f32 %v80, %v216
    %v218 = vpop.f32.mrb[0].mxu0
    %v219 = vadd.f32 %v84, %v218
    %v220 = vpop.f32.mrb[0].mxu0
    %v221 = vadd.f32 %v80, %v220
    %v222 = vpop.f32.mrb[0].mxu0
    %v223 = vadd.f32 %v84, %v222
    %224 = vmatprep.mubr.bf16.mxu0 0
    %225 = vmatmul.mubr.bf16.gmra.mrb[0].mxu0 %v162
    %v226 = vpop.f32.mrb[0].mxu0
    %v227 = vadd.f32 %v80, %v226
    %v228 = vpop.f32.mrb[0].mxu0
    %v229 = vadd.f32 %v84, %v228
    %v230 = vpop.f32.mrb[0].mxu0
    %v231 = vadd.f32 %v80, %v230
    %v232 = vpop.f32.mrb[0].mxu0
    %v233 = vadd.f32 %v84, %v232
    %234 = vmatprep.mubr.bf16.mxu0 0
    %235 = vmatmul.mubr.bf16.gmra.mrb[0].mxu0 %v165
    %v236 = vpop.f32.mrb[0].mxu0
    %v237 = vadd.f32 %v80, %v236
    %v238 = vpop.f32.mrb[0].mxu0
    %v239 = vadd.f32 %v84, %v238
    %v240 = vpop.f32.mrb[0].mxu0
    %v241 = vadd.f32 %v80, %v240
    %v242 = vpop.f32.mrb[0].mxu0
    %v243 = vadd.f32 %v84, %v242
    %244 = vmatprep.mubr.bf16.mxu0 0
    %245 = vmatmul.mubr.bf16.gmra.mrb[0].mxu0 %v168
    %v246 = vpop.f32.mrb[0].mxu0
    %v247 = vadd.f32 %v80, %v246
    %v248 = vpop.f32.mrb[0].mxu0
    %v249 = vadd.f32 %v84, %v248
    %v250 = vpop.f32.mrb[0].mxu0
    %v251 = vadd.f32 %v80, %v250
    %v252 = vpop.f32.mrb[0].mxu0
    %v253 = vadd.f32 %v84, %v252
    %254 = vmatprep.mubr.bf16.mxu0 0
    %255 = vmatmul.mubr.bf16.gmra.mrb[0].mxu0 %v171
    %v256 = vpop.f32.mrb[0].mxu0
    %v257 = vadd.f32 %v80, %v256
    %v258 = vpop.f32.mrb[0].mxu0
    %v259 = vadd.f32 %v84, %v258
    %v260 = vpop.f32.mrb[0].mxu0
    %v261 = vadd.f32 %v80, %v260
    %v262 = vpop.f32.mrb[0].mxu0
    %v263 = vadd.f32 %v84, %v262
    %264 = vmatprep.mubr.bf16.mxu0 0
    %265 = vmatmul.mubr.bf16.gmra.mrb[0].mxu0 %v174
    %v266 = vpop.f32.mrb[0].mxu0
    %v267 = vadd.f32 %v80, %v266
    %v268 = vpop.f32.mrb[0].mxu0
    %v269 = vadd.f32 %v84, %v268
    %v270 = vpop.f32.mrb[0].mxu0
    %v271 = vadd.f32 %v80, %v270
    %v272 = vpop.f32.mrb[0].mxu0
    %v273 = vadd.f32 %v84, %v272
    %274 = vmatprep.mubr.bf16.mxu0 0
    %275 = vmatmul.mubr.bf16.gmra.mrb[0].mxu0 %v177
    %v276 = vpop.f32.mrb[0].mxu0
    %v277 = vadd.f32 %v80, %v276
    %v278 = vpop.f32.mrb[0].mxu0
    %v279 = vadd.f32 %v84, %v278
    %v280 = vpop.f32.mrb[0].mxu0
    %v281 = vadd.f32 %v80, %v280
    %v282 = vpop.f32.mrb[0].mxu0
    %v283 = vadd.f32 %v84, %v282
    %284 = vmatprep.mubr.bf16.mxu0 0
    %285 = vmatmul.mubr.bf16.gmra.mrb[0].mxu0 %v180
    %v286 = vpop.f32.mrb[0].mxu0
    %v287 = vadd.f32 %v80, %v286
    %v288 = vpop.f32.mrb[0].mxu0
    %v289 = vadd.f32 %v84, %v288
    %v290 = vpop.f32.mrb[0].mxu0
    %v291 = vadd.f32 %v80, %v290
    %v292 = vpop.f32.mrb[0].mxu0
    %v293 = vadd.f32 %v84, %v292
    %294 = vdwg.mxu0
    %295 = vmatprep.subr.bf16.mxu0 %v152
    %296 = vmatpush1.bf16.msra.mxu0 %v151
    %297 = vmatprep.subr.bf16.mxu0 0
    %298 = vmatpush1.bf16.msra.mxu0 0
    %299 = vmatprep.subr.bf16.mxu0 0
    %300 = vmatpush1.bf16.msra.mxu0 0
    %301 = vmatprep.subr.bf16.mxu0 0
    %302 = vmatpush1.bf16.msra.mxu0 0
    %303 = vmatprep.subr.bf16.mxu0 0
    %304 = vmatpush1.bf16.msra.mxu0 0
    %305 = vmatprep.subr.bf16.mxu0 0
    %306 = vmatpush1.bf16.msra.mxu0 0
    %307 = vmatprep.subr.bf16.mxu0 0
    %308 = vmatpush1.bf16.msra.mxu0 0
    %309 = vmatprep.subr.bf16.mxu0 0
    %310 = vmatpush1.bf16.msra.mxu0 0
    %311 = vmatprep.subr.bf16.mxu0 0
    %312 = vmatpush1.bf16.msra.mxu0 0
    %313 = vmatprep.subr.bf16.mxu0 0
    %314 = vmatpush1.bf16.msra.mxu0 0
    %315 = vmatprep.subr.bf16.mxu0 0
    %316 = vmatpush1.bf16.msra.mxu0 0
    %317 = vmatprep.subr.bf16.mxu0 0
    %318 = vmatpush1.bf16.msra.mxu0 0
    %319 = vmatprep.subr.bf16.mxu0 0
    %320 = vmatpush1.bf16.msra.mxu0 0
    %321 = vmatprep.subr.bf16.mxu0 0
    %322 = vmatpush1.bf16.msra.mxu0 0
    %323 = vmatprep.subr.bf16.mxu0 0
    %324 = vmatpush1.bf16.msra.mxu0 0
    %325 = vmatprep.subr.bf16.mxu0 0
    %326 = vmatpush1.bf16.msra.mxu0 0
    %327 = vmatprep.mubr.bf16.mxu0 0
    %328 = vmatmul.mubr.bf16.gmra.mrb[0].mxu0 %v159
    %v329 = vpop.f32.mrb[0].mxu0
    %v330 = vadd.f32 %v88, %v329
    %v331 = vpop.f32.mrb[0].mxu0
    %v332 = vadd.f32 %v92, %v331
    %v333 = vpop.f32.mrb[0].mxu0
    %v334 = vadd.f32 %v88, %v333
    %v335 = vpop.f32.mrb[0].mxu0
    %v336 = vadd.f32 %v92, %v335
    %337 = vmatprep.mubr.bf16.mxu0 0
    %338 = vmatmul.mubr.bf16.gmra.mrb[0].mxu0 %v162
    %v339 = vpop.f32.mrb[0].mxu0
    %v340 = vadd.f32 %v88, %v339
    %v341 = vpop.f32.mrb[0].mxu0
    %v342 = vadd.f32 %v92, %v341
    %v343 = vpop.f32.mrb[0].mxu0
    %v344 = vadd.f32 %v88, %v343
    %v345 = vpop.f32.mrb[0].mxu0
    %v346 = vadd.f32 %v92, %v345
    %347 = vmatprep.mubr.bf16.mxu0 0
    %348 = vmatmul.mubr.bf16.gmra.mrb[0].mxu0 %v165
    %v349 = vpop.f32.mrb[0].mxu0
    %v350 = vadd.f32 %v88, %v349
    %v351 = vpop.f32.mrb[0].mxu0
    %v352 = vadd.f32 %v92, %v351
    %v353 = vpop.f32.mrb[0].mxu0
    %v354 = vadd.f32 %v88, %v353
    %v355 = vpop.f32.mrb[0].mxu0
    %v356 = vadd.f32 %v92, %v355
    %357 = vmatprep.mubr.bf16.mxu0 0
    %358 = vmatmul.mubr.bf16.gmra.mrb[0].mxu0 %v168
    %v359 = vpop.f32.mrb[0].mxu0
    %v360 = vadd.f32 %v88, %v359
    %v361 = vpop.f32.mrb[0].mxu0
    %v362 = vadd.f32 %v92, %v361
    %v363 = vpop.f32.mrb[0].mxu0
    %v364 = vadd.f32 %v88, %v363
    %v365 = vpop.f32.mrb[0].mxu0
    %v366 = vadd.f32 %v92, %v365
    %367 = vmatprep.mubr.bf16.mxu0 0
    %368 = vmatmul.mubr.bf16.gmra.mrb[0].mxu0 %v171
    %v369 = vpop.f32.mrb[0].mxu0
    %v370 = vadd.f32 %v88, %v369
    %v371 = vpop.f32.mrb[0].mxu0
    %v372 = vadd.f32 %v92, %v371
    %v373 = vpop.f32.mrb[0].mxu0
    %v374 = vadd.f32 %v88, %v373
    %v375 = vpop.f32.mrb[0].mxu0
    %v376 = vadd.f32 %v92, %v375
    %377 = vmatprep.mubr.bf16.mxu0 0
    %378 = vmatmul.mubr.bf16.gmra.mrb[0].mxu0 %v174
    %v379 = vpop.f32.mrb[0].mxu0
    %v380 = vadd.f32 %v88, %v379
    %v381 = vpop.f32.mrb[0].mxu0
    %v382 = vadd.f32 %v92, %v381
    %v383 = vpop.f32.mrb[0].mxu0
    %v384 = vadd.f32 %v88, %v383
    %v385 = vpop.f32.mrb[0].mxu0
    %v386 = vadd.f32 %v92, %v385
    %387 = vmatprep.mubr.bf16.mxu0 0
    %388 = vmatmul.mubr.bf16.gmra.mrb[0].mxu0 %v177
    %v389 = vpop.f32.mrb[0].mxu0
    %v390 = vadd.f32 %v88, %v389
    %v391 = vpop.f32.mrb[0].mxu0
    %v392 = vadd.f32 %v92, %v391
    %v393 = vpop.f32.mrb[0].mxu0
    %v394 = vadd.f32 %v88, %v393
    %v395 = vpop.f32.mrb[0].mxu0
    %v396 = vadd.f32 %v92, %v395
    %397 = vmatprep.mubr.bf16.mxu0 0
    %398 = vmatmul.mubr.bf16.gmra.mrb[0].mxu0 %v180
    %v399 = vpop.f32.mrb[0].mxu0
    %v400 = vadd.f32 %v88, %v399
    %v401 = vpop.f32.mrb[0].mxu0
    %v402 = vadd.f32 %v92, %v401
    %v403 = vpop.f32.mrb[0].mxu0
    %v404 = vadd.f32 %v88, %v403
    %v405 = vpop.f32.mrb[0].mxu0
    %v406 = vadd.f32 %v92, %v405
    %407 = vdwg.mxu0
    %v408 = vpack.c.bf16 %v221, %v217
    %v409 = vpack.c.bf16 %v223, %v219
    %v410 = vpack.c.bf16 %v334, %v330
    %v411 = vpack.c.bf16 %v336, %v332
    %v412 = vpack.c.bf16 %v231, %v227
    %v413 = vpack.c.bf16 %v233, %v229
    %v414 = vpack.c.bf16 %v344, %v340
    %v415 = vpack.c.bf16 %v346, %v342
    %v416 = vpack.c.bf16 %v241, %v237
    %v417 = vpack.c.bf16 %v243, %v239
    %v418 = vpack.c.bf16 %v354, %v350
    %v419 = vpack.c.bf16 %v356, %v352
    %v420 = vpack.c.bf16 %v251, %v247
    %v421 = vpack.c.bf16 %v253, %v249
    %v422 = vpack.c.bf16 %v364, %v360
    %v423 = vpack.c.bf16 %v366, %v362
    %v424 = vpack.c.bf16 %v261, %v257
    %v425 = vpack.c.bf16 %v263, %v259
    %v426 = vpack.c.bf16 %v374, %v370
    %v427 = vpack.c.bf16 %v376, %v372
    %v428 = vpack.c.bf16 %v271, %v267
    %v429 = vpack.c.bf16 %v273, %v269
    %v430 = vpack.c.bf16 %v384, %v380
    %v431 = vpack.c.bf16 %v386, %v382
    %v432 = vpack.c.bf16 %v281, %v277
    %v433 = vpack.c.bf16 %v283, %v279
    %v434 = vpack.c.bf16 %v394, %v390
    %v435 = vpack.c.bf16 %v396, %v392
    %v436 = vpack.c.bf16 %v291, %v287
    %v437 = vpack.c.bf16 %v293, %v289
    %v438 = vpack.c.bf16 %v404, %v400
    %v439 = vpack.c.bf16 %v406, %v402
    %440 = vst [vmem:[#allocation2] sm:$0xff] %v408
    %441 = vst [vmem:[#allocation2 + $0x8] sm:$0xff] %v409
    %442 = vst [vmem:[#allocation2 + $0x10] sm:$0xff] %v410
    %443 = vst [vmem:[#allocation2 + $0x18] sm:$0xff] %v411
    %444 = vst [vmem:[#allocation2 + $0x20] sm:$0xff] %v412
    %445 = vst [vmem:[#allocation2 + $0x28] sm:$0xff] %v413
    %446 = vst [vmem:[#allocation2 + $0x30] sm:$0xff] %v414
    %447 = vst [vmem:[#allocation2 + $0x38] sm:$0xff] %v415
    %448 = vst [vmem:[#allocation2 + $0x40] sm:$0xff] %v416
    %449 = vst [vmem:[#allocation2 + $0x48] sm:$0xff] %v417
    %450 = vst [vmem:[#allocation2 + $0x50] sm:$0xff] %v418
    %451 = vst [vmem:[#allocation2 + $0x58] sm:$0xff] %v419
    %452 = vst [vmem:[#allocation2 + $0x60] sm:$0xff] %v420
    %453 = vst [vmem:[#allocation2 + $0x68] sm:$0xff] %v421
    %454 = vst [vmem:[#allocation2 + $0x70] sm:$0xff] %v422
    %455 = vst [vmem:[#allocation2 + $0x78] sm:$0xff] %v423
    %456 = vst [vmem:[#allocation2 + $0x80] sm:$0xff] %v424
    %457 = vst [vmem:[#allocation2 + $0x88] sm:$0xff] %v425
    %458 = vst [vmem:[#allocation2 + $0x90] sm:$0xff] %v426
    %459 = vst [vmem:[#allocation2 + $0x98] sm:$0xff] %v427
    %460 = vst [vmem:[#allocation2 + $0xa0] sm:$0xff] %v428
    %461 = vst [vmem:[#allocation2 + $0xa8] sm:$0xff] %v429
    %462 = vst [vmem:[#allocation2 + $0xb0] sm:$0xff] %v430
    %463 = vst [vmem:[#allocation2 + $0xb8] sm:$0xff] %v431
    %464 = vst [vmem:[#allocation2 + $0xc0] sm:$0xff] %v432
    %465 = vst [vmem:[#allocation2 + $0xc8] sm:$0xff] %v433
    %466 = vst [vmem:[#allocation2 + $0xd0] sm:$0xff] %v434
    %467 = vst [vmem:[#allocation2 + $0xd8] sm:$0xff] %v435
    %468 = vst [vmem:[#allocation2 + $0xe0] sm:$0xff] %v436
    %469 = vst [vmem:[#allocation2 + $0xe8] sm:$0xff] %v437
    %470 = vst [vmem:[#allocation2 + $0xf0] sm:$0xff] %v438
    %471 = vst [vmem:[#allocation2 + $0xf8] sm:$0xff] %v439
    %v472 = vld [vmem:[#allocation3] sm:$0xff]
    %v473 = vld [vmem:[#allocation3 + $0x8] sm:$0xff]
    %v474 = vld [vmem:[#allocation4] sm:$0xff]
    %v475 = vld [vmem:[#allocation4 + $0x8] sm:$0xff]
    %s476 = smul.u32 0, 4
    %s477 = smul.addr %s476, 8
    %s478 = scalar_lea.vmem [#allocation2], %s477
    %v479 = vld [vmem:[%s478] sm:$0xff]
    %v480 = vld [vmem:[%s478 + $0x8] sm:$0xff]
    %v481 = vld [vmem:[%s478 + $0x10] sm:$0xff]
    %v482 = vld [vmem:[%s478 + $0x18] sm:$0xff]
    %v483 = vunpack.c.l.bf16 %v479
    %v484 = vunpack.c.l.bf16 %v480
    %v485 = vunpack.c.l.bf16 %v481
    %v486 = vunpack.c.l.bf16 %v482
    %v487 = vunpack.c.h.bf16 %v479
    %v488 = vunpack.c.h.bf16 %v480
    %v489 = vunpack.c.h.bf16 %v481
    %v490 = vunpack.c.h.bf16 %v482
    %v491 = vpack.c.bf16 %v473, %v472
    %v492 = vld [vmem:[#allocation5] sm:$0xff]
    %v493 = vld [vmem:[#allocation5 + $0x8] sm:$0xff]
    %v494 = vld [vmem:[#allocation5 + $0x10] sm:$0xff]
    %v495 = vld [vmem:[#allocation5 + $0x18] sm:$0xff]
    %v496 = vld [vmem:[#allocation5 + $0x20] sm:$0xff]
    %v497 = vld [vmem:[#allocation5 + $0x28] sm:$0xff]
    %v498 = vld [vmem:[#allocation5 + $0x30] sm:$0xff]
    %v499 = vld [vmem:[#allocation5 + $0x38] sm:$0xff]
    %v500 = vld [vmem:[#allocation5 + $0x40] sm:$0xff]
    %v501 = vld [vmem:[#allocation5 + $0x48] sm:$0xff]
    %v502 = vld [vmem:[#allocation5 + $0x50] sm:$0xff]
    %v503 = vld [vmem:[#allocation5 + $0x58] sm:$0xff]
    %v504 = vld [vmem:[#allocation5 + $0x60] sm:$0xff]
    %v505 = vld [vmem:[#allocation5 + $0x68] sm:$0xff]
    %v506 = vld [vmem:[#allocation5 + $0x70] sm:$0xff]
    %v507 = vld [vmem:[#allocation5 + $0x78] sm:$0xff]
    %v508 = vld [vmem:[#allocation5 + $0x80] sm:$0xff]
    %v509 = vld [vmem:[#allocation5 + $0x88] sm:$0xff]
    %v510 = vld [vmem:[#allocation5 + $0x90] sm:$0xff]
    %v511 = vld [vmem:[#allocation5 + $0x98] sm:$0xff]
    %v512 = vld [vmem:[#allocation5 + $0xa0] sm:$0xff]
    %v513 = vld [vmem:[#allocation5 + $0xa8] sm:$0xff]
    %v514 = vld [vmem:[#allocation5 + $0xb0] sm:$0xff]
    %v515 = vld [vmem:[#allocation5 + $0xb8] sm:$0xff]
    %v516 = vld [vmem:[#allocation5 + $0xc0] sm:$0xff]
    %v517 = vld [vmem:[#allocation5 + $0xc8] sm:$0xff]
    %v518 = vld [vmem:[#allocation5 + $0xd0] sm:$0xff]
    %v519 = vld [vmem:[#allocation5 + $0xd8] sm:$0xff]
    %v520 = vld [vmem:[#allocation5 + $0xe0] sm:$0xff]
    %v521 = vld [vmem:[#allocation5 + $0xe8] sm:$0xff]
    %v522 = vld [vmem:[#allocation5 + $0xf0] sm:$0xff]
    %v523 = vld [vmem:[#allocation5 + $0xf8] sm:$0xff]
    %v556 = vunpack.c.l.b16 %v492
    %v557 = vunpack.c.h.b16 %v492
    %v558 = vunpack.c.l.b16 %v493
    %v559 = vunpack.c.h.b16 %v493
    %v560 = vunpack.c.l.b16 %v494
    %v561 = vunpack.c.h.b16 %v494
    %v562 = vunpack.c.l.b16 %v495
    %v563 = vunpack.c.h.b16 %v495
    %v564 = vunpack.c.l.b16 %v496
    %v565 = vunpack.c.h.b16 %v496
    %v566 = vunpack.c.l.b16 %v497
    %v567 = vunpack.c.h.b16 %v497
    %v568 = vunpack.c.l.b16 %v498
    %v569 = vunpack.c.h.b16 %v498
    %v570 = vunpack.c.l.b16 %v499
    %v571 = vunpack.c.h.b16 %v499
    %v572 = vunpack.c.l.b16 %v500
    %v573 = vunpack.c.h.b16 %v500
    %v574 = vunpack.c.l.b16 %v501
    %v575 = vunpack.c.h.b16 %v501
    %v576 = vunpack.c.l.b16 %v502
    %v577 = vunpack.c.h.b16 %v502
    %v578 = vunpack.c.l.b16 %v503
    %v579 = vunpack.c.h.b16 %v503
    %v580 = vunpack.c.l.b16 %v504
    %v581 = vunpack.c.h.b16 %v504
    %v582 = vunpack.c.l.b16 %v505
    %v583 = vunpack.c.h.b16 %v505
    %v584 = vunpack.c.l.b16 %v506
    %v585 = vunpack.c.h.b16 %v506
    %v586 = vunpack.c.l.b16 %v507
    %v587 = vunpack.c.h.b16 %v507
    %v588 = vunpack.c.l.b16 %v508
    %v589 = vunpack.c.h.b16 %v508
    %v590 = vunpack.c.l.b16 %v509
    %v591 = vunpack.c.h.b16 %v509
    %v592 = vunpack.c.l.b16 %v510
    %v593 = vunpack.c.h.b16 %v510
    %v594 = vunpack.c.l.b16 %v511
    %v595 = vunpack.c.h.b16 %v511
    %v596 = vunpack.c.l.b16 %v512
    %v597 = vunpack.c.h.b16 %v512
    %v598 = vunpack.c.l.b16 %v513
    %v599 = vunpack.c.h.b16 %v513
    %v600 = vunpack.c.l.b16 %v514
    %v601 = vunpack.c.h.b16 %v514
    %v602 = vunpack.c.l.b16 %v515
    %v603 = vunpack.c.h.b16 %v515
    %v604 = vunpack.c.l.b16 %v516
    %v605 = vunpack.c.h.b16 %v516
    %v606 = vunpack.c.l.b16 %v517
    %v607 = vunpack.c.h.b16 %v517
    %v608 = vunpack.c.l.b16 %v518
    %v609 = vunpack.c.h.b16 %v518
    %v610 = vunpack.c.l.b16 %v519
    %v611 = vunpack.c.h.b16 %v519
    %v612 = vunpack.c.l.b16 %v520
    %v613 = vunpack.c.h.b16 %v520
    %v614 = vunpack.c.l.b16 %v521
    %v615 = vunpack.c.h.b16 %v521
    %v616 = vunpack.c.l.b16 %v522
    %v617 = vunpack.c.h.b16 %v522
    %v618 = vunpack.c.l.b16 %v523
    %v619 = vunpack.c.h.b16 %v523
    %v620 = vpack.c.b16 %v560, %v556
    %v621 = vpack.c.b16 %v561, %v557
    %v622 = vpack.c.b16 %v562, %v558
    %v623 = vpack.c.b16 %v563, %v559
    %v624 = vpack.c.b16 %v568, %v564
    %v625 = vpack.c.b16 %v569, %v565
    %v626 = vpack.c.b16 %v570, %v566
    %v627 = vpack.c.b16 %v571, %v567
    %v628 = vpack.c.b16 %v576, %v572
    %v629 = vpack.c.b16 %v577, %v573
    %v630 = vpack.c.b16 %v578, %v574
    %v631 = vpack.c.b16 %v579, %v575
    %v632 = vpack.c.b16 %v584, %v580
    %v633 = vpack.c.b16 %v585, %v581
    %v634 = vpack.c.b16 %v586, %v582
    %v635 = vpack.c.b16 %v587, %v583
    %v636 = vpack.c.b16 %v592, %v588
    %v637 = vpack.c.b16 %v593, %v589
    %v638 = vpack.c.b16 %v594, %v590
    %v639 = vpack.c.b16 %v595, %v591
    %v640 = vpack.c.b16 %v600, %v596
    %v641 = vpack.c.b16 %v601, %v597
    %v642 = vpack.c.b16 %v602, %v598
    %v643 = vpack.c.b16 %v603, %v599
    %v644 = vpack.c.b16 %v608, %v604
    %v645 = vpack.c.b16 %v609, %v605
    %v646 = vpack.c.b16 %v610, %v606
    %v647 = vpack.c.b16 %v611, %v607
    %v648 = vpack.c.b16 %v616, %v612
    %v649 = vpack.c.b16 %v617, %v613
    %v650 = vpack.c.b16 %v618, %v614
    %v651 = vpack.c.b16 %v619, %v615
    %684 = vmatprep.subr.bf16.mxu0 %v621
    %685 = vmatpush1.bf16.msra.mxu0 %v620
    %686 = vmatprep.subr.bf16.mxu0 %v625
    %687 = vmatpush1.bf16.msra.mxu0 %v624
    %688 = vmatprep.subr.bf16.mxu0 %v629
    %689 = vmatpush1.bf16.msra.mxu0 %v628
    %690 = vmatprep.subr.bf16.mxu0 %v633
    %691 = vmatpush1.bf16.msra.mxu0 %v632
    %692 = vmatprep.subr.bf16.mxu0 %v637
    %693 = vmatpush1.bf16.msra.mxu0 %v636
    %694 = vmatprep.subr.bf16.mxu0 %v641
    %695 = vmatpush1.bf16.msra.mxu0 %v640
    %696 = vmatprep.subr.bf16.mxu0 %v645
    %697 = vmatpush1.bf16.msra.mxu0 %v644
    %698 = vmatprep.subr.bf16.mxu0 %v649
    %699 = vmatpush1.bf16.msra.mxu0 %v648
    %700 = vmatprep.subr.bf16.mxu0 0
    %701 = vmatpush1.bf16.msra.mxu0 0
    %702 = vmatprep.subr.bf16.mxu0 0
    %703 = vmatpush1.bf16.msra.mxu0 0
    %704 = vmatprep.subr.bf16.mxu0 0
    %705 = vmatpush1.bf16.msra.mxu0 0
    %706 = vmatprep.subr.bf16.mxu0 0
    %707 = vmatpush1.bf16.msra.mxu0 0
    %708 = vmatprep.subr.bf16.mxu0 0
    %709 = vmatpush1.bf16.msra.mxu0 0
    %710 = vmatprep.subr.bf16.mxu0 0
    %711 = vmatpush1.bf16.msra.mxu0 0
    %712 = vmatprep.subr.bf16.mxu0 0
    %713 = vmatpush1.bf16.msra.mxu0 0
    %714 = vmatprep.subr.bf16.mxu0 0
    %715 = vmatpush1.bf16.msra.mxu0 0
    %716 = vmatprep.mubr.bf16.mxu0 0
    %717 = vmatmul.mubr.bf16.gmra.mrb[0].mxu0 %v491
    %v718 = vpop.f32.mrb[0].mxu0
    %v719 = vadd.f32 0.0, %v718
    %v720 = vpop.f32.mrb[0].mxu0
    %v721 = vadd.f32 0.0, %v720
    %v722 = vpop.f32.mrb[0].mxu0
    %v723 = vadd.f32 0.0, %v722
    %v724 = vpop.f32.mrb[0].mxu0
    %v725 = vadd.f32 0.0, %v724
    %726 = vdwg.mxu0
    %727 = vmatprep.subr.bf16.mxu0 %v623
    %728 = vmatpush1.bf16.msra.mxu0 %v622
    %729 = vmatprep.subr.bf16.mxu0 %v627
    %730 = vmatpush1.bf16.msra.mxu0 %v626
    %731 = vmatprep.subr.bf16.mxu0 %v631
    %732 = vmatpush1.bf16.msra.mxu0 %v630
    %733 = vmatprep.subr.bf16.mxu0 %v635
    %734 = vmatpush1.bf16.msra.mxu0 %v634
    %735 = vmatprep.subr.bf16.mxu0 %v639
    %736 = vmatpush1.bf16.msra.mxu0 %v638
    %737 = vmatprep.subr.bf16.mxu0 %v643
    %738 = vmatpush1.bf16.msra.mxu0 %v642
    %739 = vmatprep.subr.bf16.mxu0 %v647
    %740 = vmatpush1.bf16.msra.mxu0 %v646
    %741 = vmatprep.subr.bf16.mxu0 %v651
    %742 = vmatpush1.bf16.msra.mxu0 %v650
    %743 = vmatprep.subr.bf16.mxu0 0
    %744 = vmatpush1.bf16.msra.mxu0 0
    %745 = vmatprep.subr.bf16.mxu0 0
    %746 = vmatpush1.bf16.msra.mxu0 0
    %747 = vmatprep.subr.bf16.mxu0 0
    %748 = vmatpush1.bf16.msra.mxu0 0
    %749 = vmatprep.subr.bf16.mxu0 0
    %750 = vmatpush1.bf16.msra.mxu0 0
    %751 = vmatprep.subr.bf16.mxu0 0
    %752 = vmatpush1.bf16.msra.mxu0 0
    %753 = vmatprep.subr.bf16.mxu0 0
    %754 = vmatpush1.bf16.msra.mxu0 0
    %755 = vmatprep.subr.bf16.mxu0 0
    %756 = vmatpush1.bf16.msra.mxu0 0
    %757 = vmatprep.subr.bf16.mxu0 0
    %758 = vmatpush1.bf16.msra.mxu0 0
    %759 = vmatprep.mubr.bf16.mxu0 0
    %760 = vmatmul.mubr.bf16.gmra.mrb[0].mxu0 %v491
    %v761 = vpop.f32.mrb[0].mxu0
    %v762 = vadd.f32 0.0, %v761
    %v763 = vpop.f32.mrb[0].mxu0
    %v764 = vadd.f32 0.0, %v763
    %v765 = vpop.f32.mrb[0].mxu0
    %v766 = vadd.f32 0.0, %v765
    %v767 = vpop.f32.mrb[0].mxu0
    %v768 = vadd.f32 0.0, %v767
    %769 = vdwg.mxu0
    %v770 = vadd.f32 %v483, %v719
    %v771 = vadd.f32 %v484, %v721
    %v772 = vadd.f32 %v485, %v762
    %v773 = vadd.f32 %v486, %v764
    %v774 = vadd.f32 %v487, %v723
    %v775 = vadd.f32 %v488, %v725
    %v776 = vadd.f32 %v489, %v766
    %v777 = vadd.f32 %v490, %v768
    %v778 = vxor.u32 %v770, 2147483648
    %v779 = vxor.u32 %v774, 2147483648
    %v780 = vmul.f32 %v778, 1.442695
    %v781 = vpow.pop %v780
    %v782 = vmul.f32 %v779, 1.442695
    %v783 = vpow.pop %v782
    %v784 = vadd.f32 %v781, 1.0
    %v785 = vadd.f32 %v783, 1.0
    %v786 = vrcp.pop %v784
    %v787 = vmul.f32 1.0, %v786
    %v788 = vrcp.pop %v785
    %v789 = vmul.f32 1.0, %v788
    %v790 = vxor.u32 %v771, 2147483648
    %v791 = vxor.u32 %v775, 2147483648
    %v792 = vmul.f32 %v790, 1.442695
    %v793 = vpow.pop %v792
    %v794 = vmul.f32 %v791, 1.442695
    %v795 = vpow.pop %v794
    %v796 = vadd.f32 %v793, 1.0
    %v797 = vadd.f32 %v795, 1.0
    %v798 = vrcp.pop %v796
    %v799 = vmul.f32 1.0, %v798
    %v800 = vrcp.pop %v797
    %v801 = vmul.f32 1.0, %v800
    %v802 = vtanh.pop %v772
    %v803 = vtanh.pop %v776
    %v804 = vxor.u32 %v773, 2147483648
    %v805 = vxor.u32 %v777, 2147483648
    %v806 = vmul.f32 %v804, 1.442695
    %v807 = vpow.pop %v806
    %v808 = vmul.f32 %v805, 1.442695
    %v809 = vpow.pop %v808
    %v810 = vadd.f32 %v807, 1.0
    %v811 = vadd.f32 %v809, 1.0
    %v812 = vrcp.pop %v810
    %v813 = vmul.f32 1.0, %v812
    %v814 = vrcp.pop %v811
    %v815 = vmul.f32 1.0, %v814
    %v816 = vmul.f32 %v799, %v474
    %v817 = vmul.f32 %v801, %v475
    %v818 = vmul.f32 %v787, %v802
    %v819 = vmul.f32 %v789, %v803
    %v820 = vadd.f32 %v816, %v818
    %v821 = vadd.f32 %v817, %v819
    %v822 = vtanh.pop %v820
    %v823 = vtanh.pop %v821
    %v824 = vmul.f32 %v813, %v822
    %v825 = vmul.f32 %v815, %v823
    %v826 = vpack.c.bf16 %v825, %v824
    %v828 = vunpack.c.l.b16 %v826
    %v829 = vunpack.c.h.b16 %v826
    %v830 = vpack.c.b16 %v828, %v828
    %v831 = vpack.c.b16 %v829, %v829
    %834 = vst [vmem:[#allocation8] sm:$0xf] %v830
    %835 = vst [vmem:[#allocation8 + $0x4] sm:$0xf] %v831
    %s836 = smul.u32 1, 4
    %s837 = smul.addr %s836, 8
    %s838 = scalar_lea.vmem [#allocation2], %s837
    %v839 = vld [vmem:[%s838] sm:$0xff]
    %v840 = vld [vmem:[%s838 + $0x8] sm:$0xff]
    %v841 = vld [vmem:[%s838 + $0x10] sm:$0xff]
    %v842 = vld [vmem:[%s838 + $0x18] sm:$0xff]
    %v843 = vunpack.c.l.bf16 %v839
    %v844 = vunpack.c.l.bf16 %v840
    %v845 = vunpack.c.l.bf16 %v841
    %v846 = vunpack.c.l.bf16 %v842
    %v847 = vunpack.c.h.bf16 %v839
    %v848 = vunpack.c.h.bf16 %v840
    %v849 = vunpack.c.h.bf16 %v841
    %v850 = vunpack.c.h.bf16 %v842
    %v851 = vld [vmem:[#allocation5] sm:$0xff]
    %v852 = vld [vmem:[#allocation5 + $0x8] sm:$0xff]
    %v853 = vld [vmem:[#allocation5 + $0x10] sm:$0xff]
    %v854 = vld [vmem:[#allocation5 + $0x18] sm:$0xff]
    %v855 = vld [vmem:[#allocation5 + $0x20] sm:$0xff]
    %v856 = vld [vmem:[#allocation5 + $0x28] sm:$0xff]
    %v857 = vld [vmem:[#allocation5 + $0x30] sm:$0xff]
    %v858 = vld [vmem:[#allocation5 + $0x38] sm:$0xff]
    %v859 = vld [vmem:[#allocation5 + $0x40] sm:$0xff]
    %v860 = vld [vmem:[#allocation5 + $0x48] sm:$0xff]
    %v861 = vld [vmem:[#allocation5 + $0x50] sm:$0xff]
    %v862 = vld [vmem:[#allocation5 + $0x58] sm:$0xff]
    %v863 = vld [vmem:[#allocation5 + $0x60] sm:$0xff]
    %v864 = vld [vmem:[#allocation5 + $0x68] sm:$0xff]
    %v865 = vld [vmem:[#allocation5 + $0x70] sm:$0xff]
    %v866 = vld [vmem:[#allocation5 + $0x78] sm:$0xff]
    %v867 = vld [vmem:[#allocation5 + $0x80] sm:$0xff]
    %v868 = vld [vmem:[#allocation5 + $0x88] sm:$0xff]
    %v869 = vld [vmem:[#allocation5 + $0x90] sm:$0xff]
    %v870 = vld [vmem:[#allocation5 + $0x98] sm:$0xff]
    %v871 = vld [vmem:[#allocation5 + $0xa0] sm:$0xff]
    %v872 = vld [vmem:[#allocation5 + $0xa8] sm:$0xff]
    %v873 = vld [vmem:[#allocation5 + $0xb0] sm:$0xff]
    %v874 = vld [vmem:[#allocation5 + $0xb8] sm:$0xff]
    %v875 = vld [vmem:[#allocation5 + $0xc0] sm:$0xff]
    %v876 = vld [vmem:[#allocation5 + $0xc8] sm:$0xff]
    %v877 = vld [vmem:[#allocation5 + $0xd0] sm:$0xff]
    %v878 = vld [vmem:[#allocation5 + $0xd8] sm:$0xff]
    %v879 = vld [vmem:[#allocation5 + $0xe0] sm:$0xff]
    %v880 = vld [vmem:[#allocation5 + $0xe8] sm:$0xff]
    %v881 = vld [vmem:[#allocation5 + $0xf0] sm:$0xff]
    %v882 = vld [vmem:[#allocation5 + $0xf8] sm:$0xff]
    %v915 = vunpack.c.l.b16 %v851
    %v916 = vunpack.c.h.b16 %v851
    %v917 = vunpack.c.l.b16 %v852
    %v918 = vunpack.c.h.b16 %v852
    %v919 = vunpack.c.l.b16 %v853
    %v920 = vunpack.c.h.b16 %v853
    %v921 = vunpack.c.l.b16 %v854
    %v922 = vunpack.c.h.b16 %v854
    %v923 = vunpack.c.l.b16 %v855
    %v924 = vunpack.c.h.b16 %v855
    %v925 = vunpack.c.l.b16 %v856
    %v926 = vunpack.c.h.b16 %v856
    %v927 = vunpack.c.l.b16 %v857
    %v928 = vunpack.c.h.b16 %v857
    %v929 = vunpack.c.l.b16 %v858
    %v930 = vunpack.c.h.b16 %v858
    %v931 = vunpack.c.l.b16 %v859
    %v932 = vunpack.c.h.b16 %v859
    %v933 = vunpack.c.l.b16 %v860
    %v934 = vunpack.c.h.b16 %v860
    %v935 = vunpack.c.l.b16 %v861
    %v936 = vunpack.c.h.b16 %v861
    %v937 = vunpack.c.l.b16 %v862
    %v938 = vunpack.c.h.b16 %v862
    %v939 = vunpack.c.l.b16 %v863
    %v940 = vunpack.c.h.b16 %v863
    %v941 = vunpack.c.l.b16 %v864
    %v942 = vunpack.c.h.b16 %v864
    %v943 = vunpack.c.l.b16 %v865
    %v944 = vunpack.c.h.b16 %v865
    %v945 = vunpack.c.l.b16 %v866
    %v946 = vunpack.c.h.b16 %v866
    %v947 = vunpack.c.l.b16 %v867
    %v948 = vunpack.c.h.b16 %v867
    %v949 = vunpack.c.l.b16 %v868
    %v950 = vunpack.c.h.b16 %v868
    %v951 = vunpack.c.l.b16 %v869
    %v952 = vunpack.c.h.b16 %v869
    %v953 = vunpack.c.l.b16 %v870
    %v954 = vunpack.c.h.b16 %v870
    %v955 = vunpack.c.l.b16 %v871
    %v956 = vunpack.c.h.b16 %v871
    %v957 = vunpack.c.l.b16 %v872
    %v958 = vunpack.c.h.b16 %v872
    %v959 = vunpack.c.l.b16 %v873
    %v960 = vunpack.c.h.b16 %v873
    %v961 = vunpack.c.l.b16 %v874
    %v962 = vunpack.c.h.b16 %v874
    %v963 = vunpack.c.l.b16 %v875
    %v964 = vunpack.c.h.b16 %v875
    %v965 = vunpack.c.l.b16 %v876
    %v966 = vunpack.c.h.b16 %v876
    %v967 = vunpack.c.l.b16 %v877
    %v968 = vunpack.c.h.b16 %v877
    %v969 = vunpack.c.l.b16 %v878
    %v970 = vunpack.c.h.b16 %v878
    %v971 = vunpack.c.l.b16 %v879
    %v972 = vunpack.c.h.b16 %v879
    %v973 = vunpack.c.l.b16 %v880
    %v974 = vunpack.c.h.b16 %v880
    %v975 = vunpack.c.l.b16 %v881
    %v976 = vunpack.c.h.b16 %v881
    %v977 = vunpack.c.l.b16 %v882
    %v978 = vunpack.c.h.b16 %v882
    %v979 = vpack.c.b16 %v919, %v915
    %v980 = vpack.c.b16 %v920, %v916
    %v981 = vpack.c.b16 %v921, %v917
    %v982 = vpack.c.b16 %v922, %v918
    %v983 = vpack.c.b16 %v927, %v923
    %v984 = vpack.c.b16 %v928, %v924
    %v985 = vpack.c.b16 %v929, %v925
    %v986 = vpack.c.b16 %v930, %v926
    %v987 = vpack.c.b16 %v935, %v931
    %v988 = vpack.c.b16 %v936, %v932
    %v989 = vpack.c.b16 %v937, %v933
    %v990 = vpack.c.b16 %v938, %v934
    %v991 = vpack.c.b16 %v943, %v939
    %v992 = vpack.c.b16 %v944, %v940
    %v993 = vpack.c.b16 %v945, %v941
    %v994 = vpack.c.b16 %v946, %v942
    %v995 = vpack.c.b16 %v951, %v947
    %v996 = vpack.c.b16 %v952, %v948
    %v997 = vpack.c.b16 %v953, %v949
    %v998 = vpack.c.b16 %v954, %v950
    %v999 = vpack.c.b16 %v959, %v955
    %v1000 = vpack.c.b16 %v960, %v956
    %v1001 = vpack.c.b16 %v961, %v957
    %v1002 = vpack.c.b16 %v962, %v958
    %v1003 = vpack.c.b16 %v967, %v963
    %v1004 = vpack.c.b16 %v968, %v964
    %v1005 = vpack.c.b16 %v969, %v965
    %v1006 = vpack.c.b16 %v970, %v966
    %v1007 = vpack.c.b16 %v975, %v971
    %v1008 = vpack.c.b16 %v976, %v972
    %v1009 = vpack.c.b16 %v977, %v973
    %v1010 = vpack.c.b16 %v978, %v974
    %1043 = vmatprep.subr.bf16.mxu0 %v980
    %1044 = vmatpush1.bf16.msra.mxu0 %v979
    %1045 = vmatprep.subr.bf16.mxu0 %v984
    %1046 = vmatpush1.bf16.msra.mxu0 %v983
    %1047 = vmatprep.subr.bf16.mxu0 %v988
    %1048 = vmatpush1.bf16.msra.mxu0 %v987
    %1049 = vmatprep.subr.bf16.mxu0 %v992
    %1050 = vmatpush1.bf16.msra.mxu0 %v991
    %1051 = vmatprep.subr.bf16.mxu0 %v996
    %1052 = vmatpush1.bf16.msra.mxu0 %v995
    %1053 = vmatprep.subr.bf16.mxu0 %v1000
    %1054 = vmatpush1.bf16.msra.mxu0 %v999
    %1055 = vmatprep.subr.bf16.mxu0 %v1004
    %1056 = vmatpush1.bf16.msra.mxu0 %v1003
    %1057 = vmatprep.subr.bf16.mxu0 %v1008
    %1058 = vmatpush1.bf16.msra.mxu0 %v1007
    %1059 = vmatprep.subr.bf16.mxu0 0
    %1060 = vmatpush1.bf16.msra.mxu0 0
    %1061 = vmatprep.subr.bf16.mxu0 0
    %1062 = vmatpush1.bf16.msra.mxu0 0
    %1063 = vmatprep.subr.bf16.mxu0 0
    %1064 = vmatpush1.bf16.msra.mxu0 0
    %1065 = vmatprep.subr.bf16.mxu0 0
    %1066 = vmatpush1.bf16.msra.mxu0 0
    %1067 = vmatprep.subr.bf16.mxu0 0
    %1068 = vmatpush1.bf16.msra.mxu0 0
    %1069 = vmatprep.subr.bf16.mxu0 0
    %1070 = vmatpush1.bf16.msra.mxu0 0
    %1071 = vmatprep.subr.bf16.mxu0 0
    %1072 = vmatpush1.bf16.msra.mxu0 0
    %1073 = vmatprep.subr.bf16.mxu0 0
    %1074 = vmatpush1.bf16.msra.mxu0 0
    %1075 = vmatprep.mubr.bf16.mxu0 0
    %1076 = vmatmul.mubr.bf16.gmra.mrb[0].mxu0 %v826
    %v1077 = vpop.f32.mrb[0].mxu0
    %v1078 = vadd.f32 0.0, %v1077
    %v1079 = vpop.f32.mrb[0].mxu0
    %v1080 = vadd.f32 0.0, %v1079
    %v1081 = vpop.f32.mrb[0].mxu0
    %v1082 = vadd.f32 0.0, %v1081
    %v1083 = vpop.f32.mrb[0].mxu0
    %v1084 = vadd.f32 0.0, %v1083
    %1085 = vdwg.mxu0
    %1086 = vmatprep.subr.bf16.mxu0 %v982
    %1087 = vmatpush1.bf16.msra.mxu0 %v981
    %1088 = vmatprep.subr.bf16.mxu0 %v986
    %1089 = vmatpush1.bf16.msra.mxu0 %v985
    %1090 = vmatprep.subr.bf16.mxu0 %v990
    %1091 = vmatpush1.bf16.msra.mxu0 %v989
    %1092 = vmatprep.subr.bf16.mxu0 %v994
    %1093 = vmatpush1.bf16.msra.mxu0 %v993
    %1094 = vmatprep.subr.bf16.mxu0 %v998
    %1095 = vmatpush1.bf16.msra.mxu0 %v997
    %1096 = vmatprep.subr.bf16.mxu0 %v1002
    %1097 = vmatpush1.bf16.msra.mxu0 %v1001
    %1098 = vmatprep.subr.bf16.mxu0 %v1006
    %1099 = vmatpush1.bf16.msra.mxu0 %v1005
    %1100 = vmatprep.subr.bf16.mxu0 %v1010
    %1101 = vmatpush1.bf16.msra.mxu0 %v1009
    %1102 = vmatprep.subr.bf16.mxu0 0
    %1103 = vmatpush1.bf16.msra.mxu0 0
    %1104 = vmatprep.subr.bf16.mxu0 0
    %1105 = vmatpush1.bf16.msra.mxu0 0
    %1106 = vmatprep.subr.bf16.mxu0 0
    %1107 = vmatpush1.bf16.msra.mxu0 0
    %1108 = vmatprep.subr.bf16.mxu0 0
    %1109 = vmatpush1.bf16.msra.mxu0 0
    %1110 = vmatprep.subr.bf16.mxu0 0
    %1111 = vmatpush1.bf16.msra.mxu0 0
    %1112 = vmatprep.subr.bf16.mxu0 0
    %1113 = vmatpush1.bf16.msra.mxu0 0
    %1114 = vmatprep.subr.bf16.mxu0 0
    %1115 = vmatpush1.bf16.msra.mxu0 0
    %1116 = vmatprep.subr.bf16.mxu0 0
    %1117 = vmatpush1.bf16.msra.mxu0 0
    %1118 = vmatprep.mubr.bf16.mxu0 0
    %1119 = vmatmul.mubr.bf16.gmra.mrb[0].mxu0 %v826
    %v1120 = vpop.f32.mrb[0].mxu0
    %v1121 = vadd.f32 0.0, %v1120
    %v1122 = vpop.f32.mrb[0].mxu0
    %v1123 = vadd.f32 0.0, %v1122
    %v1124 = vpop.f32.mrb[0].mxu0
    %v1125 = vadd.f32 0.0, %v1124
    %v1126 = vpop.f32.mrb[0].mxu0
    %v1127 = vadd.f32 0.0, %v1126
    %1128 = vdwg.mxu0
    %v1129 = vadd.f32 %v843, %v1078
    %v1130 = vadd.f32 %v844, %v1080
    %v1131 = vadd.f32 %v845, %v1121
    %v1132 = vadd.f32 %v846, %v1123
    %v1133 = vadd.f32 %v847, %v1082
    %v1134 = vadd.f32 %v848, %v1084
    %v1135 = vadd.f32 %v849, %v1125
    %v1136 = vadd.f32 %v850, %v1127
    %v1137 = vxor.u32 %v1129, 2147483648
    %v1138 = vxor.u32 %v1133, 2147483648
    %v1139 = vmul.f32 %v1137, 1.442695
    %v1140 = vpow.pop %v1139
    %v1141 = vmul.f32 %v1138, 1.442695
    %v1142 = vpow.pop %v1141
    %v1143 = vadd.f32 %v1140, 1.0
    %v1144 = vadd.f32 %v1142, 1.0
    %v1145 = vrcp.pop %v1143
    %v1146 = vmul.f32 1.0, %v1145
    %v1147 = vrcp.pop %v1144
    %v1148 = vmul.f32 1.0, %v1147
    %v1149 = vxor.u32 %v1130, 2147483648
    %v1150 = vxor.u32 %v1134, 2147483648
    %v1151 = vmul.f32 %v1149, 1.442695
    %v1152 = vpow.pop %v1151
    %v1153 = vmul.f32 %v1150, 1.442695
    %v1154 = vpow.pop %v1153
    %v1155 = vadd.f32 %v1152, 1.0
    %v1156 = vadd.f32 %v1154, 1.0
    %v1157 = vrcp.pop %v1155
    %v1158 = vmul.f32 1.0, %v1157
    %v1159 = vrcp.pop %v1156
    %v1160 = vmul.f32 1.0, %v1159
    %v1161 = vtanh.pop %v1131
    %v1162 = vtanh.pop %v1135
    %v1163 = vxor.u32 %v1132, 2147483648
    %v1164 = vxor.u32 %v1136, 2147483648
    %v1165 = vmul.f32 %v1163, 1.442695
    %v1166 = vpow.pop %v1165
    %v1167 = vmul.f32 %v1164, 1.442695
    %v1168 = vpow.pop %v1167
    %v1169 = vadd.f32 %v1166, 1.0
    %v1170 = vadd.f32 %v1168, 1.0
    %v1171 = vrcp.pop %v1169
    %v1172 = vmul.f32 1.0, %v1171
    %v1173 = vrcp.pop %v1170
    %v1174 = vmul.f32 1.0, %v1173
    %v1175 = vmul.f32 %v1158, %v820
    %v1176 = vmul.f32 %v1160, %v821
    %v1177 = vmul.f32 %v1146, %v1161
    %v1178 = vmul.f32 %v1148, %v1162
    %v1179 = vadd.f32 %v1175, %v1177
    %v1180 = vadd.f32 %v1176, %v1178
    %v1181 = vtanh.pop %v1179
    %v1182 = vtanh.pop %v1180
    %v1183 = vmul.f32 %v1172, %v1181
    %v1184 = vmul.f32 %v1174, %v1182
    %v1185 = vpack.c.bf16 %v1184, %v1183
    %v1187 = vunpack.c.l.b16 %v1185
    %v1188 = vunpack.c.h.b16 %v1185
    %v1189 = vpack.c.b16 %v1187, %v1187
    %v1190 = vpack.c.b16 %v1188, %v1188
    %s1193 = scalar_lea.vmem [#allocation8], 8
    %1194 = vst [vmem:[%s1193] sm:$0xf] %v1189
    %1195 = vst [vmem:[%s1193 + $0x4] sm:$0xf] %v1190
    %s1196 = smul.u32 2, 4
    %s1197 = smul.addr %s1196, 8
    %s1198 = scalar_lea.vmem [#allocation2], %s1197
    %v1199 = vld [vmem:[%s1198] sm:$0xff]
    %v1200 = vld [vmem:[%s1198 + $0x8] sm:$0xff]
    %v1201 = vld [vmem:[%s1198 + $0x10] sm:$0xff]
    %v1202 = vld [vmem:[%s1198 + $0x18] sm:$0xff]
    %v1203 = vunpack.c.l.bf16 %v1199
    %v1204 = vunpack.c.l.bf16 %v1200
    %v1205 = vunpack.c.l.bf16 %v1201
    %v1206 = vunpack.c.l.bf16 %v1202
    %v1207 = vunpack.c.h.bf16 %v1199
    %v1208 = vunpack.c.h.bf16 %v1200
    %v1209 = vunpack.c.h.bf16 %v1201
    %v1210 = vunpack.c.h.bf16 %v1202
    %v1211 = vld [vmem:[#allocation5] sm:$0xff]
    %v1212 = vld [vmem:[#allocation5 + $0x8] sm:$0xff]
    %v1213 = vld [vmem:[#allocation5 + $0x10] sm:$0xff]
    %v1214 = vld [vmem:[#allocation5 + $0x18] sm:$0xff]
    %v1215 = vld [vmem:[#allocation5 + $0x20] sm:$0xff]
    %v1216 = vld [vmem:[#allocation5 + $0x28] sm:$0xff]
    %v1217 = vld [vmem:[#allocation5 + $0x30] sm:$0xff]
    %v1218 = vld [vmem:[#allocation5 + $0x38] sm:$0xff]
    %v1219 = vld [vmem:[#allocation5 + $0x40] sm:$0xff]
    %v1220 = vld [vmem:[#allocation5 + $0x48] sm:$0xff]
    %v1221 = vld [vmem:[#allocation5 + $0x50] sm:$0xff]
    %v1222 = vld [vmem:[#allocation5 + $0x58] sm:$0xff]
    %v1223 = vld [vmem:[#allocation5 + $0x60] sm:$0xff]
    %v1224 = vld [vmem:[#allocation5 + $0x68] sm:$0xff]
    %v1225 = vld [vmem:[#allocation5 + $0x70] sm:$0xff]
    %v1226 = vld [vmem:[#allocation5 + $0x78] sm:$0xff]
    %v1227 = vld [vmem:[#allocation5 + $0x80] sm:$0xff]
    %v1228 = vld [vmem:[#allocation5 + $0x88] sm:$0xff]
    %v1229 = vld [vmem:[#allocation5 + $0x90] sm:$0xff]
    %v1230 = vld [vmem:[#allocation5 + $0x98] sm:$0xff]
    %v1231 = vld [vmem:[#allocation5 + $0xa0] sm:$0xff]
    %v1232 = vld [vmem:[#allocation5 + $0xa8] sm:$0xff]
    %v1233 = vld [vmem:[#allocation5 + $0xb0] sm:$0xff]
    %v1234 = vld [vmem:[#allocation5 + $0xb8] sm:$0xff]
    %v1235 = vld [vmem:[#allocation5 + $0xc0] sm:$0xff]
    %v1236 = vld [vmem:[#allocation5 + $0xc8] sm:$0xff]
    %v1237 = vld [vmem:[#allocation5 + $0xd0] sm:$0xff]
    %v1238 = vld [vmem:[#allocation5 + $0xd8] sm:$0xff]
    %v1239 = vld [vmem:[#allocation5 + $0xe0] sm:$0xff]
    %v1240 = vld [vmem:[#allocation5 + $0xe8] sm:$0xff]
    %v1241 = vld [vmem:[#allocation5 + $0xf0] sm:$0xff]
    %v1242 = vld [vmem:[#allocation5 + $0xf8] sm:$0xff]
    %v1275 = vunpack.c.l.b16 %v1211
    %v1276 = vunpack.c.h.b16 %v1211
    %v1277 = vunpack.c.l.b16 %v1212
    %v1278 = vunpack.c.h.b16 %v1212
    %v1279 = vunpack.c.l.b16 %v1213
    %v1280 = vunpack.c.h.b16 %v1213
    %v1281 = vunpack.c.l.b16 %v1214
    %v1282 = vunpack.c.h.b16 %v1214
    %v1283 = vunpack.c.l.b16 %v1215
    %v1284 = vunpack.c.h.b16 %v1215
    %v1285 = vunpack.c.l.b16 %v1216
    %v1286 = vunpack.c.h.b16 %v1216
    %v1287 = vunpack.c.l.b16 %v1217
    %v1288 = vunpack.c.h.b16 %v1217
    %v1289 = vunpack.c.l.b16 %v1218
    %v1290 = vunpack.c.h.b16 %v1218
    %v1291 = vunpack.c.l.b16 %v1219
    %v1292 = vunpack.c.h.b16 %v1219
    %v1293 = vunpack.c.l.b16 %v1220
    %v1294 = vunpack.c.h.b16 %v1220
    %v1295 = vunpack.c.l.b16 %v1221
    %v1296 = vunpack.c.h.b16 %v1221
    %v1297 = vunpack.c.l.b16 %v1222
    %v1298 = vunpack.c.h.b16 %v1222
    %v1299 = vunpack.c.l.b16 %v1223
    %v1300 = vunpack.c.h.b16 %v1223
    %v1301 = vunpack.c.l.b16 %v1224
    %v1302 = vunpack.c.h.b16 %v1224
    %v1303 = vunpack.c.l.b16 %v1225
    %v1304 = vunpack.c.h.b16 %v1225
    %v1305 = vunpack.c.l.b16 %v1226
    %v1306 = vunpack.c.h.b16 %v1226
    %v1307 = vunpack.c.l.b16 %v1227
    %v1308 = vunpack.c.h.b16 %v1227
    %v1309 = vunpack.c.l.b16 %v1228
    %v1310 = vunpack.c.h.b16 %v1228
    %v1311 = vunpack.c.l.b16 %v1229
    %v1312 = vunpack.c.h.b16 %v1229
    %v1313 = vunpack.c.l.b16 %v1230
    %v1314 = vunpack.c.h.b16 %v1230
    %v1315 = vunpack.c.l.b16 %v1231
    %v1316 = vunpack.c.h.b16 %v1231
    %v1317 = vunpack.c.l.b16 %v1232
    %v1318 = vunpack.c.h.b16 %v1232
    %v1319 = vunpack.c.l.b16 %v1233
    %v1320 = vunpack.c.h.b16 %v1233
    %v1321 = vunpack.c.l.b16 %v1234
    %v1322 = vunpack.c.h.b16 %v1234
    %v1323 = vunpack.c.l.b16 %v1235
    %v1324 = vunpack.c.h.b16 %v1235
    %v1325 = vunpack.c.l.b16 %v1236
    %v1326 = vunpack.c.h.b16 %v1236
    %v1327 = vunpack.c.l.b16 %v1237
    %v1328 = vunpack.c.h.b16 %v1237
    %v1329 = vunpack.c.l.b16 %v1238
    %v1330 = vunpack.c.h.b16 %v1238
    %v1331 = vunpack.c.l.b16 %v1239
    %v1332 = vunpack.c.h.b16 %v1239
    %v1333 = vunpack.c.l.b16 %v1240
    %v1334 = vunpack.c.h.b16 %v1240
    %v1335 = vunpack.c.l.b16 %v1241
    %v1336 = vunpack.c.h.b16 %v1241
    %v1337 = vunpack.c.l.b16 %v1242
    %v1338 = vunpack.c.h.b16 %v1242
    %v1339 = vpack.c.b16 %v1279, %v1275
    %v1340 = vpack.c.b16 %v1280, %v1276
    %v1341 = vpack.c.b16 %v1281, %v1277
    %v1342 = vpack.c.b16 %v1282, %v1278
    %v1343 = vpack.c.b16 %v1287, %v1283
    %v1344 = vpack.c.b16 %v1288, %v1284
    %v1345 = vpack.c.b16 %v1289, %v1285
    %v1346 = vpack.c.b16 %v1290, %v1286
    %v1347 = vpack.c.b16 %v1295, %v1291
    %v1348 = vpack.c.b16 %v1296, %v1292
    %v1349 = vpack.c.b16 %v1297, %v1293
    %v1350 = vpack.c.b16 %v1298, %v1294
    %v1351 = vpack.c.b16 %v1303, %v1299
    %v1352 = vpack.c.b16 %v1304, %v1300
    %v1353 = vpack.c.b16 %v1305, %v1301
    %v1354 = vpack.c.b16 %v1306, %v1302
    %v1355 = vpack.c.b16 %v1311, %v1307
    %v1356 = vpack.c.b16 %v1312, %v1308
    %v1357 = vpack.c.b16 %v1313, %v1309
    %v1358 = vpack.c.b16 %v1314, %v1310
    %v1359 = vpack.c.b16 %v1319, %v1315
    %v1360 = vpack.c.b16 %v1320, %v1316
    %v1361 = vpack.c.b16 %v1321, %v1317
    %v1362 = vpack.c.b16 %v1322, %v1318
    %v1363 = vpack.c.b16 %v1327, %v1323
    %v1364 = vpack.c.b16 %v1328, %v1324
    %v1365 = vpack.c.b16 %v1329, %v1325
    %v1366 = vpack.c.b16 %v1330, %v1326
    %v1367 = vpack.c.b16 %v1335, %v1331
    %v1368 = vpack.c.b16 %v1336, %v1332
    %v1369 = vpack.c.b16 %v1337, %v1333
    %v1370 = vpack.c.b16 %v1338, %v1334
    %1403 = vmatprep.subr.bf16.mxu0 %v1340
    %1404 = vmatpush1.bf16.msra.mxu0 %v1339
    %1405 = vmatprep.subr.bf16.mxu0 %v1344
    %1406 = vmatpush1.bf16.msra.mxu0 %v1343
    %1407 = vmatprep.subr.bf16.mxu0 %v1348
    %1408 = vmatpush1.bf16.msra.mxu0 %v1347
    %1409 = vmatprep.subr.bf16.mxu0 %v1352
    %1410 = vmatpush1.bf16.msra.mxu0 %v1351
    %1411 = vmatprep.subr.bf16.mxu0 %v1356
    %1412 = vmatpush1.bf16.msra.mxu0 %v1355
    %1413 = vmatprep.subr.bf16.mxu0 %v1360
    %1414 = vmatpush1.bf16.msra.mxu0 %v1359
    %1415 = vmatprep.subr.bf16.mxu0 %v1364
    %1416 = vmatpush1.bf16.msra.mxu0 %v1363
    %1417 = vmatprep.subr.bf16.mxu0 %v1368
    %1418 = vmatpush1.bf16.msra.mxu0 %v1367
    %1419 = vmatprep.subr.bf16.mxu0 0
    %1420 = vmatpush1.bf16.msra.mxu0 0
    %1421 = vmatprep.subr.bf16.mxu0 0
    %1422 = vmatpush1.bf16.msra.mxu0 0
    %1423 = vmatprep.subr.bf16.mxu0 0
    %1424 = vmatpush1.bf16.msra.mxu0 0
    %1425 = vmatprep.subr.bf16.mxu0 0
    %1426 = vmatpush1.bf16.msra.mxu0 0
    %1427 = vmatprep.subr.bf16.mxu0 0
    %1428 = vmatpush1.bf16.msra.mxu0 0
    %1429 = vmatprep.subr.bf16.mxu0 0
    %1430 = vmatpush1.bf16.msra.mxu0 0
    %1431 = vmatprep.subr.bf16.mxu0 0
    %1432 = vmatpush1.bf16.msra.mxu0 0
    %1433 = vmatprep.subr.bf16.mxu0 0
    %1434 = vmatpush1.bf16.msra.mxu0 0
    %1435 = vmatprep.mubr.bf16.mxu0 0
    %1436 = vmatmul.mubr.bf16.gmra.mrb[0].mxu0 %v1185
    %v1437 = vpop.f32.mrb[0].mxu0
    %v1438 = vadd.f32 0.0, %v1437
    %v1439 = vpop.f32.mrb[0].mxu0
    %v1440 = vadd.f32 0.0, %v1439
    %v1441 = vpop.f32.mrb[0].mxu0
    %v1442 = vadd.f32 0.0, %v1441
    %v1443 = vpop.f32.mrb[0].mxu0
    %v1444 = vadd.f32 0.0, %v1443
    %1445 = vdwg.mxu0
    %1446 = vmatprep.subr.bf16.mxu0 %v1342
    %1447 = vmatpush1.bf16.msra.mxu0 %v1341
    %1448 = vmatprep.subr.bf16.mxu0 %v1346
    %1449 = vmatpush1.bf16.msra.mxu0 %v1345
    %1450 = vmatprep.subr.bf16.mxu0 %v1350
    %1451 = vmatpush1.bf16.msra.mxu0 %v1349
    %1452 = vmatprep.subr.bf16.mxu0 %v1354
    %1453 = vmatpush1.bf16.msra.mxu0 %v1353
    %1454 = vmatprep.subr.bf16.mxu0 %v1358
    %1455 = vmatpush1.bf16.msra.mxu0 %v1357
    %1456 = vmatprep.subr.bf16.mxu0 %v1362
    %1457 = vmatpush1.bf16.msra.mxu0 %v1361
    %1458 = vmatprep.subr.bf16.mxu0 %v1366
    %1459 = vmatpush1.bf16.msra.mxu0 %v1365
    %1460 = vmatprep.subr.bf16.mxu0 %v1370
    %1461 = vmatpush1.bf16.msra.mxu0 %v1369
    %1462 = vmatprep.subr.bf16.mxu0 0
    %1463 = vmatpush1.bf16.msra.mxu0 0
    %1464 = vmatprep.subr.bf16.mxu0 0
    %1465 = vmatpush1.bf16.msra.mxu0 0
    %1466 = vmatprep.subr.bf16.mxu0 0
    %1467 = vmatpush1.bf16.msra.mxu0 0
    %1468 = vmatprep.subr.bf16.mxu0 0
    %1469 = vmatpush1.bf16.msra.mxu0 0
    %1470 = vmatprep.subr.bf16.mxu0 0
    %1471 = vmatpush1.bf16.msra.mxu0 0
    %1472 = vmatprep.subr.bf16.mxu0 0
    %1473 = vmatpush1.bf16.msra.mxu0 0
    %1474 = vmatprep.subr.bf16.mxu0 0
    %1475 = vmatpush1.bf16.msra.mxu0 0
    %1476 = vmatprep.subr.bf16.mxu0 0
    %1477 = vmatpush1.bf16.msra.mxu0 0
    %1478 = vmatprep.mubr.bf16.mxu0 0
    %1479 = vmatmul.mubr.bf16.gmra.mrb[0].mxu0 %v1185
    %v1480 = vpop.f32.mrb[0].mxu0
    %v1481 = vadd.f32 0.0, %v1480
    %v1482 = vpop.f32.mrb[0].mxu0
    %v1483 = vadd.f32 0.0, %v1482
    %v1484 = vpop.f32.mrb[0].mxu0
    %v1485 = vadd.f32 0.0, %v1484
    %v1486 = vpop.f32.mrb[0].mxu0
    %v1487 = vadd.f32 0.0, %v1486
    %1488 = vdwg.mxu0
    %v1489 = vadd.f32 %v1203, %v1438
    %v1490 = vadd.f32 %v1204, %v1440
    %v1491 = vadd.f32 %v1205, %v1481
    %v1492 = vadd.f32 %v1206, %v1483
    %v1493 = vadd.f32 %v1207, %v1442
    %v1494 = vadd.f32 %v1208, %v1444
    %v1495 = vadd.f32 %v1209, %v1485
    %v1496 = vadd.f32 %v1210, %v1487
    %v1497 = vxor.u32 %v1489, 2147483648
    %v1498 = vxor.u32 %v1493, 2147483648
    %v1499 = vmul.f32 %v1497, 1.442695
    %v1500 = vpow.pop %v1499
    %v1501 = vmul.f32 %v1498, 1.442695
    %v1502 = vpow.pop %v1501
    %v1503 = vadd.f32 %v1500, 1.0
    %v1504 = vadd.f32 %v1502, 1.0
    %v1505 = vrcp.pop %v1503
    %v1506 = vmul.f32 1.0, %v1505
    %v1507 = vrcp.pop %v1504
    %v1508 = vmul.f32 1.0, %v1507
    %v1509 = vxor.u32 %v1490, 2147483648
    %v1510 = vxor.u32 %v1494, 2147483648
    %v1511 = vmul.f32 %v1509, 1.442695
    %v1512 = vpow.pop %v1511
    %v1513 = vmul.f32 %v1510, 1.442695
    %v1514 = vpow.pop %v1513
    %v1515 = vadd.f32 %v1512, 1.0
    %v1516 = vadd.f32 %v1514, 1.0
    %v1517 = vrcp.pop %v1515
    %v1518 = vmul.f32 1.0, %v1517
    %v1519 = vrcp.pop %v1516
    %v1520 = vmul.f32 1.0, %v1519
    %v1521 = vtanh.pop %v1491
    %v1522 = vtanh.pop %v1495
    %v1523 = vxor.u32 %v1492, 2147483648
    %v1524 = vxor.u32 %v1496, 2147483648
    %v1525 = vmul.f32 %v1523, 1.442695
    %v1526 = vpow.pop %v1525
    %v1527 = vmul.f32 %v1524, 1.442695
    %v1528 = vpow.pop %v1527
    %v1529 = vadd.f32 %v1526, 1.0
    %v1530 = vadd.f32 %v1528, 1.0
    %v1531 = vrcp.pop %v1529
    %v1532 = vmul.f32 1.0, %v1531
    %v1533 = vrcp.pop %v1530
    %v1534 = vmul.f32 1.0, %v1533
    %v1535 = vmul.f32 %v1518, %v1179
    %v1536 = vmul.f32 %v1520, %v1180
    %v1537 = vmul.f32 %v1506, %v1521
    %v1538 = vmul.f32 %v1508, %v1522
    %v1539 = vadd.f32 %v1535, %v1537
    %v1540 = vadd.f32 %v1536, %v1538
    %v1541 = vtanh.pop %v1539
    %v1542 = vtanh.pop %v1540
    %v1543 = vmul.f32 %v1532, %v1541
    %v1544 = vmul.f32 %v1534, %v1542
    %v1545 = vpack.c.bf16 %v1544, %v1543
    %v1547 = vunpack.c.l.b16 %v1545
    %v1548 = vunpack.c.h.b16 %v1545
    %v1549 = vpack.c.b16 %v1547, %v1547
    %v1550 = vpack.c.b16 %v1548, %v1548
    %s1553 = scalar_lea.vmem [#allocation8], 16
    %1554 = vst [vmem:[%s1553] sm:$0xf] %v1549
    %1555 = vst [vmem:[%s1553 + $0x4] sm:$0xf] %v1550
    %s1556 = smul.u32 3, 4
    %s1557 = smul.addr %s1556, 8
    %s1558 = scalar_lea.vmem [#allocation2], %s1557
    %v1559 = vld [vmem:[%s1558] sm:$0xff]
    %v1560 = vld [vmem:[%s1558 + $0x8] sm:$0xff]
    %v1561 = vld [vmem:[%s1558 + $0x10] sm:$0xff]
    %v1562 = vld [vmem:[%s1558 + $0x18] sm:$0xff]
    %v1563 = vunpack.c.l.bf16 %v1559
    %v1564 = vunpack.c.l.bf16 %v1560
    %v1565 = vunpack.c.l.bf16 %v1561
    %v1566 = vunpack.c.l.bf16 %v1562
    %v1567 = vunpack.c.h.bf16 %v1559
    %v1568 = vunpack.c.h.bf16 %v1560
    %v1569 = vunpack.c.h.bf16 %v1561
    %v1570 = vunpack.c.h.bf16 %v1562
    %v1571 = vld [vmem:[#allocation5] sm:$0xff]
    %v1572 = vld [vmem:[#allocation5 + $0x8] sm:$0xff]
    %v1573 = vld [vmem:[#allocation5 + $0x10] sm:$0xff]
    %v1574 = vld [vmem:[#allocation5 + $0x18] sm:$0xff]
    %v1575 = vld [vmem:[#allocation5 + $0x20] sm:$0xff]
    %v1576 = vld [vmem:[#allocation5 + $0x28] sm:$0xff]
    %v1577 = vld [vmem:[#allocation5 + $0x30] sm:$0xff]
    %v1578 = vld [vmem:[#allocation5 + $0x38] sm:$0xff]
    %v1579 = vld [vmem:[#allocation5 + $0x40] sm:$0xff]
    %v1580 = vld [vmem:[#allocation5 + $0x48] sm:$0xff]
    %v1581 = vld [vmem:[#allocation5 + $0x50] sm:$0xff]
    %v1582 = vld [vmem:[#allocation5 + $0x58] sm:$0xff]
    %v1583 = vld [vmem:[#allocation5 + $0x60] sm:$0xff]
    %v1584 = vld [vmem:[#allocation5 + $0x68] sm:$0xff]
    %v1585 = vld [vmem:[#allocation5 + $0x70] sm:$0xff]
    %v1586 = vld [vmem:[#allocation5 + $0x78] sm:$0xff]
    %v1587 = vld [vmem:[#allocation5 + $0x80] sm:$0xff]
    %v1588 = vld [vmem:[#allocation5 + $0x88] sm:$0xff]
    %v1589 = vld [vmem:[#allocation5 + $0x90] sm:$0xff]
    %v1590 = vld [vmem:[#allocation5 + $0x98] sm:$0xff]
    %v1591 = vld [vmem:[#allocation5 + $0xa0] sm:$0xff]
    %v1592 = vld [vmem:[#allocation5 + $0xa8] sm:$0xff]
    %v1593 = vld [vmem:[#allocation5 + $0xb0] sm:$0xff]
    %v1594 = vld [vmem:[#allocation5 + $0xb8] sm:$0xff]
    %v1595 = vld [vmem:[#allocation5 + $0xc0] sm:$0xff]
    %v1596 = vld [vmem:[#allocation5 + $0xc8] sm:$0xff]
    %v1597 = vld [vmem:[#allocation5 + $0xd0] sm:$0xff]
    %v1598 = vld [vmem:[#allocation5 + $0xd8] sm:$0xff]
    %v1599 = vld [vmem:[#allocation5 + $0xe0] sm:$0xff]
    %v1600 = vld [vmem:[#allocation5 + $0xe8] sm:$0xff]
    %v1601 = vld [vmem:[#allocation5 + $0xf0] sm:$0xff]
    %v1602 = vld [vmem:[#allocation5 + $0xf8] sm:$0xff]
    %v1635 = vunpack.c.l.b16 %v1571
    %v1636 = vunpack.c.h.b16 %v1571
    %v1637 = vunpack.c.l.b16 %v1572
    %v1638 = vunpack.c.h.b16 %v1572
    %v1639 = vunpack.c.l.b16 %v1573
    %v1640 = vunpack.c.h.b16 %v1573
    %v1641 = vunpack.c.l.b16 %v1574
    %v1642 = vunpack.c.h.b16 %v1574
    %v1643 = vunpack.c.l.b16 %v1575
    %v1644 = vunpack.c.h.b16 %v1575
    %v1645 = vunpack.c.l.b16 %v1576
    %v1646 = vunpack.c.h.b16 %v1576
    %v1647 = vunpack.c.l.b16 %v1577
    %v1648 = vunpack.c.h.b16 %v1577
    %v1649 = vunpack.c.l.b16 %v1578
    %v1650 = vunpack.c.h.b16 %v1578
    %v1651 = vunpack.c.l.b16 %v1579
    %v1652 = vunpack.c.h.b16 %v1579
    %v1653 = vunpack.c.l.b16 %v1580
    %v1654 = vunpack.c.h.b16 %v1580
    %v1655 = vunpack.c.l.b16 %v1581
    %v1656 = vunpack.c.h.b16 %v1581
    %v1657 = vunpack.c.l.b16 %v1582
    %v1658 = vunpack.c.h.b16 %v1582
    %v1659 = vunpack.c.l.b16 %v1583
    %v1660 = vunpack.c.h.b16 %v1583
    %v1661 = vunpack.c.l.b16 %v1584
    %v1662 = vunpack.c.h.b16 %v1584
    %v1663 = vunpack.c.l.b16 %v1585
    %v1664 = vunpack.c.h.b16 %v1585
    %v1665 = vunpack.c.l.b16 %v1586
    %v1666 = vunpack.c.h.b16 %v1586
    %v1667 = vunpack.c.l.b16 %v1587
    %v1668 = vunpack.c.h.b16 %v1587
    %v1669 = vunpack.c.l.b16 %v1588
    %v1670 = vunpack.c.h.b16 %v1588
    %v1671 = vunpack.c.l.b16 %v1589
    %v1672 = vunpack.c.h.b16 %v1589
    %v1673 = vunpack.c.l.b16 %v1590
    %v1674 = vunpack.c.h.b16 %v1590
    %v1675 = vunpack.c.l.b16 %v1591
    %v1676 = vunpack.c.h.b16 %v1591
    %v1677 = vunpack.c.l.b16 %v1592
    %v1678 = vunpack.c.h.b16 %v1592
    %v1679 = vunpack.c.l.b16 %v1593
    %v1680 = vunpack.c.h.b16 %v1593
    %v1681 = vunpack.c.l.b16 %v1594
    %v1682 = vunpack.c.h.b16 %v1594
    %v1683 = vunpack.c.l.b16 %v1595
    %v1684 = vunpack.c.h.b16 %v1595
    %v1685 = vunpack.c.l.b16 %v1596
    %v1686 = vunpack.c.h.b16 %v1596
    %v1687 = vunpack.c.l.b16 %v1597
    %v1688 = vunpack.c.h.b16 %v1597
    %v1689 = vunpack.c.l.b16 %v1598
    %v1690 = vunpack.c.h.b16 %v1598
    %v1691 = vunpack.c.l.b16 %v1599
    %v1692 = vunpack.c.h.b16 %v1599
    %v1693 = vunpack.c.l.b16 %v1600
    %v1694 = vunpack.c.h.b16 %v1600
    %v1695 = vunpack.c.l.b16 %v1601
    %v1696 = vunpack.c.h.b16 %v1601
    %v1697 = vunpack.c.l.b16 %v1602
    %v1698 = vunpack.c.h.b16 %v1602
    %v1699 = vpack.c.b16 %v1639, %v1635
    %v1700 = vpack.c.b16 %v1640, %v1636
    %v1701 = vpack.c.b16 %v1641, %v1637
    %v1702 = vpack.c.b16 %v1642, %v1638
    %v1703 = vpack.c.b16 %v1647, %v1643
    %v1704 = vpack.c.b16 %v1648, %v1644
    %v1705 = vpack.c.b16 %v1649, %v1645
    %v1706 = vpack.c.b16 %v1650, %v1646
    %v1707 = vpack.c.b16 %v1655, %v1651
    %v1708 = vpack.c.b16 %v1656, %v1652
    %v1709 = vpack.c.b16 %v1657, %v1653
    %v1710 = vpack.c.b16 %v1658, %v1654
    %v1711 = vpack.c.b16 %v1663, %v1659
    %v1712 = vpack.c.b16 %v1664, %v1660
    %v1713 = vpack.c.b16 %v1665, %v1661
    %v1714 = vpack.c.b16 %v1666, %v1662
    %v1715 = vpack.c.b16 %v1671, %v1667
    %v1716 = vpack.c.b16 %v1672, %v1668
    %v1717 = vpack.c.b16 %v1673, %v1669
    %v1718 = vpack.c.b16 %v1674, %v1670
    %v1719 = vpack.c.b16 %v1679, %v1675
    %v1720 = vpack.c.b16 %v1680, %v1676
    %v1721 = vpack.c.b16 %v1681, %v1677
    %v1722 = vpack.c.b16 %v1682, %v1678
    %v1723 = vpack.c.b16 %v1687, %v1683
    %v1724 = vpack.c.b16 %v1688, %v1684
    %v1725 = vpack.c.b16 %v1689, %v1685
    %v1726 = vpack.c.b16 %v1690, %v1686
    %v1727 = vpack.c.b16 %v1695, %v1691
    %v1728 = vpack.c.b16 %v1696, %v1692
    %v1729 = vpack.c.b16 %v1697, %v1693
    %v1730 = vpack.c.b16 %v1698, %v1694
    %1763 = vmatprep.subr.bf16.mxu0 %v1700
    %1764 = vmatpush1.bf16.msra.mxu0 %v1699
    %1765 = vmatprep.subr.bf16.mxu0 %v1704
    %1766 = vmatpush1.bf16.msra.mxu0 %v1703
    %1767 = vmatprep.subr.bf16.mxu0 %v1708
    %1768 = vmatpush1.bf16.msra.mxu0 %v1707
    %1769 = vmatprep.subr.bf16.mxu0 %v1712
    %1770 = vmatpush1.bf16.msra.mxu0 %v1711
    %1771 = vmatprep.subr.bf16.mxu0 %v1716
    %1772 = vmatpush1.bf16.msra.mxu0 %v1715
    %1773 = vmatprep.subr.bf16.mxu0 %v1720
    %1774 = vmatpush1.bf16.msra.mxu0 %v1719
    %1775 = vmatprep.subr.bf16.mxu0 %v1724
    %1776 = vmatpush1.bf16.msra.mxu0 %v1723
    %1777 = vmatprep.subr.bf16.mxu0 %v1728
    %1778 = vmatpush1.bf16.msra.mxu0 %v1727
    %1779 = vmatprep.subr.bf16.mxu0 0
    %1780 = vmatpush1.bf16.msra.mxu0 0
    %1781 = vmatprep.subr.bf16.mxu0 0
    %1782 = vmatpush1.bf16.msra.mxu0 0
    %1783 = vmatprep.subr.bf16.mxu0 0
    %1784 = vmatpush1.bf16.msra.mxu0 0
    %1785 = vmatprep.subr.bf16.mxu0 0
    %1786 = vmatpush1.bf16.msra.mxu0 0
    %1787 = vmatprep.subr.bf16.mxu0 0
    %1788 = vmatpush1.bf16.msra.mxu0 0
    %1789 = vmatprep.subr.bf16.mxu0 0
    %1790 = vmatpush1.bf16.msra.mxu0 0
    %1791 = vmatprep.subr.bf16.mxu0 0
    %1792 = vmatpush1.bf16.msra.mxu0 0
    %1793 = vmatprep.subr.bf16.mxu0 0
    %1794 = vmatpush1.bf16.msra.mxu0 0
    %1795 = vmatprep.mubr.bf16.mxu0 0
    %1796 = vmatmul.mubr.bf16.gmra.mrb[0].mxu0 %v1545
    %v1797 = vpop.f32.mrb[0].mxu0
    %v1798 = vadd.f32 0.0, %v1797
    %v1799 = vpop.f32.mrb[0].mxu0
    %v1800 = vadd.f32 0.0, %v1799
    %v1801 = vpop.f32.mrb[0].mxu0
    %v1802 = vadd.f32 0.0, %v1801
    %v1803 = vpop.f32.mrb[0].mxu0
    %v1804 = vadd.f32 0.0, %v1803
    %1805 = vdwg.mxu0
    %1806 = vmatprep.subr.bf16.mxu0 %v1702
    %1807 = vmatpush1.bf16.msra.mxu0 %v1701
    %1808 = vmatprep.subr.bf16.mxu0 %v1706
    %1809 = vmatpush1.bf16.msra.mxu0 %v1705
    %1810 = vmatprep.subr.bf16.mxu0 %v1710
    %1811 = vmatpush1.bf16.msra.mxu0 %v1709
    %1812 = vmatprep.subr.bf16.mxu0 %v1714
    %1813 = vmatpush1.bf16.msra.mxu0 %v1713
    %1814 = vmatprep.subr.bf16.mxu0 %v1718
    %1815 = vmatpush1.bf16.msra.mxu0 %v1717
    %1816 = vmatprep.subr.bf16.mxu0 %v1722
    %1817 = vmatpush1.bf16.msra.mxu0 %v1721
    %1818 = vmatprep.subr.bf16.mxu0 %v1726
    %1819 = vmatpush1.bf16.msra.mxu0 %v1725
    %1820 = vmatprep.subr.bf16.mxu0 %v1730
    %1821 = vmatpush1.bf16.msra.mxu0 %v1729
    %1822 = vmatprep.subr.bf16.mxu0 0
    %1823 = vmatpush1.bf16.msra.mxu0 0
    %1824 = vmatprep.subr.bf16.mxu0 0
    %1825 = vmatpush1.bf16.msra.mxu0 0
    %1826 = vmatprep.subr.bf16.mxu0 0
    %1827 = vmatpush1.bf16.msra.mxu0 0
    %1828 = vmatprep.subr.bf16.mxu0 0
    %1829 = vmatpush1.bf16.msra.mxu0 0
    %1830 = vmatprep.subr.bf16.mxu0 0
    %1831 = vmatpush1.bf16.msra.mxu0 0
    %1832 = vmatprep.subr.bf16.mxu0 0
    %1833 = vmatpush1.bf16.msra.mxu0 0
    %1834 = vmatprep.subr.bf16.mxu0 0
    %1835 = vmatpush1.bf16.msra.mxu0 0
    %1836 = vmatprep.subr.bf16.mxu0 0
    %1837 = vmatpush1.bf16.msra.mxu0 0
    %1838 = vmatprep.mubr.bf16.mxu0 0
    %1839 = vmatmul.mubr.bf16.gmra.mrb[0].mxu0 %v1545
    %v1840 = vpop.f32.mrb[0].mxu0
    %v1841 = vadd.f32 0.0, %v1840
    %v1842 = vpop.f32.mrb[0].mxu0
    %v1843 = vadd.f32 0.0, %v1842
    %v1844 = vpop.f32.mrb[0].mxu0
    %v1845 = vadd.f32 0.0, %v1844
    %v1846 = vpop.f32.mrb[0].mxu0
    %v1847 = vadd.f32 0.0, %v1846
    %1848 = vdwg.mxu0
    %v1849 = vadd.f32 %v1563, %v1798
    %v1850 = vadd.f32 %v1564, %v1800
    %v1851 = vadd.f32 %v1565, %v1841
    %v1852 = vadd.f32 %v1566, %v1843
    %v1853 = vadd.f32 %v1567, %v1802
    %v1854 = vadd.f32 %v1568, %v1804
    %v1855 = vadd.f32 %v1569, %v1845
    %v1856 = vadd.f32 %v1570, %v1847
    %v1857 = vxor.u32 %v1849, 2147483648
    %v1858 = vxor.u32 %v1853, 2147483648
    %v1859 = vmul.f32 %v1857, 1.442695
    %v1860 = vpow.pop %v1859
    %v1861 = vmul.f32 %v1858, 1.442695
    %v1862 = vpow.pop %v1861
    %v1863 = vadd.f32 %v1860, 1.0
    %v1864 = vadd.f32 %v1862, 1.0
    %v1865 = vrcp.pop %v1863
    %v1866 = vmul.f32 1.0, %v1865
    %v1867 = vrcp.pop %v1864
    %v1868 = vmul.f32 1.0, %v1867
    %v1869 = vxor.u32 %v1850, 2147483648
    %v1870 = vxor.u32 %v1854, 2147483648
    %v1871 = vmul.f32 %v1869, 1.442695
    %v1872 = vpow.pop %v1871
    %v1873 = vmul.f32 %v1870, 1.442695
    %v1874 = vpow.pop %v1873
    %v1875 = vadd.f32 %v1872, 1.0
    %v1876 = vadd.f32 %v1874, 1.0
    %v1877 = vrcp.pop %v1875
    %v1878 = vmul.f32 1.0, %v1877
    %v1879 = vrcp.pop %v1876
    %v1880 = vmul.f32 1.0, %v1879
    %v1881 = vtanh.pop %v1851
    %v1882 = vtanh.pop %v1855
    %v1883 = vxor.u32 %v1852, 2147483648
    %v1884 = vxor.u32 %v1856, 2147483648
    %v1885 = vmul.f32 %v1883, 1.442695
    %v1886 = vpow.pop %v1885
    %v1887 = vmul.f32 %v1884, 1.442695
    %v1888 = vpow.pop %v1887
    %v1889 = vadd.f32 %v1886, 1.0
    %v1890 = vadd.f32 %v1888, 1.0
    %v1891 = vrcp.pop %v1889
    %v1892 = vmul.f32 1.0, %v1891
    %v1893 = vrcp.pop %v1890
    %v1894 = vmul.f32 1.0, %v1893
    %v1895 = vmul.f32 %v1878, %v1539
    %v1896 = vmul.f32 %v1880, %v1540
    %v1897 = vmul.f32 %v1866, %v1881
    %v1898 = vmul.f32 %v1868, %v1882
    %v1899 = vadd.f32 %v1895, %v1897
    %v1900 = vadd.f32 %v1896, %v1898
    %v1901 = vtanh.pop %v1899
    %v1902 = vtanh.pop %v1900
    %v1903 = vmul.f32 %v1892, %v1901
    %v1904 = vmul.f32 %v1894, %v1902
    %v1905 = vpack.c.bf16 %v1904, %v1903
    %v1907 = vunpack.c.l.b16 %v1905
    %v1908 = vunpack.c.h.b16 %v1905
    %v1909 = vpack.c.b16 %v1907, %v1907
    %v1910 = vpack.c.b16 %v1908, %v1908
    %s1913 = scalar_lea.vmem [#allocation8], 24
    %1914 = vst [vmem:[%s1913] sm:$0xf] %v1909
    %1915 = vst [vmem:[%s1913 + $0x4] sm:$0xf] %v1910
    %s1916 = smul.u32 4, 4
    %s1917 = smul.addr %s1916, 8
    %s1918 = scalar_lea.vmem [#allocation2], %s1917
    %v1919 = vld [vmem:[%s1918] sm:$0xff]
    %v1920 = vld [vmem:[%s1918 + $0x8] sm:$0xff]
    %v1921 = vld [vmem:[%s1918 + $0x10] sm:$0xff]
    %v1922 = vld [vmem:[%s1918 + $0x18] sm:$0xff]
    %v1923 = vunpack.c.l.bf16 %v1919
    %v1924 = vunpack.c.l.bf16 %v1920
    %v1925 = vunpack.c.l.bf16 %v1921
    %v1926 = vunpack.c.l.bf16 %v1922
    %v1927 = vunpack.c.h.bf16 %v1919
    %v1928 = vunpack.c.h.bf16 %v1920
    %v1929 = vunpack.c.h.bf16 %v1921
    %v1930 = vunpack.c.h.bf16 %v1922
    %v1931 = vld [vmem:[#allocation5] sm:$0xff]
    %v1932 = vld [vmem:[#allocation5 + $0x8] sm:$0xff]
    %v1933 = vld [vmem:[#allocation5 + $0x10] sm:$0xff]
    %v1934 = vld [vmem:[#allocation5 + $0x18] sm:$0xff]
    %v1935 = vld [vmem:[#allocation5 + $0x20] sm:$0xff]
    %v1936 = vld [vmem:[#allocation5 + $0x28] sm:$0xff]
    %v1937 = vld [vmem:[#allocation5 + $0x30] sm:$0xff]
    %v1938 = vld [vmem:[#allocation5 + $0x38] sm:$0xff]
    %v1939 = vld [vmem:[#allocation5 + $0x40] sm:$0xff]
    %v1940 = vld [vmem:[#allocation5 + $0x48] sm:$0xff]
    %v1941 = vld [vmem:[#allocation5 + $0x50] sm:$0xff]
    %v1942 = vld [vmem:[#allocation5 + $0x58] sm:$0xff]
    %v1943 = vld [vmem:[#allocation5 + $0x60] sm:$0xff]
    %v1944 = vld [vmem:[#allocation5 + $0x68] sm:$0xff]
    %v1945 = vld [vmem:[#allocation5 + $0x70] sm:$0xff]
    %v1946 = vld [vmem:[#allocation5 + $0x78] sm:$0xff]
    %v1947 = vld [vmem:[#allocation5 + $0x80] sm:$0xff]
    %v1948 = vld [vmem:[#allocation5 + $0x88] sm:$0xff]
    %v1949 = vld [vmem:[#allocation5 + $0x90] sm:$0xff]
    %v1950 = vld [vmem:[#allocation5 + $0x98] sm:$0xff]
    %v1951 = vld [vmem:[#allocation5 + $0xa0] sm:$0xff]
    %v1952 = vld [vmem:[#allocation5 + $0xa8] sm:$0xff]
    %v1953 = vld [vmem:[#allocation5 + $0xb0] sm:$0xff]
    %v1954 = vld [vmem:[#allocation5 + $0xb8] sm:$0xff]
    %v1955 = vld [vmem:[#allocation5 + $0xc0] sm:$0xff]
    %v1956 = vld [vmem:[#allocation5 + $0xc8] sm:$0xff]
    %v1957 = vld [vmem:[#allocation5 + $0xd0] sm:$0xff]
    %v1958 = vld [vmem:[#allocation5 + $0xd8] sm:$0xff]
    %v1959 = vld [vmem:[#allocation5 + $0xe0] sm:$0xff]
    %v1960 = vld [vmem:[#allocation5 + $0xe8] sm:$0xff]
    %v1961 = vld [vmem:[#allocation5 + $0xf0] sm:$0xff]
    %v1962 = vld [vmem:[#allocation5 + $0xf8] sm:$0xff]
    %v1995 = vunpack.c.l.b16 %v1931
    %v1996 = vunpack.c.h.b16 %v1931
    %v1997 = vunpack.c.l.b16 %v1932
    %v1998 = vunpack.c.h.b16 %v1932
    %v1999 = vunpack.c.l.b16 %v1933
    %v2000 = vunpack.c.h.b16 %v1933
    %v2001 = vunpack.c.l.b16 %v1934
    %v2002 = vunpack.c.h.b16 %v1934
    %v2003 = vunpack.c.l.b16 %v1935
    %v2004 = vunpack.c.h.b16 %v1935
    %v2005 = vunpack.c.l.b16 %v1936
    %v2006 = vunpack.c.h.b16 %v1936
    %v2007 = vunpack.c.l.b16 %v1937
    %v2008 = vunpack.c.h.b16 %v1937
    %v2009 = vunpack.c.l.b16 %v1938
    %v2010 = vunpack.c.h.b16 %v1938
    %v2011 = vunpack.c.l.b16 %v1939
    %v2012 = vunpack.c.h.b16 %v1939
    %v2013 = vunpack.c.l.b16 %v1940
    %v2014 = vunpack.c.h.b16 %v1940
    %v2015 = vunpack.c.l.b16 %v1941
    %v2016 = vunpack.c.h.b16 %v1941
    %v2017 = vunpack.c.l.b16 %v1942
    %v2018 = vunpack.c.h.b16 %v1942
    %v2019 = vunpack.c.l.b16 %v1943
    %v2020 = vunpack.c.h.b16 %v1943
    %v2021 = vunpack.c.l.b16 %v1944
    %v2022 = vunpack.c.h.b16 %v1944
    %v2023 = vunpack.c.l.b16 %v1945
    %v2024 = vunpack.c.h.b16 %v1945
    %v2025 = vunpack.c.l.b16 %v1946
    %v2026 = vunpack.c.h.b16 %v1946
    %v2027 = vunpack.c.l.b16 %v1947
    %v2028 = vunpack.c.h.b16 %v1947
    %v2029 = vunpack.c.l.b16 %v1948
    %v2030 = vunpack.c.h.b16 %v1948
    %v2031 = vunpack.c.l.b16 %v1949
    %v2032 = vunpack.c.h.b16 %v1949
    %v2033 = vunpack.c.l.b16 %v1950
    %v2034 = vunpack.c.h.b16 %v1950
    %v2035 = vunpack.c.l.b16 %v1951
    %v2036 = vunpack.c.h.b16 %v1951
    %v2037 = vunpack.c.l.b16 %v1952
    %v2038 = vunpack.c.h.b16 %v1952
    %v2039 = vunpack.c.l.b16 %v1953
    %v2040 = vunpack.c.h.b16 %v1953
    %v2041 = vunpack.c.l.b16 %v1954
    %v2042 = vunpack.c.h.b16 %v1954
    %v2043 = vunpack.c.l.b16 %v1955
    %v2044 = vunpack.c.h.b16 %v1955
    %v2045 = vunpack.c.l.b16 %v1956
    %v2046 = vunpack.c.h.b16 %v1956
    %v2047 = vunpack.c.l.b16 %v1957
    %v2048 = vunpack.c.h.b16 %v1957
    %v2049 = vunpack.c.l.b16 %v1958
    %v2050 = vunpack.c.h.b16 %v1958
    %v2051 = vunpack.c.l.b16 %v1959
    %v2052 = vunpack.c.h.b16 %v1959
    %v2053 = vunpack.c.l.b16 %v1960
    %v2054 = vunpack.c.h.b16 %v1960
    %v2055 = vunpack.c.l.b16 %v1961
    %v2056 = vunpack.c.h.b16 %v1961
    %v2057 = vunpack.c.l.b16 %v1962
    %v2058 = vunpack.c.h.b16 %v1962
    %v2059 = vpack.c.b16 %v1999, %v1995
    %v2060 = vpack.c.b16 %v2000, %v1996
    %v2061 = vpack.c.b16 %v2001, %v1997
    %v2062 = vpack.c.b16 %v2002, %v1998
    %v2063 = vpack.c.b16 %v2007, %v2003
    %v2064 = vpack.c.b16 %v2008, %v2004
    %v2065 = vpack.c.b16 %v2009, %v2005
    %v2066 = vpack.c.b16 %v2010, %v2006
    %v2067 = vpack.c.b16 %v2015, %v2011
    %v2068 = vpack.c.b16 %v2016, %v2012
    %v2069 = vpack.c.b16 %v2017, %v2013
    %v2070 = vpack.c.b16 %v2018, %v2014
    %v2071 = vpack.c.b16 %v2023, %v2019
    %v2072 = vpack.c.b16 %v2024, %v2020
    %v2073 = vpack.c.b16 %v2025, %v2021
    %v2074 = vpack.c.b16 %v2026, %v2022
    %v2075 = vpack.c.b16 %v2031, %v2027
    %v2076 = vpack.c.b16 %v2032, %v2028
    %v2077 = vpack.c.b16 %v2033, %v2029
    %v2078 = vpack.c.b16 %v2034, %v2030
    %v2079 = vpack.c.b16 %v2039, %v2035
    %v2080 = vpack.c.b16 %v2040, %v2036
    %v2081 = vpack.c.b16 %v2041, %v2037
    %v2082 = vpack.c.b16 %v2042, %v2038
    %v2083 = vpack.c.b16 %v2047, %v2043
    %v2084 = vpack.c.b16 %v2048, %v2044
    %v2085 = vpack.c.b16 %v2049, %v2045
    %v2086 = vpack.c.b16 %v2050, %v2046
    %v2087 = vpack.c.b16 %v2055, %v2051
    %v2088 = vpack.c.b16 %v2056, %v2052
    %v2089 = vpack.c.b16 %v2057, %v2053
    %v2090 = vpack.c.b16 %v2058, %v2054
    %2123 = vmatprep.subr.bf16.mxu0 %v2060
    %2124 = vmatpush1.bf16.msra.mxu0 %v2059
    %2125 = vmatprep.subr.bf16.mxu0 %v2064
    %2126 = vmatpush1.bf16.msra.mxu0 %v2063
    %2127 = vmatprep.subr.bf16.mxu0 %v2068
    %2128 = vmatpush1.bf16.msra.mxu0 %v2067
    %2129 = vmatprep.subr.bf16.mxu0 %v2072
    %2130 = vmatpush1.bf16.msra.mxu0 %v2071
    %2131 = vmatprep.subr.bf16.mxu0 %v2076
    %2132 = vmatpush1.bf16.msra.mxu0 %v2075
    %2133 = vmatprep.subr.bf16.mxu0 %v2080
    %2134 = vmatpush1.bf16.msra.mxu0 %v2079
    %2135 = vmatprep.subr.bf16.mxu0 %v2084
    %2136 = vmatpush1.bf16.msra.mxu0 %v2083
    %2137 = vmatprep.subr.bf16.mxu0 %v2088
    %2138 = vmatpush1.bf16.msra.mxu0 %v2087
    %2139 = vmatprep.subr.bf16.mxu0 0
    %2140 = vmatpush1.bf16.msra.mxu0 0
    %2141 = vmatprep.subr.bf16.mxu0 0
    %2142 = vmatpush1.bf16.msra.mxu0 0
    %2143 = vmatprep.subr.bf16.mxu0 0
    %2144 = vmatpush1.bf16.msra.mxu0 0
    %2145 = vmatprep.subr.bf16.mxu0 0
    %2146 = vmatpush1.bf16.msra.mxu0 0
    %2147 = vmatprep.subr.bf16.mxu0 0
    %2148 = vmatpush1.bf16.msra.mxu0 0
    %2149 = vmatprep.subr.bf16.mxu0 0
    %2150 = vmatpush1.bf16.msra.mxu0 0
    %2151 = vmatprep.subr.bf16.mxu0 0
    %2152 = vmatpush1.bf16.msra.mxu0 0
    %2153 = vmatprep.subr.bf16.mxu0 0
    %2154 = vmatpush1.bf16.msra.mxu0 0
    %2155 = vmatprep.mubr.bf16.mxu0 0
    %2156 = vmatmul.mubr.bf16.gmra.mrb[0].mxu0 %v1905
    %v2157 = vpop.f32.mrb[0].mxu0
    %v2158 = vadd.f32 0.0, %v2157
    %v2159 = vpop.f32.mrb[0].mxu0
    %v2160 = vadd.f32 0.0, %v2159
    %v2161 = vpop.f32.mrb[0].mxu0
    %v2162 = vadd.f32 0.0, %v2161
    %v2163 = vpop.f32.mrb[0].mxu0
    %v2164 = vadd.f32 0.0, %v2163
    %2165 = vdwg.mxu0
    %2166 = vmatprep.subr.bf16.mxu0 %v2062
    %2167 = vmatpush1.bf16.msra.mxu0 %v2061
    %2168 = vmatprep.subr.bf16.mxu0 %v2066
    %2169 = vmatpush1.bf16.msra.mxu0 %v2065
    %2170 = vmatprep.subr.bf16.mxu0 %v2070
    %2171 = vmatpush1.bf16.msra.mxu0 %v2069
    %2172 = vmatprep.subr.bf16.mxu0 %v2074
    %2173 = vmatpush1.bf16.msra.mxu0 %v2073
    %2174 = vmatprep.subr.bf16.mxu0 %v2078
    %2175 = vmatpush1.bf16.msra.mxu0 %v2077
    %2176 = vmatprep.subr.bf16.mxu0 %v2082
    %2177 = vmatpush1.bf16.msra.mxu0 %v2081
    %2178 = vmatprep.subr.bf16.mxu0 %v2086
    %2179 = vmatpush1.bf16.msra.mxu0 %v2085
    %2180 = vmatprep.subr.bf16.mxu0 %v2090
    %2181 = vmatpush1.bf16.msra.mxu0 %v2089
    %2182 = vmatprep.subr.bf16.mxu0 0
    %2183 = vmatpush1.bf16.msra.mxu0 0
    %2184 = vmatprep.subr.bf16.mxu0 0
    %2185 = vmatpush1.bf16.msra.mxu0 0
    %2186 = vmatprep.subr.bf16.mxu0 0
    %2187 = vmatpush1.bf16.msra.mxu0 0
    %2188 = vmatprep.subr.bf16.mxu0 0
    %2189 = vmatpush1.bf16.msra.mxu0 0
    %2190 = vmatprep.subr.bf16.mxu0 0
    %2191 = vmatpush1.bf16.msra.mxu0 0
    %2192 = vmatprep.subr.bf16.mxu0 0
    %2193 = vmatpush1.bf16.msra.mxu0 0
    %2194 = vmatprep.subr.bf16.mxu0 0
    %2195 = vmatpush1.bf16.msra.mxu0 0
    %2196 = vmatprep.subr.bf16.mxu0 0
    %2197 = vmatpush1.bf16.msra.mxu0 0
    %2198 = vmatprep.mubr.bf16.mxu0 0
    %2199 = vmatmul.mubr.bf16.gmra.mrb[0].mxu0 %v1905
    %v2200 = vpop.f32.mrb[0].mxu0
    %v2201 = vadd.f32 0.0, %v2200
    %v2202 = vpop.f32.mrb[0].mxu0
    %v2203 = vadd.f32 0.0, %v2202
    %v2204 = vpop.f32.mrb[0].mxu0
    %v2205 = vadd.f32 0.0, %v2204
    %v2206 = vpop.f32.mrb[0].mxu0
    %v2207 = vadd.f32 0.0, %v2206
    %2208 = vdwg.mxu0
    %v2209 = vadd.f32 %v1923, %v2158
    %v2210 = vadd.f32 %v1924, %v2160
    %v2211 = vadd.f32 %v1925, %v2201
    %v2212 = vadd.f32 %v1926, %v2203
    %v2213 = vadd.f32 %v1927, %v2162
    %v2214 = vadd.f32 %v1928, %v2164
    %v2215 = vadd.f32 %v1929, %v2205
    %v2216 = vadd.f32 %v1930, %v2207
    %v2217 = vxor.u32 %v2209, 2147483648
    %v2218 = vxor.u32 %v2213, 2147483648
    %v2219 = vmul.f32 %v2217, 1.442695
    %v2220 = vpow.pop %v2219
    %v2221 = vmul.f32 %v2218, 1.442695
    %v2222 = vpow.pop %v2221
    %v2223 = vadd.f32 %v2220, 1.0
    %v2224 = vadd.f32 %v2222, 1.0
    %v2225 = vrcp.pop %v2223
    %v2226 = vmul.f32 1.0, %v2225
    %v2227 = vrcp.pop %v2224
    %v2228 = vmul.f32 1.0, %v2227
    %v2229 = vxor.u32 %v2210, 2147483648
    %v2230 = vxor.u32 %v2214, 2147483648
    %v2231 = vmul.f32 %v2229, 1.442695
    %v2232 = vpow.pop %v2231
    %v2233 = vmul.f32 %v2230, 1.442695
    %v2234 = vpow.pop %v2233
    %v2235 = vadd.f32 %v2232, 1.0
    %v2236 = vadd.f32 %v2234, 1.0
    %v2237 = vrcp.pop %v2235
    %v2238 = vmul.f32 1.0, %v2237
    %v2239 = vrcp.pop %v2236
    %v2240 = vmul.f32 1.0, %v2239
    %v2241 = vtanh.pop %v2211
    %v2242 = vtanh.pop %v2215
    %v2243 = vxor.u32 %v2212, 2147483648
    %v2244 = vxor.u32 %v2216, 2147483648
    %v2245 = vmul.f32 %v2243, 1.442695
    %v2246 = vpow.pop %v2245
    %v2247 = vmul.f32 %v2244, 1.442695
    %v2248 = vpow.pop %v2247
    %v2249 = vadd.f32 %v2246, 1.0
    %v2250 = vadd.f32 %v2248, 1.0
    %v2251 = vrcp.pop %v2249
    %v2252 = vmul.f32 1.0, %v2251
    %v2253 = vrcp.pop %v2250
    %v2254 = vmul.f32 1.0, %v2253
    %v2255 = vmul.f32 %v2238, %v1899
    %v2256 = vmul.f32 %v2240, %v1900
    %v2257 = vmul.f32 %v2226, %v2241
    %v2258 = vmul.f32 %v2228, %v2242
    %v2259 = vadd.f32 %v2255, %v2257
    %v2260 = vadd.f32 %v2256, %v2258
    %v2261 = vtanh.pop %v2259
    %v2262 = vtanh.pop %v2260
    %v2263 = vmul.f32 %v2252, %v2261
    %v2264 = vmul.f32 %v2254, %v2262
    %v2265 = vpack.c.bf16 %v2264, %v2263
    %v2267 = vunpack.c.l.b16 %v2265
    %v2268 = vunpack.c.h.b16 %v2265
    %v2269 = vpack.c.b16 %v2267, %v2267
    %v2270 = vpack.c.b16 %v2268, %v2268
    %s2273 = scalar_lea.vmem [#allocation8], 32
    %2274 = vst [vmem:[%s2273] sm:$0xf] %v2269
    %2275 = vst [vmem:[%s2273 + $0x4] sm:$0xf] %v2270
    %s2276 = smul.u32 5, 4
    %s2277 = smul.addr %s2276, 8
    %s2278 = scalar_lea.vmem [#allocation2], %s2277
    %v2279 = vld [vmem:[%s2278] sm:$0xff]
    %v2280 = vld [vmem:[%s2278 + $0x8] sm:$0xff]
    %v2281 = vld [vmem:[%s2278 + $0x10] sm:$0xff]
    %v2282 = vld [vmem:[%s2278 + $0x18] sm:$0xff]
    %v2283 = vunpack.c.l.bf16 %v2279
    %v2284 = vunpack.c.l.bf16 %v2280
    %v2285 = vunpack.c.l.bf16 %v2281
    %v2286 = vunpack.c.l.bf16 %v2282
    %v2287 = vunpack.c.h.bf16 %v2279
    %v2288 = vunpack.c.h.bf16 %v2280
    %v2289 = vunpack.c.h.bf16 %v2281
    %v2290 = vunpack.c.h.bf16 %v2282
    %v2291 = vld [vmem:[#allocation5] sm:$0xff]
    %v2292 = vld [vmem:[#allocation5 + $0x8] sm:$0xff]
    %v2293 = vld [vmem:[#allocation5 + $0x10] sm:$0xff]
    %v2294 = vld [vmem:[#allocation5 + $0x18] sm:$0xff]
    %v2295 = vld [vmem:[#allocation5 + $0x20] sm:$0xff]
    %v2296 = vld [vmem:[#allocation5 + $0x28] sm:$0xff]
    %v2297 = vld [vmem:[#allocation5 + $0x30] sm:$0xff]
    %v2298 = vld [vmem:[#allocation5 + $0x38] sm:$0xff]
    %v2299 = vld [vmem:[#allocation5 + $0x40] sm:$0xff]
    %v2300 = vld [vmem:[#allocation5 + $0x48] sm:$0xff]
    %v2301 = vld [vmem:[#allocation5 + $0x50] sm:$0xff]
    %v2302 = vld [vmem:[#allocation5 + $0x58] sm:$0xff]
    %v2303 = vld [vmem:[#allocation5 + $0x60] sm:$0xff]
    %v2304 = vld [vmem:[#allocation5 + $0x68] sm:$0xff]
    %v2305 = vld [vmem:[#allocation5 + $0x70] sm:$0xff]
    %v2306 = vld [vmem:[#allocation5 + $0x78] sm:$0xff]
    %v2307 = vld [vmem:[#allocation5 + $0x80] sm:$0xff]
    %v2308 = vld [vmem:[#allocation5 + $0x88] sm:$0xff]
    %v2309 = vld [vmem:[#allocation5 + $0x90] sm:$0xff]
    %v2310 = vld [vmem:[#allocation5 + $0x98] sm:$0xff]
    %v2311 = vld [vmem:[#allocation5 + $0xa0] sm:$0xff]
    %v2312 = vld [vmem:[#allocation5 + $0xa8] sm:$0xff]
    %v2313 = vld [vmem:[#allocation5 + $0xb0] sm:$0xff]
    %v2314 = vld [vmem:[#allocation5 + $0xb8] sm:$0xff]
    %v2315 = vld [vmem:[#allocation5 + $0xc0] sm:$0xff]
    %v2316 = vld [vmem:[#allocation5 + $0xc8] sm:$0xff]
    %v2317 = vld [vmem:[#allocation5 + $0xd0] sm:$0xff]
    %v2318 = vld [vmem:[#allocation5 + $0xd8] sm:$0xff]
    %v2319 = vld [vmem:[#allocation5 + $0xe0] sm:$0xff]
    %v2320 = vld [vmem:[#allocation5 + $0xe8] sm:$0xff]
    %v2321 = vld [vmem:[#allocation5 + $0xf0] sm:$0xff]
    %v2322 = vld [vmem:[#allocation5 + $0xf8] sm:$0xff]
    %v2355 = vunpack.c.l.b16 %v2291
    %v2356 = vunpack.c.h.b16 %v2291
    %v2357 = vunpack.c.l.b16 %v2292
    %v2358 = vunpack.c.h.b16 %v2292
    %v2359 = vunpack.c.l.b16 %v2293
    %v2360 = vunpack.c.h.b16 %v2293
    %v2361 = vunpack.c.l.b16 %v2294
    %v2362 = vunpack.c.h.b16 %v2294
    %v2363 = vunpack.c.l.b16 %v2295
    %v2364 = vunpack.c.h.b16 %v2295
    %v2365 = vunpack.c.l.b16 %v2296
    %v2366 = vunpack.c.h.b16 %v2296
    %v2367 = vunpack.c.l.b16 %v2297
    %v2368 = vunpack.c.h.b16 %v2297
    %v2369 = vunpack.c.l.b16 %v2298
    %v2370 = vunpack.c.h.b16 %v2298
    %v2371 = vunpack.c.l.b16 %v2299
    %v2372 = vunpack.c.h.b16 %v2299
    %v2373 = vunpack.c.l.b16 %v2300
    %v2374 = vunpack.c.h.b16 %v2300
    %v2375 = vunpack.c.l.b16 %v2301
    %v2376 = vunpack.c.h.b16 %v2301
    %v2377 = vunpack.c.l.b16 %v2302
    %v2378 = vunpack.c.h.b16 %v2302
    %v2379 = vunpack.c.l.b16 %v2303
    %v2380 = vunpack.c.h.b16 %v2303
    %v2381 = vunpack.c.l.b16 %v2304
    %v2382 = vunpack.c.h.b16 %v2304
    %v2383 = vunpack.c.l.b16 %v2305
    %v2384 = vunpack.c.h.b16 %v2305
    %v2385 = vunpack.c.l.b16 %v2306
    %v2386 = vunpack.c.h.b16 %v2306
    %v2387 = vunpack.c.l.b16 %v2307
    %v2388 = vunpack.c.h.b16 %v2307
    %v2389 = vunpack.c.l.b16 %v2308
    %v2390 = vunpack.c.h.b16 %v2308
    %v2391 = vunpack.c.l.b16 %v2309
    %v2392 = vunpack.c.h.b16 %v2309
    %v2393 = vunpack.c.l.b16 %v2310
    %v2394 = vunpack.c.h.b16 %v2310
    %v2395 = vunpack.c.l.b16 %v2311
    %v2396 = vunpack.c.h.b16 %v2311
    %v2397 = vunpack.c.l.b16 %v2312
    %v2398 = vunpack.c.h.b16 %v2312
    %v2399 = vunpack.c.l.b16 %v2313
    %v2400 = vunpack.c.h.b16 %v2313
    %v2401 = vunpack.c.l.b16 %v2314
    %v2402 = vunpack.c.h.b16 %v2314
    %v2403 = vunpack.c.l.b16 %v2315
    %v2404 = vunpack.c.h.b16 %v2315
    %v2405 = vunpack.c.l.b16 %v2316
    %v2406 = vunpack.c.h.b16 %v2316
    %v2407 = vunpack.c.l.b16 %v2317
    %v2408 = vunpack.c.h.b16 %v2317
    %v2409 = vunpack.c.l.b16 %v2318
    %v2410 = vunpack.c.h.b16 %v2318
    %v2411 = vunpack.c.l.b16 %v2319
    %v2412 = vunpack.c.h.b16 %v2319
    %v2413 = vunpack.c.l.b16 %v2320
    %v2414 = vunpack.c.h.b16 %v2320
    %v2415 = vunpack.c.l.b16 %v2321
    %v2416 = vunpack.c.h.b16 %v2321
    %v2417 = vunpack.c.l.b16 %v2322
    %v2418 = vunpack.c.h.b16 %v2322
    %v2419 = vpack.c.b16 %v2359, %v2355
    %v2420 = vpack.c.b16 %v2360, %v2356
    %v2421 = vpack.c.b16 %v2361, %v2357
    %v2422 = vpack.c.b16 %v2362, %v2358
    %v2423 = vpack.c.b16 %v2367, %v2363
    %v2424 = vpack.c.b16 %v2368, %v2364
    %v2425 = vpack.c.b16 %v2369, %v2365
    %v2426 = vpack.c.b16 %v2370, %v2366
    %v2427 = vpack.c.b16 %v2375, %v2371
    %v2428 = vpack.c.b16 %v2376, %v2372
    %v2429 = vpack.c.b16 %v2377, %v2373
    %v2430 = vpack.c.b16 %v2378, %v2374
    %v2431 = vpack.c.b16 %v2383, %v2379
    %v2432 = vpack.c.b16 %v2384, %v2380
    %v2433 = vpack.c.b16 %v2385, %v2381
    %v2434 = vpack.c.b16 %v2386, %v2382
    %v2435 = vpack.c.b16 %v2391, %v2387
    %v2436 = vpack.c.b16 %v2392, %v2388
    %v2437 = vpack.c.b16 %v2393, %v2389
    %v2438 = vpack.c.b16 %v2394, %v2390
    %v2439 = vpack.c.b16 %v2399, %v2395
    %v2440 = vpack.c.b16 %v2400, %v2396
    %v2441 = vpack.c.b16 %v2401, %v2397
    %v2442 = vpack.c.b16 %v2402, %v2398
    %v2443 = vpack.c.b16 %v2407, %v2403
    %v2444 = vpack.c.b16 %v2408, %v2404
    %v2445 = vpack.c.b16 %v2409, %v2405
    %v2446 = vpack.c.b16 %v2410, %v2406
    %v2447 = vpack.c.b16 %v2415, %v2411
    %v2448 = vpack.c.b16 %v2416, %v2412
    %v2449 = vpack.c.b16 %v2417, %v2413
    %v2450 = vpack.c.b16 %v2418, %v2414
    %2483 = vmatprep.subr.bf16.mxu0 %v2420
    %2484 = vmatpush1.bf16.msra.mxu0 %v2419
    %2485 = vmatprep.subr.bf16.mxu0 %v2424
    %2486 = vmatpush1.bf16.msra.mxu0 %v2423
    %2487 = vmatprep.subr.bf16.mxu0 %v2428
    %2488 = vmatpush1.bf16.msra.mxu0 %v2427
    %2489 = vmatprep.subr.bf16.mxu0 %v2432
    %2490 = vmatpush1.bf16.msra.mxu0 %v2431
    %2491 = vmatprep.subr.bf16.mxu0 %v2436
    %2492 = vmatpush1.bf16.msra.mxu0 %v2435
    %2493 = vmatprep.subr.bf16.mxu0 %v2440
    %2494 = vmatpush1.bf16.msra.mxu0 %v2439
    %2495 = vmatprep.subr.bf16.mxu0 %v2444
    %2496 = vmatpush1.bf16.msra.mxu0 %v2443
    %2497 = vmatprep.subr.bf16.mxu0 %v2448
    %2498 = vmatpush1.bf16.msra.mxu0 %v2447
    %2499 = vmatprep.subr.bf16.mxu0 0
    %2500 = vmatpush1.bf16.msra.mxu0 0
    %2501 = vmatprep.subr.bf16.mxu0 0
    %2502 = vmatpush1.bf16.msra.mxu0 0
    %2503 = vmatprep.subr.bf16.mxu0 0
    %2504 = vmatpush1.bf16.msra.mxu0 0
    %2505 = vmatprep.subr.bf16.mxu0 0
    %2506 = vmatpush1.bf16.msra.mxu0 0
    %2507 = vmatprep.subr.bf16.mxu0 0
    %2508 = vmatpush1.bf16.msra.mxu0 0
    %2509 = vmatprep.subr.bf16.mxu0 0
    %2510 = vmatpush1.bf16.msra.mxu0 0
    %2511 = vmatprep.subr.bf16.mxu0 0
    %2512 = vmatpush1.bf16.msra.mxu0 0
    %2513 = vmatprep.subr.bf16.mxu0 0
    %2514 = vmatpush1.bf16.msra.mxu0 0
    %2515 = vmatprep.mubr.bf16.mxu0 0
    %2516 = vmatmul.mubr.bf16.gmra.mrb[0].mxu0 %v2265
    %v2517 = vpop.f32.mrb[0].mxu0
    %v2518 = vadd.f32 0.0, %v2517
    %v2519 = vpop.f32.mrb[0].mxu0
    %v2520 = vadd.f32 0.0, %v2519
    %v2521 = vpop.f32.mrb[0].mxu0
    %v2522 = vadd.f32 0.0, %v2521
    %v2523 = vpop.f32.mrb[0].mxu0
    %v2524 = vadd.f32 0.0, %v2523
    %2525 = vdwg.mxu0
    %2526 = vmatprep.subr.bf16.mxu0 %v2422
    %2527 = vmatpush1.bf16.msra.mxu0 %v2421
    %2528 = vmatprep.subr.bf16.mxu0 %v2426
    %2529 = vmatpush1.bf16.msra.mxu0 %v2425
    %2530 = vmatprep.subr.bf16.mxu0 %v2430
    %2531 = vmatpush1.bf16.msra.mxu0 %v2429
    %2532 = vmatprep.subr.bf16.mxu0 %v2434
    %2533 = vmatpush1.bf16.msra.mxu0 %v2433
    %2534 = vmatprep.subr.bf16.mxu0 %v2438
    %2535 = vmatpush1.bf16.msra.mxu0 %v2437
    %2536 = vmatprep.subr.bf16.mxu0 %v2442
    %2537 = vmatpush1.bf16.msra.mxu0 %v2441
    %2538 = vmatprep.subr.bf16.mxu0 %v2446
    %2539 = vmatpush1.bf16.msra.mxu0 %v2445
    %2540 = vmatprep.subr.bf16.mxu0 %v2450
    %2541 = vmatpush1.bf16.msra.mxu0 %v2449
    %2542 = vmatprep.subr.bf16.mxu0 0
    %2543 = vmatpush1.bf16.msra.mxu0 0
    %2544 = vmatprep.subr.bf16.mxu0 0
    %2545 = vmatpush1.bf16.msra.mxu0 0
    %2546 = vmatprep.subr.bf16.mxu0 0
    %2547 = vmatpush1.bf16.msra.mxu0 0
    %2548 = vmatprep.subr.bf16.mxu0 0
    %2549 = vmatpush1.bf16.msra.mxu0 0
    %2550 = vmatprep.subr.bf16.mxu0 0
    %2551 = vmatpush1.bf16.msra.mxu0 0
    %2552 = vmatprep.subr.bf16.mxu0 0
    %2553 = vmatpush1.bf16.msra.mxu0 0
    %2554 = vmatprep.subr.bf16.mxu0 0
    %2555 = vmatpush1.bf16.msra.mxu0 0
    %2556 = vmatprep.subr.bf16.mxu0 0
    %2557 = vmatpush1.bf16.msra.mxu0 0
    %2558 = vmatprep.mubr.bf16.mxu0 0
    %2559 = vmatmul.mubr.bf16.gmra.mrb[0].mxu0 %v2265
    %v2560 = vpop.f32.mrb[0].mxu0
    %v2561 = vadd.f32 0.0, %v2560
    %v2562 = vpop.f32.mrb[0].mxu0
    %v2563 = vadd.f32 0.0, %v2562
    %v2564 = vpop.f32.mrb[0].mxu0
    %v2565 = vadd.f32 0.0, %v2564
    %v2566 = vpop.f32.mrb[0].mxu0
    %v2567 = vadd.f32 0.0, %v2566
    %2568 = vdwg.mxu0
    %v2569 = vadd.f32 %v2283, %v2518
    %v2570 = vadd.f32 %v2284, %v2520
    %v2571 = vadd.f32 %v2285, %v2561
    %v2572 = vadd.f32 %v2286, %v2563
    %v2573 = vadd.f32 %v2287, %v2522
    %v2574 = vadd.f32 %v2288, %v2524
    %v2575 = vadd.f32 %v2289, %v2565
    %v2576 = vadd.f32 %v2290, %v2567
    %v2577 = vxor.u32 %v2569, 2147483648
    %v2578 = vxor.u32 %v2573, 2147483648
    %v2579 = vmul.f32 %v2577, 1.442695
    %v2580 = vpow.pop %v2579
    %v2581 = vmul.f32 %v2578, 1.442695
    %v2582 = vpow.pop %v2581
    %v2583 = vadd.f32 %v2580, 1.0
    %v2584 = vadd.f32 %v2582, 1.0
    %v2585 = vrcp.pop %v2583
    %v2586 = vmul.f32 1.0, %v2585
    %v2587 = vrcp.pop %v2584
    %v2588 = vmul.f32 1.0, %v2587
    %v2589 = vxor.u32 %v2570, 2147483648
    %v2590 = vxor.u32 %v2574, 2147483648
    %v2591 = vmul.f32 %v2589, 1.442695
    %v2592 = vpow.pop %v2591
    %v2593 = vmul.f32 %v2590, 1.442695
    %v2594 = vpow.pop %v2593
    %v2595 = vadd.f32 %v2592, 1.0
    %v2596 = vadd.f32 %v2594, 1.0
    %v2597 = vrcp.pop %v2595
    %v2598 = vmul.f32 1.0, %v2597
    %v2599 = vrcp.pop %v2596
    %v2600 = vmul.f32 1.0, %v2599
    %v2601 = vtanh.pop %v2571
    %v2602 = vtanh.pop %v2575
    %v2603 = vxor.u32 %v2572, 2147483648
    %v2604 = vxor.u32 %v2576, 2147483648
    %v2605 = vmul.f32 %v2603, 1.442695
    %v2606 = vpow.pop %v2605
    %v2607 = vmul.f32 %v2604, 1.442695
    %v2608 = vpow.pop %v2607
    %v2609 = vadd.f32 %v2606, 1.0
    %v2610 = vadd.f32 %v2608, 1.0
    %v2611 = vrcp.pop %v2609
    %v2612 = vmul.f32 1.0, %v2611
    %v2613 = vrcp.pop %v2610
    %v2614 = vmul.f32 1.0, %v2613
    %v2615 = vmul.f32 %v2598, %v2259
    %v2616 = vmul.f32 %v2600, %v2260
    %v2617 = vmul.f32 %v2586, %v2601
    %v2618 = vmul.f32 %v2588, %v2602
    %v2619 = vadd.f32 %v2615, %v2617
    %v2620 = vadd.f32 %v2616, %v2618
    %v2621 = vtanh.pop %v2619
    %v2622 = vtanh.pop %v2620
    %v2623 = vmul.f32 %v2612, %v2621
    %v2624 = vmul.f32 %v2614, %v2622
    %v2625 = vpack.c.bf16 %v2624, %v2623
    %v2627 = vunpack.c.l.b16 %v2625
    %v2628 = vunpack.c.h.b16 %v2625
    %v2629 = vpack.c.b16 %v2627, %v2627
    %v2630 = vpack.c.b16 %v2628, %v2628
    %s2633 = scalar_lea.vmem [#allocation8], 40
    %2634 = vst [vmem:[%s2633] sm:$0xf] %v2629
    %2635 = vst [vmem:[%s2633 + $0x4] sm:$0xf] %v2630
    %s2636 = smul.u32 6, 4
    %s2637 = smul.addr %s2636, 8
    %s2638 = scalar_lea.vmem [#allocation2], %s2637
    %v2639 = vld [vmem:[%s2638] sm:$0xff]
    %v2640 = vld [vmem:[%s2638 + $0x8] sm:$0xff]
    %v2641 = vld [vmem:[%s2638 + $0x10] sm:$0xff]
    %v2642 = vld [vmem:[%s2638 + $0x18] sm:$0xff]
    %v2643 = vunpack.c.l.bf16 %v2639
    %v2644 = vunpack.c.l.bf16 %v2640
    %v2645 = vunpack.c.l.bf16 %v2641
    %v2646 = vunpack.c.l.bf16 %v2642
    %v2647 = vunpack.c.h.bf16 %v2639
    %v2648 = vunpack.c.h.bf16 %v2640
    %v2649 = vunpack.c.h.bf16 %v2641
    %v2650 = vunpack.c.h.bf16 %v2642
    %v2651 = vld [vmem:[#allocation5] sm:$0xff]
    %v2652 = vld [vmem:[#allocation5 + $0x8] sm:$0xff]
    %v2653 = vld [vmem:[#allocation5 + $0x10] sm:$0xff]
    %v2654 = vld [vmem:[#allocation5 + $0x18] sm:$0xff]
    %v2655 = vld [vmem:[#allocation5 + $0x20] sm:$0xff]
    %v2656 = vld [vmem:[#allocation5 + $0x28] sm:$0xff]
    %v2657 = vld [vmem:[#allocation5 + $0x30] sm:$0xff]
    %v2658 = vld [vmem:[#allocation5 + $0x38] sm:$0xff]
    %v2659 = vld [vmem:[#allocation5 + $0x40] sm:$0xff]
    %v2660 = vld [vmem:[#allocation5 + $0x48] sm:$0xff]
    %v2661 = vld [vmem:[#allocation5 + $0x50] sm:$0xff]
    %v2662 = vld [vmem:[#allocation5 + $0x58] sm:$0xff]
    %v2663 = vld [vmem:[#allocation5 + $0x60] sm:$0xff]
    %v2664 = vld [vmem:[#allocation5 + $0x68] sm:$0xff]
    %v2665 = vld [vmem:[#allocation5 + $0x70] sm:$0xff]
    %v2666 = vld [vmem:[#allocation5 + $0x78] sm:$0xff]
    %v2667 = vld [vmem:[#allocation5 + $0x80] sm:$0xff]
    %v2668 = vld [vmem:[#allocation5 + $0x88] sm:$0xff]
    %v2669 = vld [vmem:[#allocation5 + $0x90] sm:$0xff]
    %v2670 = vld [vmem:[#allocation5 + $0x98] sm:$0xff]
    %v2671 = vld [vmem:[#allocation5 + $0xa0] sm:$0xff]
    %v2672 = vld [vmem:[#allocation5 + $0xa8] sm:$0xff]
    %v2673 = vld [vmem:[#allocation5 + $0xb0] sm:$0xff]
    %v2674 = vld [vmem:[#allocation5 + $0xb8] sm:$0xff]
    %v2675 = vld [vmem:[#allocation5 + $0xc0] sm:$0xff]
    %v2676 = vld [vmem:[#allocation5 + $0xc8] sm:$0xff]
    %v2677 = vld [vmem:[#allocation5 + $0xd0] sm:$0xff]
    %v2678 = vld [vmem:[#allocation5 + $0xd8] sm:$0xff]
    %v2679 = vld [vmem:[#allocation5 + $0xe0] sm:$0xff]
    %v2680 = vld [vmem:[#allocation5 + $0xe8] sm:$0xff]
    %v2681 = vld [vmem:[#allocation5 + $0xf0] sm:$0xff]
    %v2682 = vld [vmem:[#allocation5 + $0xf8] sm:$0xff]
    %v2715 = vunpack.c.l.b16 %v2651
    %v2716 = vunpack.c.h.b16 %v2651
    %v2717 = vunpack.c.l.b16 %v2652
    %v2718 = vunpack.c.h.b16 %v2652
    %v2719 = vunpack.c.l.b16 %v2653
    %v2720 = vunpack.c.h.b16 %v2653
    %v2721 = vunpack.c.l.b16 %v2654
    %v2722 = vunpack.c.h.b16 %v2654
    %v2723 = vunpack.c.l.b16 %v2655
    %v2724 = vunpack.c.h.b16 %v2655
    %v2725 = vunpack.c.l.b16 %v2656
    %v2726 = vunpack.c.h.b16 %v2656
    %v2727 = vunpack.c.l.b16 %v2657
    %v2728 = vunpack.c.h.b16 %v2657
    %v2729 = vunpack.c.l.b16 %v2658
    %v2730 = vunpack.c.h.b16 %v2658
    %v2731 = vunpack.c.l.b16 %v2659
    %v2732 = vunpack.c.h.b16 %v2659
    %v2733 = vunpack.c.l.b16 %v2660
    %v2734 = vunpack.c.h.b16 %v2660
    %v2735 = vunpack.c.l.b16 %v2661
    %v2736 = vunpack.c.h.b16 %v2661
    %v2737 = vunpack.c.l.b16 %v2662
    %v2738 = vunpack.c.h.b16 %v2662
    %v2739 = vunpack.c.l.b16 %v2663
    %v2740 = vunpack.c.h.b16 %v2663
    %v2741 = vunpack.c.l.b16 %v2664
    %v2742 = vunpack.c.h.b16 %v2664
    %v2743 = vunpack.c.l.b16 %v2665
    %v2744 = vunpack.c.h.b16 %v2665
    %v2745 = vunpack.c.l.b16 %v2666
    %v2746 = vunpack.c.h.b16 %v2666
    %v2747 = vunpack.c.l.b16 %v2667
    %v2748 = vunpack.c.h.b16 %v2667
    %v2749 = vunpack.c.l.b16 %v2668
    %v2750 = vunpack.c.h.b16 %v2668
    %v2751 = vunpack.c.l.b16 %v2669
    %v2752 = vunpack.c.h.b16 %v2669
    %v2753 = vunpack.c.l.b16 %v2670
    %v2754 = vunpack.c.h.b16 %v2670
    %v2755 = vunpack.c.l.b16 %v2671
    %v2756 = vunpack.c.h.b16 %v2671
    %v2757 = vunpack.c.l.b16 %v2672
    %v2758 = vunpack.c.h.b16 %v2672
    %v2759 = vunpack.c.l.b16 %v2673
    %v2760 = vunpack.c.h.b16 %v2673
    %v2761 = vunpack.c.l.b16 %v2674
    %v2762 = vunpack.c.h.b16 %v2674
    %v2763 = vunpack.c.l.b16 %v2675
    %v2764 = vunpack.c.h.b16 %v2675
    %v2765 = vunpack.c.l.b16 %v2676
    %v2766 = vunpack.c.h.b16 %v2676
    %v2767 = vunpack.c.l.b16 %v2677
    %v2768 = vunpack.c.h.b16 %v2677
    %v2769 = vunpack.c.l.b16 %v2678
    %v2770 = vunpack.c.h.b16 %v2678
    %v2771 = vunpack.c.l.b16 %v2679
    %v2772 = vunpack.c.h.b16 %v2679
    %v2773 = vunpack.c.l.b16 %v2680
    %v2774 = vunpack.c.h.b16 %v2680
    %v2775 = vunpack.c.l.b16 %v2681
    %v2776 = vunpack.c.h.b16 %v2681
    %v2777 = vunpack.c.l.b16 %v2682
    %v2778 = vunpack.c.h.b16 %v2682
    %v2779 = vpack.c.b16 %v2719, %v2715
    %v2780 = vpack.c.b16 %v2720, %v2716
    %v2781 = vpack.c.b16 %v2721, %v2717
    %v2782 = vpack.c.b16 %v2722, %v2718
    %v2783 = vpack.c.b16 %v2727, %v2723
    %v2784 = vpack.c.b16 %v2728, %v2724
    %v2785 = vpack.c.b16 %v2729, %v2725
    %v2786 = vpack.c.b16 %v2730, %v2726
    %v2787 = vpack.c.b16 %v2735, %v2731
    %v2788 = vpack.c.b16 %v2736, %v2732
    %v2789 = vpack.c.b16 %v2737, %v2733
    %v2790 = vpack.c.b16 %v2738, %v2734
    %v2791 = vpack.c.b16 %v2743, %v2739
    %v2792 = vpack.c.b16 %v2744, %v2740
    %v2793 = vpack.c.b16 %v2745, %v2741
    %v2794 = vpack.c.b16 %v2746, %v2742
    %v2795 = vpack.c.b16 %v2751, %v2747
    %v2796 = vpack.c.b16 %v2752, %v2748
    %v2797 = vpack.c.b16 %v2753, %v2749
    %v2798 = vpack.c.b16 %v2754, %v2750
    %v2799 = vpack.c.b16 %v2759, %v2755
    %v2800 = vpack.c.b16 %v2760, %v2756
    %v2801 = vpack.c.b16 %v2761, %v2757
    %v2802 = vpack.c.b16 %v2762, %v2758
    %v2803 = vpack.c.b16 %v2767, %v2763
    %v2804 = vpack.c.b16 %v2768, %v2764
    %v2805 = vpack.c.b16 %v2769, %v2765
    %v2806 = vpack.c.b16 %v2770, %v2766
    %v2807 = vpack.c.b16 %v2775, %v2771
    %v2808 = vpack.c.b16 %v2776, %v2772
    %v2809 = vpack.c.b16 %v2777, %v2773
    %v2810 = vpack.c.b16 %v2778, %v2774
    %2843 = vmatprep.subr.bf16.mxu0 %v2780
    %2844 = vmatpush1.bf16.msra.mxu0 %v2779
    %2845 = vmatprep.subr.bf16.mxu0 %v2784
    %2846 = vmatpush1.bf16.msra.mxu0 %v2783
    %2847 = vmatprep.subr.bf16.mxu0 %v2788
    %2848 = vmatpush1.bf16.msra.mxu0 %v2787
    %2849 = vmatprep.subr.bf16.mxu0 %v2792
    %2850 = vmatpush1.bf16.msra.mxu0 %v2791
    %2851 = vmatprep.subr.bf16.mxu0 %v2796
    %2852 = vmatpush1.bf16.msra.mxu0 %v2795
    %2853 = vmatprep.subr.bf16.mxu0 %v2800
    %2854 = vmatpush1.bf16.msra.mxu0 %v2799
    %2855 = vmatprep.subr.bf16.mxu0 %v2804
    %2856 = vmatpush1.bf16.msra.mxu0 %v2803
    %2857 = vmatprep.subr.bf16.mxu0 %v2808
    %2858 = vmatpush1.bf16.msra.mxu0 %v2807
    %2859 = vmatprep.subr.bf16.mxu0 0
    %2860 = vmatpush1.bf16.msra.mxu0 0
    %2861 = vmatprep.subr.bf16.mxu0 0
    %2862 = vmatpush1.bf16.msra.mxu0 0
    %2863 = vmatprep.subr.bf16.mxu0 0
    %2864 = vmatpush1.bf16.msra.mxu0 0
    %2865 = vmatprep.subr.bf16.mxu0 0
    %2866 = vmatpush1.bf16.msra.mxu0 0
    %2867 = vmatprep.subr.bf16.mxu0 0
    %2868 = vmatpush1.bf16.msra.mxu0 0
    %2869 = vmatprep.subr.bf16.mxu0 0
    %2870 = vmatpush1.bf16.msra.mxu0 0
    %2871 = vmatprep.subr.bf16.mxu0 0
    %2872 = vmatpush1.bf16.msra.mxu0 0
    %2873 = vmatprep.subr.bf16.mxu0 0
    %2874 = vmatpush1.bf16.msra.mxu0 0
    %2875 = vmatprep.mubr.bf16.mxu0 0
    %2876 = vmatmul.mubr.bf16.gmra.mrb[0].mxu0 %v2625
    %v2877 = vpop.f32.mrb[0].mxu0
    %v2878 = vadd.f32 0.0, %v2877
    %v2879 = vpop.f32.mrb[0].mxu0
    %v2880 = vadd.f32 0.0, %v2879
    %v2881 = vpop.f32.mrb[0].mxu0
    %v2882 = vadd.f32 0.0, %v2881
    %v2883 = vpop.f32.mrb[0].mxu0
    %v2884 = vadd.f32 0.0, %v2883
    %2885 = vdwg.mxu0
    %2886 = vmatprep.subr.bf16.mxu0 %v2782
    %2887 = vmatpush1.bf16.msra.mxu0 %v2781
    %2888 = vmatprep.subr.bf16.mxu0 %v2786
    %2889 = vmatpush1.bf16.msra.mxu0 %v2785
    %2890 = vmatprep.subr.bf16.mxu0 %v2790
    %2891 = vmatpush1.bf16.msra.mxu0 %v2789
    %2892 = vmatprep.subr.bf16.mxu0 %v2794
    %2893 = vmatpush1.bf16.msra.mxu0 %v2793
    %2894 = vmatprep.subr.bf16.mxu0 %v2798
    %2895 = vmatpush1.bf16.msra.mxu0 %v2797
    %2896 = vmatprep.subr.bf16.mxu0 %v2802
    %2897 = vmatpush1.bf16.msra.mxu0 %v2801
    %2898 = vmatprep.subr.bf16.mxu0 %v2806
    %2899 = vmatpush1.bf16.msra.mxu0 %v2805
    %2900 = vmatprep.subr.bf16.mxu0 %v2810
    %2901 = vmatpush1.bf16.msra.mxu0 %v2809
    %2902 = vmatprep.subr.bf16.mxu0 0
    %2903 = vmatpush1.bf16.msra.mxu0 0
    %2904 = vmatprep.subr.bf16.mxu0 0
    %2905 = vmatpush1.bf16.msra.mxu0 0
    %2906 = vmatprep.subr.bf16.mxu0 0
    %2907 = vmatpush1.bf16.msra.mxu0 0
    %2908 = vmatprep.subr.bf16.mxu0 0
    %2909 = vmatpush1.bf16.msra.mxu0 0
    %2910 = vmatprep.subr.bf16.mxu0 0
    %2911 = vmatpush1.bf16.msra.mxu0 0
    %2912 = vmatprep.subr.bf16.mxu0 0
    %2913 = vmatpush1.bf16.msra.mxu0 0
    %2914 = vmatprep.subr.bf16.mxu0 0
    %2915 = vmatpush1.bf16.msra.mxu0 0
    %2916 = vmatprep.subr.bf16.mxu0 0
    %2917 = vmatpush1.bf16.msra.mxu0 0
    %2918 = vmatprep.mubr.bf16.mxu0 0
    %2919 = vmatmul.mubr.bf16.gmra.mrb[0].mxu0 %v2625
    %v2920 = vpop.f32.mrb[0].mxu0
    %v2921 = vadd.f32 0.0, %v2920
    %v2922 = vpop.f32.mrb[0].mxu0
    %v2923 = vadd.f32 0.0, %v2922
    %v2924 = vpop.f32.mrb[0].mxu0
    %v2925 = vadd.f32 0.0, %v2924
    %v2926 = vpop.f32.mrb[0].mxu0
    %v2927 = vadd.f32 0.0, %v2926
    %2928 = vdwg.mxu0
    %v2929 = vadd.f32 %v2643, %v2878
    %v2930 = vadd.f32 %v2644, %v2880
    %v2931 = vadd.f32 %v2645, %v2921
    %v2932 = vadd.f32 %v2646, %v2923
    %v2933 = vadd.f32 %v2647, %v2882
    %v2934 = vadd.f32 %v2648, %v2884
    %v2935 = vadd.f32 %v2649, %v2925
    %v2936 = vadd.f32 %v2650, %v2927
    %v2937 = vxor.u32 %v2929, 2147483648
    %v2938 = vxor.u32 %v2933, 2147483648
    %v2939 = vmul.f32 %v2937, 1.442695
    %v2940 = vpow.pop %v2939
    %v2941 = vmul.f32 %v2938, 1.442695
    %v2942 = vpow.pop %v2941
    %v2943 = vadd.f32 %v2940, 1.0
    %v2944 = vadd.f32 %v2942, 1.0
    %v2945 = vrcp.pop %v2943
    %v2946 = vmul.f32 1.0, %v2945
    %v2947 = vrcp.pop %v2944
    %v2948 = vmul.f32 1.0, %v2947
    %v2949 = vxor.u32 %v2930, 2147483648
    %v2950 = vxor.u32 %v2934, 2147483648
    %v2951 = vmul.f32 %v2949, 1.442695
    %v2952 = vpow.pop %v2951
    %v2953 = vmul.f32 %v2950, 1.442695
    %v2954 = vpow.pop %v2953
    %v2955 = vadd.f32 %v2952, 1.0
    %v2956 = vadd.f32 %v2954, 1.0
    %v2957 = vrcp.pop %v2955
    %v2958 = vmul.f32 1.0, %v2957
    %v2959 = vrcp.pop %v2956
    %v2960 = vmul.f32 1.0, %v2959
    %v2961 = vtanh.pop %v2931
    %v2962 = vtanh.pop %v2935
    %v2963 = vxor.u32 %v2932, 2147483648
    %v2964 = vxor.u32 %v2936, 2147483648
    %v2965 = vmul.f32 %v2963, 1.442695
    %v2966 = vpow.pop %v2965
    %v2967 = vmul.f32 %v2964, 1.442695
    %v2968 = vpow.pop %v2967
    %v2969 = vadd.f32 %v2966, 1.0
    %v2970 = vadd.f32 %v2968, 1.0
    %v2971 = vrcp.pop %v2969
    %v2972 = vmul.f32 1.0, %v2971
    %v2973 = vrcp.pop %v2970
    %v2974 = vmul.f32 1.0, %v2973
    %v2975 = vmul.f32 %v2958, %v2619
    %v2976 = vmul.f32 %v2960, %v2620
    %v2977 = vmul.f32 %v2946, %v2961
    %v2978 = vmul.f32 %v2948, %v2962
    %v2979 = vadd.f32 %v2975, %v2977
    %v2980 = vadd.f32 %v2976, %v2978
    %v2981 = vtanh.pop %v2979
    %v2982 = vtanh.pop %v2980
    %v2983 = vmul.f32 %v2972, %v2981
    %v2984 = vmul.f32 %v2974, %v2982
    %v2985 = vpack.c.bf16 %v2984, %v2983
    %v2987 = vunpack.c.l.b16 %v2985
    %v2988 = vunpack.c.h.b16 %v2985
    %v2989 = vpack.c.b16 %v2987, %v2987
    %v2990 = vpack.c.b16 %v2988, %v2988
    %s2993 = scalar_lea.vmem [#allocation8], 48
    %2994 = vst [vmem:[%s2993] sm:$0xf] %v2989
    %2995 = vst [vmem:[%s2993 + $0x4] sm:$0xf] %v2990
    %s2996 = smul.u32 7, 4
    %s2997 = smul.addr %s2996, 8
    %s2998 = scalar_lea.vmem [#allocation2], %s2997
    %v2999 = vld [vmem:[%s2998] sm:$0xff]
    %v3000 = vld [vmem:[%s2998 + $0x8] sm:$0xff]
    %v3001 = vld [vmem:[%s2998 + $0x10] sm:$0xff]
    %v3002 = vld [vmem:[%s2998 + $0x18] sm:$0xff]
    %v3003 = vunpack.c.l.bf16 %v2999
    %v3004 = vunpack.c.l.bf16 %v3000
    %v3005 = vunpack.c.l.bf16 %v3001
    %v3006 = vunpack.c.l.bf16 %v3002
    %v3007 = vunpack.c.h.bf16 %v2999
    %v3008 = vunpack.c.h.bf16 %v3000
    %v3009 = vunpack.c.h.bf16 %v3001
    %v3010 = vunpack.c.h.bf16 %v3002
    %v3011 = vld [vmem:[#allocation5] sm:$0xff]
    %v3012 = vld [vmem:[#allocation5 + $0x8] sm:$0xff]
    %v3013 = vld [vmem:[#allocation5 + $0x10] sm:$0xff]
    %v3014 = vld [vmem:[#allocation5 + $0x18] sm:$0xff]
    %v3015 = vld [vmem:[#allocation5 + $0x20] sm:$0xff]
    %v3016 = vld [vmem:[#allocation5 + $0x28] sm:$0xff]
    %v3017 = vld [vmem:[#allocation5 + $0x30] sm:$0xff]
    %v3018 = vld [vmem:[#allocation5 + $0x38] sm:$0xff]
    %v3019 = vld [vmem:[#allocation5 + $0x40] sm:$0xff]
    %v3020 = vld [vmem:[#allocation5 + $0x48] sm:$0xff]
    %v3021 = vld [vmem:[#allocation5 + $0x50] sm:$0xff]
    %v3022 = vld [vmem:[#allocation5 + $0x58] sm:$0xff]
    %v3023 = vld [vmem:[#allocation5 + $0x60] sm:$0xff]
    %v3024 = vld [vmem:[#allocation5 + $0x68] sm:$0xff]
    %v3025 = vld [vmem:[#allocation5 + $0x70] sm:$0xff]
    %v3026 = vld [vmem:[#allocation5 + $0x78] sm:$0xff]
    %v3027 = vld [vmem:[#allocation5 + $0x80] sm:$0xff]
    %v3028 = vld [vmem:[#allocation5 + $0x88] sm:$0xff]
    %v3029 = vld [vmem:[#allocation5 + $0x90] sm:$0xff]
    %v3030 = vld [vmem:[#allocation5 + $0x98] sm:$0xff]
    %v3031 = vld [vmem:[#allocation5 + $0xa0] sm:$0xff]
    %v3032 = vld [vmem:[#allocation5 + $0xa8] sm:$0xff]
    %v3033 = vld [vmem:[#allocation5 + $0xb0] sm:$0xff]
    %v3034 = vld [vmem:[#allocation5 + $0xb8] sm:$0xff]
    %v3035 = vld [vmem:[#allocation5 + $0xc0] sm:$0xff]
    %v3036 = vld [vmem:[#allocation5 + $0xc8] sm:$0xff]
    %v3037 = vld [vmem:[#allocation5 + $0xd0] sm:$0xff]
    %v3038 = vld [vmem:[#allocation5 + $0xd8] sm:$0xff]
    %v3039 = vld [vmem:[#allocation5 + $0xe0] sm:$0xff]
    %v3040 = vld [vmem:[#allocation5 + $0xe8] sm:$0xff]
    %v3041 = vld [vmem:[#allocation5 + $0xf0] sm:$0xff]
    %v3042 = vld [vmem:[#allocation5 + $0xf8] sm:$0xff]
    %v3075 = vunpack.c.l.b16 %v3011
    %v3076 = vunpack.c.h.b16 %v3011
    %v3077 = vunpack.c.l.b16 %v3012
    %v3078 = vunpack.c.h.b16 %v3012
    %v3079 = vunpack.c.l.b16 %v3013
    %v3080 = vunpack.c.h.b16 %v3013
    %v3081 = vunpack.c.l.b16 %v3014
    %v3082 = vunpack.c.h.b16 %v3014
    %v3083 = vunpack.c.l.b16 %v3015
    %v3084 = vunpack.c.h.b16 %v3015
    %v3085 = vunpack.c.l.b16 %v3016
    %v3086 = vunpack.c.h.b16 %v3016
    %v3087 = vunpack.c.l.b16 %v3017
    %v3088 = vunpack.c.h.b16 %v3017
    %v3089 = vunpack.c.l.b16 %v3018
    %v3090 = vunpack.c.h.b16 %v3018
    %v3091 = vunpack.c.l.b16 %v3019
    %v3092 = vunpack.c.h.b16 %v3019
    %v3093 = vunpack.c.l.b16 %v3020
    %v3094 = vunpack.c.h.b16 %v3020
    %v3095 = vunpack.c.l.b16 %v3021
    %v3096 = vunpack.c.h.b16 %v3021
    %v3097 = vunpack.c.l.b16 %v3022
    %v3098 = vunpack.c.h.b16 %v3022
    %v3099 = vunpack.c.l.b16 %v3023
    %v3100 = vunpack.c.h.b16 %v3023
    %v3101 = vunpack.c.l.b16 %v3024
    %v3102 = vunpack.c.h.b16 %v3024
    %v3103 = vunpack.c.l.b16 %v3025
    %v3104 = vunpack.c.h.b16 %v3025
    %v3105 = vunpack.c.l.b16 %v3026
    %v3106 = vunpack.c.h.b16 %v3026
    %v3107 = vunpack.c.l.b16 %v3027
    %v3108 = vunpack.c.h.b16 %v3027
    %v3109 = vunpack.c.l.b16 %v3028
    %v3110 = vunpack.c.h.b16 %v3028
    %v3111 = vunpack.c.l.b16 %v3029
    %v3112 = vunpack.c.h.b16 %v3029
    %v3113 = vunpack.c.l.b16 %v3030
    %v3114 = vunpack.c.h.b16 %v3030
    %v3115 = vunpack.c.l.b16 %v3031
    %v3116 = vunpack.c.h.b16 %v3031
    %v3117 = vunpack.c.l.b16 %v3032
    %v3118 = vunpack.c.h.b16 %v3032
    %v3119 = vunpack.c.l.b16 %v3033
    %v3120 = vunpack.c.h.b16 %v3033
    %v3121 = vunpack.c.l.b16 %v3034
    %v3122 = vunpack.c.h.b16 %v3034
    %v3123 = vunpack.c.l.b16 %v3035
    %v3124 = vunpack.c.h.b16 %v3035
    %v3125 = vunpack.c.l.b16 %v3036
    %v3126 = vunpack.c.h.b16 %v3036
    %v3127 = vunpack.c.l.b16 %v3037
    %v3128 = vunpack.c.h.b16 %v3037
    %v3129 = vunpack.c.l.b16 %v3038
    %v3130 = vunpack.c.h.b16 %v3038
    %v3131 = vunpack.c.l.b16 %v3039
    %v3132 = vunpack.c.h.b16 %v3039
    %v3133 = vunpack.c.l.b16 %v3040
    %v3134 = vunpack.c.h.b16 %v3040
    %v3135 = vunpack.c.l.b16 %v3041
    %v3136 = vunpack.c.h.b16 %v3041
    %v3137 = vunpack.c.l.b16 %v3042
    %v3138 = vunpack.c.h.b16 %v3042
    %v3139 = vpack.c.b16 %v3079, %v3075
    %v3140 = vpack.c.b16 %v3080, %v3076
    %v3141 = vpack.c.b16 %v3081, %v3077
    %v3142 = vpack.c.b16 %v3082, %v3078
    %v3143 = vpack.c.b16 %v3087, %v3083
    %v3144 = vpack.c.b16 %v3088, %v3084
    %v3145 = vpack.c.b16 %v3089, %v3085
    %v3146 = vpack.c.b16 %v3090, %v3086
    %v3147 = vpack.c.b16 %v3095, %v3091
    %v3148 = vpack.c.b16 %v3096, %v3092
    %v3149 = vpack.c.b16 %v3097, %v3093
    %v3150 = vpack.c.b16 %v3098, %v3094
    %v3151 = vpack.c.b16 %v3103, %v3099
    %v3152 = vpack.c.b16 %v3104, %v3100
    %v3153 = vpack.c.b16 %v3105, %v3101
    %v3154 = vpack.c.b16 %v3106, %v3102
    %v3155 = vpack.c.b16 %v3111, %v3107
    %v3156 = vpack.c.b16 %v3112, %v3108
    %v3157 = vpack.c.b16 %v3113, %v3109
    %v3158 = vpack.c.b16 %v3114, %v3110
    %v3159 = vpack.c.b16 %v3119, %v3115
    %v3160 = vpack.c.b16 %v3120, %v3116
    %v3161 = vpack.c.b16 %v3121, %v3117
    %v3162 = vpack.c.b16 %v3122, %v3118
    %v3163 = vpack.c.b16 %v3127, %v3123
    %v3164 = vpack.c.b16 %v3128, %v3124
    %v3165 = vpack.c.b16 %v3129, %v3125
    %v3166 = vpack.c.b16 %v3130, %v3126
    %v3167 = vpack.c.b16 %v3135, %v3131
    %v3168 = vpack.c.b16 %v3136, %v3132
    %v3169 = vpack.c.b16 %v3137, %v3133
    %v3170 = vpack.c.b16 %v3138, %v3134
    %3203 = vmatprep.subr.bf16.mxu0 %v3140
    %3204 = vmatpush1.bf16.msra.mxu0 %v3139
    %3205 = vmatprep.subr.bf16.mxu0 %v3144
    %3206 = vmatpush1.bf16.msra.mxu0 %v3143
    %3207 = vmatprep.subr.bf16.mxu0 %v3148
    %3208 = vmatpush1.bf16.msra.mxu0 %v3147
    %3209 = vmatprep.subr.bf16.mxu0 %v3152
    %3210 = vmatpush1.bf16.msra.mxu0 %v3151
    %3211 = vmatprep.subr.bf16.mxu0 %v3156
    %3212 = vmatpush1.bf16.msra.mxu0 %v3155
    %3213 = vmatprep.subr.bf16.mxu0 %v3160
    %3214 = vmatpush1.bf16.msra.mxu0 %v3159
    %3215 = vmatprep.subr.bf16.mxu0 %v3164
    %3216 = vmatpush1.bf16.msra.mxu0 %v3163
    %3217 = vmatprep.subr.bf16.mxu0 %v3168
    %3218 = vmatpush1.bf16.msra.mxu0 %v3167
    %3219 = vmatprep.subr.bf16.mxu0 0
    %3220 = vmatpush1.bf16.msra.mxu0 0
    %3221 = vmatprep.subr.bf16.mxu0 0
    %3222 = vmatpush1.bf16.msra.mxu0 0
    %3223 = vmatprep.subr.bf16.mxu0 0
    %3224 = vmatpush1.bf16.msra.mxu0 0
    %3225 = vmatprep.subr.bf16.mxu0 0
    %3226 = vmatpush1.bf16.msra.mxu0 0
    %3227 = vmatprep.subr.bf16.mxu0 0
    %3228 = vmatpush1.bf16.msra.mxu0 0
    %3229 = vmatprep.subr.bf16.mxu0 0
    %3230 = vmatpush1.bf16.msra.mxu0 0
    %3231 = vmatprep.subr.bf16.mxu0 0
    %3232 = vmatpush1.bf16.msra.mxu0 0
    %3233 = vmatprep.subr.bf16.mxu0 0
    %3234 = vmatpush1.bf16.msra.mxu0 0
    %3235 = vmatprep.mubr.bf16.mxu0 0
    %3236 = vmatmul.mubr.bf16.gmra.mrb[0].mxu0 %v2985
    %v3237 = vpop.f32.mrb[0].mxu0
    %v3238 = vadd.f32 0.0, %v3237
    %v3239 = vpop.f32.mrb[0].mxu0
    %v3240 = vadd.f32 0.0, %v3239
    %v3241 = vpop.f32.mrb[0].mxu0
    %v3242 = vadd.f32 0.0, %v3241
    %v3243 = vpop.f32.mrb[0].mxu0
    %v3244 = vadd.f32 0.0, %v3243
    %3245 = vdwg.mxu0
    %3246 = vmatprep.subr.bf16.mxu0 %v3142
    %3247 = vmatpush1.bf16.msra.mxu0 %v3141
    %3248 = vmatprep.subr.bf16.mxu0 %v3146
    %3249 = vmatpush1.bf16.msra.mxu0 %v3145
    %3250 = vmatprep.subr.bf16.mxu0 %v3150
    %3251 = vmatpush1.bf16.msra.mxu0 %v3149
    %3252 = vmatprep.subr.bf16.mxu0 %v3154
    %3253 = vmatpush1.bf16.msra.mxu0 %v3153
    %3254 = vmatprep.subr.bf16.mxu0 %v3158
    %3255 = vmatpush1.bf16.msra.mxu0 %v3157
    %3256 = vmatprep.subr.bf16.mxu0 %v3162
    %3257 = vmatpush1.bf16.msra.mxu0 %v3161
    %3258 = vmatprep.subr.bf16.mxu0 %v3166
    %3259 = vmatpush1.bf16.msra.mxu0 %v3165
    %3260 = vmatprep.subr.bf16.mxu0 %v3170
    %3261 = vmatpush1.bf16.msra.mxu0 %v3169
    %3262 = vmatprep.subr.bf16.mxu0 0
    %3263 = vmatpush1.bf16.msra.mxu0 0
    %3264 = vmatprep.subr.bf16.mxu0 0
    %3265 = vmatpush1.bf16.msra.mxu0 0
    %3266 = vmatprep.subr.bf16.mxu0 0
    %3267 = vmatpush1.bf16.msra.mxu0 0
    %3268 = vmatprep.subr.bf16.mxu0 0
    %3269 = vmatpush1.bf16.msra.mxu0 0
    %3270 = vmatprep.subr.bf16.mxu0 0
    %3271 = vmatpush1.bf16.msra.mxu0 0
    %3272 = vmatprep.subr.bf16.mxu0 0
    %3273 = vmatpush1.bf16.msra.mxu0 0
    %3274 = vmatprep.subr.bf16.mxu0 0
    %3275 = vmatpush1.bf16.msra.mxu0 0
    %3276 = vmatprep.subr.bf16.mxu0 0
    %3277 = vmatpush1.bf16.msra.mxu0 0
    %3278 = vmatprep.mubr.bf16.mxu0 0
    %3279 = vmatmul.mubr.bf16.gmra.mrb[0].mxu0 %v2985
    %v3280 = vpop.f32.mrb[0].mxu0
    %v3281 = vadd.f32 0.0, %v3280
    %v3282 = vpop.f32.mrb[0].mxu0
    %v3283 = vadd.f32 0.0, %v3282
    %v3284 = vpop.f32.mrb[0].mxu0
    %v3285 = vadd.f32 0.0, %v3284
    %v3286 = vpop.f32.mrb[0].mxu0
    %v3287 = vadd.f32 0.0, %v3286
    %3288 = vdwg.mxu0
    %v3289 = vadd.f32 %v3003, %v3238
    %v3290 = vadd.f32 %v3004, %v3240
    %v3291 = vadd.f32 %v3005, %v3281
    %v3292 = vadd.f32 %v3006, %v3283
    %v3293 = vadd.f32 %v3007, %v3242
    %v3294 = vadd.f32 %v3008, %v3244
    %v3295 = vadd.f32 %v3009, %v3285
    %v3296 = vadd.f32 %v3010, %v3287
    %v3297 = vxor.u32 %v3289, 2147483648
    %v3298 = vxor.u32 %v3293, 2147483648
    %v3299 = vmul.f32 %v3297, 1.442695
    %v3300 = vpow.pop %v3299
    %v3301 = vmul.f32 %v3298, 1.442695
    %v3302 = vpow.pop %v3301
    %v3303 = vadd.f32 %v3300, 1.0
    %v3304 = vadd.f32 %v3302, 1.0
    %v3305 = vrcp.pop %v3303
    %v3306 = vmul.f32 1.0, %v3305
    %v3307 = vrcp.pop %v3304
    %v3308 = vmul.f32 1.0, %v3307
    %v3309 = vxor.u32 %v3290, 2147483648
    %v3310 = vxor.u32 %v3294, 2147483648
    %v3311 = vmul.f32 %v3309, 1.442695
    %v3312 = vpow.pop %v3311
    %v3313 = vmul.f32 %v3310, 1.442695
    %v3314 = vpow.pop %v3313
    %v3315 = vadd.f32 %v3312, 1.0
    %v3316 = vadd.f32 %v3314, 1.0
    %v3317 = vrcp.pop %v3315
    %v3318 = vmul.f32 1.0, %v3317
    %v3319 = vrcp.pop %v3316
    %v3320 = vmul.f32 1.0, %v3319
    %v3321 = vtanh.pop %v3291
    %v3322 = vtanh.pop %v3295
    %v3323 = vxor.u32 %v3292, 2147483648
    %v3324 = vxor.u32 %v3296, 2147483648
    %v3325 = vmul.f32 %v3323, 1.442695
    %v3326 = vpow.pop %v3325
    %v3327 = vmul.f32 %v3324, 1.442695
    %v3328 = vpow.pop %v3327
    %v3329 = vadd.f32 %v3326, 1.0
    %v3330 = vadd.f32 %v3328, 1.0
    %v3331 = vrcp.pop %v3329
    %v3332 = vmul.f32 1.0, %v3331
    %v3333 = vrcp.pop %v3330
    %v3334 = vmul.f32 1.0, %v3333
    %v3335 = vmul.f32 %v3318, %v2979
    %v3336 = vmul.f32 %v3320, %v2980
    %v3337 = vmul.f32 %v3306, %v3321
    %v3338 = vmul.f32 %v3308, %v3322
    %v3339 = vadd.f32 %v3335, %v3337
    %v3340 = vadd.f32 %v3336, %v3338
    %v3341 = vtanh.pop %v3339
    %v3342 = vtanh.pop %v3340
    %v3343 = vmul.f32 %v3332, %v3341
    %v3344 = vmul.f32 %v3334, %v3342
    %v3345 = vpack.c.bf16 %v3344, %v3343
    %v3347 = vunpack.c.l.b16 %v3345
    %v3348 = vunpack.c.h.b16 %v3345
    %v3349 = vpack.c.b16 %v3347, %v3347
    %v3350 = vpack.c.b16 %v3348, %v3348
    %s3353 = scalar_lea.vmem [#allocation8], 56
    %3354 = vst [vmem:[%s3353] sm:$0xf] %v3349
    %3355 = vst [vmem:[%s3353 + $0x4] sm:$0xf] %v3350
    %3356 = vst [vmem:[#allocation3] sm:$0xff] %v3343
    %3357 = vst [vmem:[#allocation3 + $0x8] sm:$0xff] %v3344
    %3358 = vst [vmem:[#allocation4] sm:$0xff] %v3339
    %3359 = vst [vmem:[#allocation4 + $0x8] sm:$0xff] %v3340
    // Predicated region
    $region34: #{tpu_custom_call.1} parent=1 // pred_check
      %p3360 = pneg %p43
    $region35: #{tpu_custom_call.1} parent=1 // pred_check_branch
      %3362 = sbr.rel (%p3360) target = $region37
    $region36: #{tpu_custom_call.1} parent=1 // pred_region
      %3363 = vst [vmem:[#allocation9] sm:$0xff] %v3343
      %3364 = vst [vmem:[#allocation9 + $0x8] sm:$0xff] %v3344
      %3365 = vst [vmem:[#allocation11] sm:$0xff] %v3339
      %3366 = vst [vmem:[#allocation11 + $0x8] sm:$0xff] %v3340
    $region37: #{tpu_custom_call.1} parent=1 // pred_fallthru
      _
    // Predicated region
    $region38: #{tpu_custom_call.1} parent=1 // pred_check
      _
    $region39: #{tpu_custom_call.1} parent=1 // pred_check_branch
      %3368 = sbr.rel (0) target = $region41
    $region40: #{tpu_custom_call.1} parent=1 // pred_region
      %s3370 = ssub.s32 1024, 1024
      %3371 = vsyncadd [#allocation7], %s3370
      %s3372 = sshll.u32 [#allocation8], 4
      %s3373 = int_to_ptr.vmem [resolvable:$true] %s3372
      %3378 = dma.vmem_to_hbm [thread:$0]  %s3373, 1024, %s6, [#allocation7], 64, 64, 4
    $region41: #{tpu_custom_call.1} parent=1 // pred_fallthru
      _
    // Predicated region
    $region42: #{tpu_custom_call.1} parent=1 // pred_check
      _
    $region43: #{tpu_custom_call.1} parent=1 // pred_check_branch
      %3380 = sbr.rel (0) target = $region45
    $region44: #{tpu_custom_call.1} parent=1 // pred_region
      %s3382 = ssub.s32 256, 256
      %3383 = vsyncadd [#allocation10], %s3382
      %s3384 = sshll.u32 [#allocation9], 4
      %s3385 = int_to_ptr.vmem [resolvable:$true] %s3384
      %3390 = dma.vmem_to_hbm [thread:$0]  %s3385, 256, %s7, [#allocation10], 128, 128, 8
    $region45: #{tpu_custom_call.1} parent=1 // pred_fallthru
      _
    // Predicated region
    $region46: #{tpu_custom_call.1} parent=1 // pred_check
      _
    $region47: #{tpu_custom_call.1} parent=1 // pred_check_branch
      %3392 = sbr.rel (0) target = $region49
    $region48: #{tpu_custom_call.1} parent=1 // pred_region
      %s3394 = ssub.s32 256, 256
      %3395 = vsyncadd [#allocation10], %s3394
      %s3396 = sshll.u32 [#allocation11], 4
      %s3397 = int_to_ptr.vmem [resolvable:$true] %s3396
      %3402 = dma.vmem_to_hbm [thread:$0]  %s3397, 256, %s8, [#allocation10], 128, 128, 8
    $region49: #{tpu_custom_call.1} parent=1 // pred_fallthru
      _
    // Predicated region
    $region50: #{tpu_custom_call.1} parent=1 // pred_check
      _
    $region51: #{tpu_custom_call.1} parent=1 // pred_check_branch
      %3404 = sbr.rel (0) target = $region53
    $region52: #{tpu_custom_call.1} parent=1 // pred_region
      %3405 = dma.done [#allocation7], 1024
    $region53: #{tpu_custom_call.1} parent=1 // pred_fallthru
      _
    // Predicated region
    $region54: #{tpu_custom_call.1} parent=1 // pred_check
      _
    $region55: #{tpu_custom_call.1} parent=1 // pred_check_branch
      %3407 = sbr.rel (0) target = $region57
    $region56: #{tpu_custom_call.1} parent=1 // pred_region
      %3408 = dma.done [#allocation10], 256
    $region57: #{tpu_custom_call.1} parent=1 // pred_fallthru
      _
    // Predicated region
    $region58: #{tpu_custom_call.1} parent=1 // pred_check
      _
    $region59: #{tpu_custom_call.1} parent=1 // pred_check_branch
      %3410 = sbr.rel (0) target = $region61
    $region60: #{tpu_custom_call.1} parent=1 // pred_region
      %3411 = dma.done [#allocation10], 256
    $region61: #{tpu_custom_call.1} parent=1 // pred_fallthru
      _
    %3412 = vsyncpa [#allocation6], 1
    %3413 = vsyncpa [#allocation7], 1
    %3414 = vsyncpa [#allocation10], 1

</llo_original>
